<compile_context>
chip_gen: v6e
topology: v6e:2x2x1
jax: 0.10.0
libtpu: 0.0.40
codegen_flags: <defaults>
</compile_context>

<pallas_src>
import functools

import jax
import jax.numpy as jnp
from jax.experimental import pallas as pl
from jax.experimental.pallas import tpu as pltpu


OUT_COLS = 128  # lane-dense padded width of the final Linear's output


def _layernorm(x, gamma, beta, eps=1e-5):
    mu = jnp.mean(x, axis=-1, keepdims=True)
    var = jnp.mean(jnp.square(x - mu), axis=-1, keepdims=True)
    return (x - mu) * jax.lax.rsqrt(var + eps) * gamma + beta


# ------------------------------ fused kernel -------------------------------- #

def _fused_forward_kernel(order,
                          uidx_ref, sidx_ref,      # (B,1) int32
                          mn_ref, mnT_ref,         # (U,S)/(S,U) bf16
                          ue_ref, ie_ref,          # (U,D)/(S,D) f32
                          w1u_ref, w1i_ref,        # (D,H) f32 (hth folded in)
                          vecs_ref,                # (6,H) f32: b1,g1,be1,b2,g2,be2
                          w2_ref,                  # (H,H) f32
                          w3p_ref, b3p_ref,        # (H,128)/(1,128) f32 (padded)
                          out_ref):                # (B,128) f32
    f32 = jnp.float32

    # ---- GCN propagation over the bipartite graph: `order` rounds on the MXU
    #      (bf16 operands, f32 accumulation); intermediates stay in VMEM. ----
    e_u = ue_ref[...]
    e_i = ie_ref[...]
    mn = mn_ref[...]
    mnT = mnT_ref[...]
    for _ in range(order):
        nu = jnp.dot(mn, e_i.astype(jnp.bfloat16), preferred_element_type=f32)
        ni = jnp.dot(mnT, e_u.astype(jnp.bfloat16), preferred_element_type=f32)
        e_u, e_i = nu, ni

    # ---- In-kernel userIdx/servIdx row gather via one-hot matmul (exact for
    #      the f32 embedding values; no XLA gather, no HBM round trip). ----
    b = uidx_ref.shape[0]
    u = e_u.shape[0]
    s = e_i.shape[0]
    oh_u = jnp.where(
        uidx_ref[...] == jax.lax.broadcasted_iota(jnp.int32, (b, u), 1), 1.0, 0.0)
    oh_i = jnp.where(
        sidx_ref[...] == jax.lax.broadcasted_iota(jnp.int32, (b, s), 1), 1.0, 0.0)
    xu = jnp.dot(oh_u, e_u, preferred_element_type=f32)   # (B, D)
    xi = jnp.dot(oh_i, e_i, preferred_element_type=f32)   # (B, D)

    # ---- NeuCF MLP.  hgnn (hyper.T @ hyper) is folded into w1u/w1i, and
    #      concat([xu, xi]) @ W1 == xu @ W1[:D] + xi @ W1[D:]. ----
    b1, g1, be1 = vecs_ref[0:1, :], vecs_ref[1:2, :], vecs_ref[2:3, :]
    b2, g2, be2 = vecs_ref[3:4, :], vecs_ref[4:5, :], vecs_ref[5:6, :]

    h = (jnp.dot(xu, w1u_ref[...], preferred_element_type=f32)
         + jnp.dot(xi, w1i_ref[...], preferred_element_type=f32) + b1)
    h = jnp.maximum(_layernorm(h, g1, be1), 0.0)
    h = jnp.dot(h, w2_ref[...], preferred_element_type=f32) + b2
    h = jnp.maximum(_layernorm(h, g2, be2), 0.0)
    # Final Linear padded to 128 output columns -> lane-dense unmasked store.
    out_ref[...] = (jnp.dot(h, w3p_ref[...], preferred_element_type=f32)
                    + b3p_ref[...])


def hypermodel_forward(params, mn_bf16, mnT_bf16, user_idx, serv_idx, *, order):
    """Whole HyperModel forward pass as one fused pallas_call."""
    u_emb, i_emb = params["uEmbeds"], params["iEmbeds"]
    dim = u_emb.shape[1]
    w1, b1, g1, be1, w2, b2, g2, be2, w3, b3 = params["mlp"]
    hid = w2.shape[0]

    # hyper.T @ hyper is (dim, dim); fold it into the first Linear's two halves
    # (tiny XLA dots, hoisted out of the kernel).
    hth_u = jnp.dot(params["uHyper"].T, params["uHyper"],
                    preferred_element_type=jnp.float32)
    hth_i = jnp.dot(params["iHyper"].T, params["iHyper"],
                    preferred_element_type=jnp.float32)
    w1u = jnp.dot(hth_u, w1[:dim, :], preferred_element_type=jnp.float32)
    w1i = jnp.dot(hth_i, w1[dim:, :], preferred_element_type=jnp.float32)

    # Pack the six (1, hid) LayerNorm/bias vectors into one resident operand.
    vecs = jnp.concatenate([b1, g1, be1, b2, g2, be2], axis=0)       # (6, hid)

    # Pad the last Linear to 128 output columns (real score lives in column 0).
    w3p = jnp.zeros((hid, OUT_COLS), jnp.float32).at[:, :1].set(w3)
    b3p = jnp.zeros((1, OUT_COLS), jnp.float32).at[:, :1].set(b3)

    uidx = user_idx.astype(jnp.int32).reshape(-1, 1)
    sidx = serv_idx.astype(jnp.int32).reshape(-1, 1)
    batch = uidx.shape[0]

    inputs = (uidx, sidx, mn_bf16, mnT_bf16, u_emb, i_emb,
              w1u, w1i, vecs, w2, w3p, b3p)

    def _full_spec(x):
        # Full-array blocks -> no (8,128) divisibility requirement.
        return pl.BlockSpec(x.shape, lambda i: (0,) * x.ndim)

    io_bytes = (sum(int(a.size) * a.dtype.itemsize for a in inputs)
                + batch * OUT_COLS * 4)
    # Derived from actual buffers + headroom; well under every chip's VMEM.
    vmem_limit = int(min(max(4 * io_bytes + (8 << 20), 16 << 20), 32 << 20))

    out = pl.pallas_call(
        functools.partial(_fused_forward_kernel, order),
        out_shape=jax.ShapeDtypeStruct((batch, OUT_COLS), jnp.float32),
        grid_spec=pltpu.PrefetchScalarGridSpec(
            num_scalar_prefetch=0,
            grid=(1,),                               # everything fits in VMEM
            in_specs=[_full_spec(a) for a in inputs],
            out_specs=pl.BlockSpec((batch, OUT_COLS), lambda i: (0, 0))),
        compiler_params=pltpu.CompilerParams(
            dimension_semantics=("arbitrary",),      # single step, nothing to split
            vmem_limit_bytes=vmem_limit),
    )(*inputs)
    return out[:, :1]


# -------------------------------- model glue -------------------------------- #

def build_norm_bipartite(train_tensor):
    """Normalized user-service block of makeTorchAdj/normalizeAdj:
    Mn = D_u^-1/2 * M * D_s^-1/2  (the full adj is [[0, Mn], [Mn^T, 0]])."""
    m = (train_tensor != 0).astype(jnp.float32)
    deg_u = m.sum(axis=1)
    deg_s = m.sum(axis=0)
    du = jnp.where(deg_u > 0, deg_u ** -0.5, 0.0)
    ds = jnp.where(deg_s > 0, deg_s ** -0.5, 0.0)
    return m * du[:, None] * ds[None, :]


def xavier_uniform(key, shape):
    fan_in, fan_out = shape[0], shape[1]
    bound = (6.0 / (fan_in + fan_out)) ** 0.5
    return jax.random.uniform(key, shape, jnp.float32, -bound, bound)


def init_params(key, user_num, serv_num, dim):
    hid = dim // 2  # hidden_dim // 2 in DNNInteraction
    ks = jax.random.split(key, 8)
    # Linear weights stored transposed (in, out) so the kernel does x @ W.
    mlp = (
        xavier_uniform(ks[4], (2 * dim, hid)), jnp.zeros((1, hid), jnp.float32),
        jnp.ones((1, hid), jnp.float32), jnp.zeros((1, hid), jnp.float32),
        xavier_uniform(ks[5], (hid, hid)), jnp.zeros((1, hid), jnp.float32),
        jnp.ones((1, hid), jnp.float32), jnp.zeros((1, hid), jnp.float32),
        xavier_uniform(ks[6], (hid, 1)), jnp.zeros((1, 1), jnp.float32),
    )
    return {
        "uEmbeds": xavier_uniform(ks[0], (user_num, dim)),
        "iEmbeds": xavier_uniform(ks[1], (serv_num, dim)),
        "uHyper": xavier_uniform(ks[2], (32, dim)),
        "iHyper": xavier_uniform(ks[3], (32, dim)),
        "mlp": mlp,
    }


def reference_forward(params, mn, user_idx, serv_idx, *, order):
    """Pure-JAX reference with the literal hgnn-then-gather structure of the
    PyTorch module (mirrors the bf16 GCN operand cast of the kernel path)."""
    mn_bf = mn.astype(jnp.bfloat16)
    mnT_bf = mn.T.astype(jnp.bfloat16)
    e_u, e_i = params["uEmbeds"], params["iEmbeds"]
    for _ in range(order):
        nu = jnp.dot(mn_bf, e_i.astype(jnp.bfloat16),
                     preferred_element_type=jnp.float32)
        ni = jnp.dot(mnT_bf, e_u.astype(jnp.bfloat16),
                     preferred_element_type=jnp.float32)
        e_u, e_i = nu, ni
    hth_u = params["uHyper"].T @ params["uHyper"]
    hth_i = params["iHyper"].T @ params["iHyper"]
    x = jnp.concatenate([(e_u @ hth_u)[user_idx], (e_i @ hth_i)[serv_idx]], axis=1)
    w1, b1, g1, be1, w2, b2, g2, be2, w3, b3 = params["mlp"]
    h = jnp.maximum(_layernorm(x @ w1 + b1, g1, be1), 0.0)
    h = jnp.maximum(_layernorm(h @ w2 + b2, g2, be2), 0.0)
    return h @ w3 + b3


# ----------------------------------- Main ------------------------------------ #

if __name__ == "__main__":
    USER_NUM, SERV_NUM, DIM, ORDER, BATCH = 128, 384, 32, 2, 256

    key = jax.random.PRNGKey(0)
    k_train, k_params, k_u, k_i = jax.random.split(key, 4)

    # Synthetic binary interaction matrix (train_tensor[train_tensor != 0] = 1).
    train_tensor = (jax.random.uniform(k_train, (USER_NUM, SERV_NUM)) > 0.6
                    ).astype(jnp.float32)
    mn = build_norm_bipartite(train_tensor)          # normalized (U, S) block
    mn_bf16 = mn.astype(jnp.bfloat16)                # precomputed, like self.adj
    mnT_bf16 = mn.T.astype(jnp.bfloat16)

    params = init_params(k_params, USER_NUM, SERV_NUM, DIM)
    user_idx = jax.random.randint(k_u, (BATCH,), 0, USER_NUM)
    serv_idx = jax.random.randint(k_i, (BATCH,), 0, SERV_NUM)

    fwd = jax.jit(functools.partial(hypermodel_forward, order=ORDER))
    estimated = fwd(params, mn_bf16, mnT_bf16, user_idx, serv_idx)
    jax.block_until_ready(estimated)

    assert estimated.shape == (BATCH, 1), estimated.shape
    assert estimated.dtype == jnp.float32

    ref = reference_forward(params, mn, user_idx, serv_idx, order=ORDER)
    assert jnp.allclose(estimated, ref, rtol=2e-2, atol=2e-2), (
        "max abs diff vs pure-JAX reference: "
        f"{float(jnp.max(jnp.abs(estimated - ref)))}")

    print("KERNEL_OK")
</pallas_src>

<mosaic_0001>
module attributes {stable_mosaic.version = 11 : i64} {
  func.func @_fused_forward_kernel(%arg0: i32, %arg1: memref<256x1xi32, #tpu.memory_space<vmem>>, %arg2: memref<256x1xi32, #tpu.memory_space<vmem>>, %arg3: memref<128x384xbf16, #tpu.memory_space<vmem>>, %arg4: memref<384x128xbf16, #tpu.memory_space<vmem>>, %arg5: memref<128x32xf32, #tpu.memory_space<vmem>>, %arg6: memref<384x32xf32, #tpu.memory_space<vmem>>, %arg7: memref<32x16xf32, #tpu.memory_space<vmem>>, %arg8: memref<32x16xf32, #tpu.memory_space<vmem>>, %arg9: memref<6x16xf32, #tpu.memory_space<vmem>>, %arg10: memref<16x16xf32, #tpu.memory_space<vmem>>, %arg11: memref<16x128xf32, #tpu.memory_space<vmem>>, %arg12: memref<1x128xf32, #tpu.memory_space<vmem>>, %arg13: memref<256x128xf32, #tpu.memory_space<vmem>>) attributes {dimension_semantics = [#tpu.dimension_semantics<arbitrary>], iteration_bounds = array<i64: 1>, scalar_prefetch = 0 : i64, scratch_operands = 0 : i64, tpu.core_type = #tpu.core_type<tc>, window_params = [{pipeline_mode = #tpu.pipeline_mode<synchronous>, transform_indices = @transform_0, window_bounds = array<i64: 256, 1>}, {pipeline_mode = #tpu.pipeline_mode<synchronous>, transform_indices = @transform_1, window_bounds = array<i64: 256, 1>}, {pipeline_mode = #tpu.pipeline_mode<synchronous>, transform_indices = @transform_2, window_bounds = array<i64: 128, 384>}, {pipeline_mode = #tpu.pipeline_mode<synchronous>, transform_indices = @transform_3, window_bounds = array<i64: 384, 128>}, {pipeline_mode = #tpu.pipeline_mode<synchronous>, transform_indices = @transform_4, window_bounds = array<i64: 128, 32>}, {pipeline_mode = #tpu.pipeline_mode<synchronous>, transform_indices = @transform_5, window_bounds = array<i64: 384, 32>}, {pipeline_mode = #tpu.pipeline_mode<synchronous>, transform_indices = @transform_6, window_bounds = array<i64: 32, 16>}, {pipeline_mode = #tpu.pipeline_mode<synchronous>, transform_indices = @transform_7, window_bounds = array<i64: 32, 16>}, {pipeline_mode = #tpu.pipeline_mode<synchronous>, transform_indices = @transform_8, window_bounds = array<i64: 6, 16>}, {pipeline_mode = #tpu.pipeline_mode<synchronous>, transform_indices = @transform_9, window_bounds = array<i64: 16, 16>}, {pipeline_mode = #tpu.pipeline_mode<synchronous>, transform_indices = @transform_10, window_bounds = array<i64: 16, 128>}, {pipeline_mode = #tpu.pipeline_mode<synchronous>, transform_indices = @transform_11, window_bounds = array<i64: 1, 128>}, {pipeline_mode = #tpu.pipeline_mode<synchronous>, transform_indices = @transform_12, window_bounds = array<i64: 256, 128>}]} {
    %c0 = arith.constant 0 : index
    %c0_0 = arith.constant 0 : index
    %0 = vector.load %arg5[%c0, %c0_0] : memref<128x32xf32, #tpu.memory_space<vmem>>, vector<128x32xf32>
    %c0_1 = arith.constant 0 : index
    %c0_2 = arith.constant 0 : index
    %1 = vector.load %arg6[%c0_1, %c0_2] : memref<384x32xf32, #tpu.memory_space<vmem>>, vector<384x32xf32>
    %c0_3 = arith.constant 0 : index
    %c0_4 = arith.constant 0 : index
    %2 = vector.load %arg3[%c0_3, %c0_4] : memref<128x384xbf16, #tpu.memory_space<vmem>>, vector<128x384xbf16>
    %c0_5 = arith.constant 0 : index
    %c0_6 = arith.constant 0 : index
    %3 = vector.load %arg4[%c0_5, %c0_6] : memref<384x128xbf16, #tpu.memory_space<vmem>>, vector<384x128xbf16>
    %4 = arith.truncf %1 : vector<384x32xf32> to vector<384x32xbf16>
    %cst = arith.constant dense<0.000000e+00> : vector<128x32xf32>
    %5 = tpu.matmul %2, %4, %cst {dimension_numbers = #tpu.dot_dimension_numbers<[1], [0], [0], [1], [0, 0, 1, 1], [], []>} : vector<128x384xbf16>, vector<384x32xbf16>, vector<128x32xf32> -> vector<128x32xf32>
    %6 = arith.truncf %0 : vector<128x32xf32> to vector<128x32xbf16>
    %cst_7 = arith.constant dense<0.000000e+00> : vector<384x32xf32>
    %7 = tpu.matmul %3, %6, %cst_7 {dimension_numbers = #tpu.dot_dimension_numbers<[1], [0], [0], [1], [0, 0, 1, 1], [], []>} : vector<384x128xbf16>, vector<128x32xbf16>, vector<384x32xf32> -> vector<384x32xf32>
    %8 = arith.truncf %7 : vector<384x32xf32> to vector<384x32xbf16>
    %cst_8 = arith.constant dense<0.000000e+00> : vector<128x32xf32>
    %9 = tpu.matmul %2, %8, %cst_8 {dimension_numbers = #tpu.dot_dimension_numbers<[1], [0], [0], [1], [0, 0, 1, 1], [], []>} : vector<128x384xbf16>, vector<384x32xbf16>, vector<128x32xf32> -> vector<128x32xf32>
    %10 = arith.truncf %5 : vector<128x32xf32> to vector<128x32xbf16>
    %cst_9 = arith.constant dense<0.000000e+00> : vector<384x32xf32>
    %11 = tpu.matmul %3, %10, %cst_9 {dimension_numbers = #tpu.dot_dimension_numbers<[1], [0], [0], [1], [0, 0, 1, 1], [], []>} : vector<384x128xbf16>, vector<128x32xbf16>, vector<384x32xf32> -> vector<384x32xf32>
    %c0_10 = arith.constant 0 : index
    %c0_11 = arith.constant 0 : index
    %12 = vector.load %arg1[%c0_10, %c0_11] : memref<256x1xi32, #tpu.memory_space<vmem>>, vector<256x1xi32>
    %13 = tpu.iota {dimensions = array<i32: 1>} : vector<256x128xi32>
    %14 = vector.broadcast %12 : vector<256x1xi32> to vector<256x128xi32>
    %15 = arith.cmpi eq, %14, %13 : vector<256x128xi32>
    %cst_12 = arith.constant 1.000000e+00 : f32
    %cst_13 = arith.constant 0.000000e+00 : f32
    %16 = vector.broadcast %cst_12 : f32 to vector<256x128xf32>
    %17 = vector.broadcast %cst_13 : f32 to vector<256x128xf32>
    %18 = arith.select %15, %16, %17 : vector<256x128xi1>, vector<256x128xf32>
    %c0_14 = arith.constant 0 : index
    %c0_15 = arith.constant 0 : index
    %19 = vector.load %arg2[%c0_14, %c0_15] : memref<256x1xi32, #tpu.memory_space<vmem>>, vector<256x1xi32>
    %20 = tpu.iota {dimensions = array<i32: 1>} : vector<256x384xi32>
    %21 = vector.broadcast %19 : vector<256x1xi32> to vector<256x384xi32>
    %22 = arith.cmpi eq, %21, %20 : vector<256x384xi32>
    %cst_16 = arith.constant 1.000000e+00 : f32
    %cst_17 = arith.constant 0.000000e+00 : f32
    %23 = vector.broadcast %cst_16 : f32 to vector<256x384xf32>
    %24 = vector.broadcast %cst_17 : f32 to vector<256x384xf32>
    %25 = arith.select %22, %23, %24 : vector<256x384xi1>, vector<256x384xf32>
    %cst_18 = arith.constant dense<0.000000e+00> : vector<256x32xf32>
    %26 = tpu.matmul %18, %9, %cst_18 {dimension_numbers = #tpu.dot_dimension_numbers<[1], [0], [0], [1], [0, 0, 1, 1], [], []>} : vector<256x128xf32>, vector<128x32xf32>, vector<256x32xf32> -> vector<256x32xf32>
    %cst_19 = arith.constant dense<0.000000e+00> : vector<256x32xf32>
    %27 = tpu.matmul %25, %11, %cst_19 {dimension_numbers = #tpu.dot_dimension_numbers<[1], [0], [0], [1], [0, 0, 1, 1], [], []>} : vector<256x384xf32>, vector<384x32xf32>, vector<256x32xf32> -> vector<256x32xf32>
    %c0_20 = arith.constant 0 : index
    %c0_21 = arith.constant 0 : index
    %28 = vector.load %arg9[%c0_20, %c0_21] : memref<6x16xf32, #tpu.memory_space<vmem>>, vector<1x16xf32>
    %c1 = arith.constant 1 : index
    %c0_22 = arith.constant 0 : index
    %29 = vector.load %arg9[%c1, %c0_22] : memref<6x16xf32, #tpu.memory_space<vmem>>, vector<1x16xf32>
    %c2 = arith.constant 2 : index
    %c0_23 = arith.constant 0 : index
    %30 = vector.load %arg9[%c2, %c0_23] : memref<6x16xf32, #tpu.memory_space<vmem>>, vector<1x16xf32>
    %c3 = arith.constant 3 : index
    %c0_24 = arith.constant 0 : index
    %31 = vector.load %arg9[%c3, %c0_24] : memref<6x16xf32, #tpu.memory_space<vmem>>, vector<1x16xf32>
    %c4 = arith.constant 4 : index
    %c0_25 = arith.constant 0 : index
    %32 = vector.load %arg9[%c4, %c0_25] : memref<6x16xf32, #tpu.memory_space<vmem>>, vector<1x16xf32>
    %c5 = arith.constant 5 : index
    %c0_26 = arith.constant 0 : index
    %33 = vector.load %arg9[%c5, %c0_26] : memref<6x16xf32, #tpu.memory_space<vmem>>, vector<1x16xf32>
    %c0_27 = arith.constant 0 : index
    %c0_28 = arith.constant 0 : index
    %34 = vector.load %arg7[%c0_27, %c0_28] : memref<32x16xf32, #tpu.memory_space<vmem>>, vector<32x16xf32>
    %cst_29 = arith.constant dense<0.000000e+00> : vector<256x16xf32>
    %35 = tpu.matmul %26, %34, %cst_29 {dimension_numbers = #tpu.dot_dimension_numbers<[1], [0], [0], [1], [0, 0, 1, 1], [], []>} : vector<256x32xf32>, vector<32x16xf32>, vector<256x16xf32> -> vector<256x16xf32>
    %c0_30 = arith.constant 0 : index
    %c0_31 = arith.constant 0 : index
    %36 = vector.load %arg8[%c0_30, %c0_31] : memref<32x16xf32, #tpu.memory_space<vmem>>, vector<32x16xf32>
    %cst_32 = arith.constant dense<0.000000e+00> : vector<256x16xf32>
    %37 = tpu.matmul %27, %36, %cst_32 {dimension_numbers = #tpu.dot_dimension_numbers<[1], [0], [0], [1], [0, 0, 1, 1], [], []>} : vector<256x32xf32>, vector<32x16xf32>, vector<256x16xf32> -> vector<256x16xf32>
    %38 = arith.addf %35, %37 : vector<256x16xf32>
    %39 = vector.broadcast %28 : vector<1x16xf32> to vector<256x16xf32>
    %40 = arith.addf %38, %39 : vector<256x16xf32>
    %cst_33 = arith.constant dense<0.000000e+00> : vector<256xf32>
    %41 = vector.multi_reduction <add>, %40, %cst_33 [1] : vector<256x16xf32> to vector<256xf32>
    %42 = vector.shape_cast %41 : vector<256xf32> to vector<256x1xf32>
    %cst_34 = arith.constant 1.600000e+01 : f32
    %43 = vector.broadcast %cst_34 : f32 to vector<256x1xf32>
    %44 = arith.divf %42, %43 : vector<256x1xf32>
    %45 = vector.broadcast %44 : vector<256x1xf32> to vector<256x16xf32>
    %46 = arith.subf %40, %45 : vector<256x16xf32>
    %47 = arith.mulf %46, %46 : vector<256x16xf32>
    %cst_35 = arith.constant dense<0.000000e+00> : vector<256xf32>
    %48 = vector.multi_reduction <add>, %47, %cst_35 [1] : vector<256x16xf32> to vector<256xf32>
    %49 = vector.shape_cast %48 : vector<256xf32> to vector<256x1xf32>
    %cst_36 = arith.constant 1.600000e+01 : f32
    %50 = vector.broadcast %cst_36 : f32 to vector<256x1xf32>
    %51 = arith.divf %49, %50 : vector<256x1xf32>
    %52 = vector.broadcast %44 : vector<256x1xf32> to vector<256x16xf32>
    %53 = arith.subf %40, %52 : vector<256x16xf32>
    %cst_37 = arith.constant 9.99999974E-6 : f32
    %54 = vector.broadcast %cst_37 : f32 to vector<256x1xf32>
    %55 = arith.addf %51, %54 : vector<256x1xf32>
    %56 = math.rsqrt %55 : vector<256x1xf32>
    %57 = vector.broadcast %56 : vector<256x1xf32> to vector<256x16xf32>
    %58 = arith.mulf %53, %57 : vector<256x16xf32>
    %59 = vector.broadcast %29 : vector<1x16xf32> to vector<256x16xf32>
    %60 = arith.mulf %58, %59 : vector<256x16xf32>
    %61 = vector.broadcast %30 : vector<1x16xf32> to vector<256x16xf32>
    %62 = arith.addf %60, %61 : vector<256x16xf32>
    %cst_38 = arith.constant 0.000000e+00 : f32
    %63 = vector.broadcast %cst_38 : f32 to vector<256x16xf32>
    %64 = arith.maximumf %62, %63 : vector<256x16xf32>
    %c0_39 = arith.constant 0 : index
    %c0_40 = arith.constant 0 : index
    %65 = vector.load %arg10[%c0_39, %c0_40] : memref<16x16xf32, #tpu.memory_space<vmem>>, vector<16x16xf32>
    %cst_41 = arith.constant dense<0.000000e+00> : vector<256x16xf32>
    %66 = tpu.matmul %64, %65, %cst_41 {dimension_numbers = #tpu.dot_dimension_numbers<[1], [0], [0], [1], [0, 0, 1, 1], [], []>} : vector<256x16xf32>, vector<16x16xf32>, vector<256x16xf32> -> vector<256x16xf32>
    %67 = vector.broadcast %31 : vector<1x16xf32> to vector<256x16xf32>
    %68 = arith.addf %66, %67 : vector<256x16xf32>
    %cst_42 = arith.constant dense<0.000000e+00> : vector<256xf32>
    %69 = vector.multi_reduction <add>, %68, %cst_42 [1] : vector<256x16xf32> to vector<256xf32>
    %70 = vector.shape_cast %69 : vector<256xf32> to vector<256x1xf32>
    %cst_43 = arith.constant 1.600000e+01 : f32
    %71 = vector.broadcast %cst_43 : f32 to vector<256x1xf32>
    %72 = arith.divf %70, %71 : vector<256x1xf32>
    %73 = vector.broadcast %72 : vector<256x1xf32> to vector<256x16xf32>
    %74 = arith.subf %68, %73 : vector<256x16xf32>
    %75 = arith.mulf %74, %74 : vector<256x16xf32>
    %cst_44 = arith.constant dense<0.000000e+00> : vector<256xf32>
    %76 = vector.multi_reduction <add>, %75, %cst_44 [1] : vector<256x16xf32> to vector<256xf32>
    %77 = vector.shape_cast %76 : vector<256xf32> to vector<256x1xf32>
    %cst_45 = arith.constant 1.600000e+01 : f32
    %78 = vector.broadcast %cst_45 : f32 to vector<256x1xf32>
    %79 = arith.divf %77, %78 : vector<256x1xf32>
    %80 = vector.broadcast %72 : vector<256x1xf32> to vector<256x16xf32>
    %81 = arith.subf %68, %80 : vector<256x16xf32>
    %cst_46 = arith.constant 9.99999974E-6 : f32
    %82 = vector.broadcast %cst_46 : f32 to vector<256x1xf32>
    %83 = arith.addf %79, %82 : vector<256x1xf32>
    %84 = math.rsqrt %83 : vector<256x1xf32>
    %85 = vector.broadcast %84 : vector<256x1xf32> to vector<256x16xf32>
    %86 = arith.mulf %81, %85 : vector<256x16xf32>
    %87 = vector.broadcast %32 : vector<1x16xf32> to vector<256x16xf32>
    %88 = arith.mulf %86, %87 : vector<256x16xf32>
    %89 = vector.broadcast %33 : vector<1x16xf32> to vector<256x16xf32>
    %90 = arith.addf %88, %89 : vector<256x16xf32>
    %cst_47 = arith.constant 0.000000e+00 : f32
    %91 = vector.broadcast %cst_47 : f32 to vector<256x16xf32>
    %92 = arith.maximumf %90, %91 : vector<256x16xf32>
    %c0_48 = arith.constant 0 : index
    %c0_49 = arith.constant 0 : index
    %93 = vector.load %arg11[%c0_48, %c0_49] : memref<16x128xf32, #tpu.memory_space<vmem>>, vector<16x128xf32>
    %cst_50 = arith.constant dense<0.000000e+00> : vector<256x128xf32>
    %94 = tpu.matmul %92, %93, %cst_50 {dimension_numbers = #tpu.dot_dimension_numbers<[1], [0], [0], [1], [0, 0, 1, 1], [], []>} : vector<256x16xf32>, vector<16x128xf32>, vector<256x128xf32> -> vector<256x128xf32>
    %c0_51 = arith.constant 0 : index
    %c0_52 = arith.constant 0 : index
    %95 = vector.load %arg12[%c0_51, %c0_52] : memref<1x128xf32, #tpu.memory_space<vmem>>, vector<1x128xf32>
    %96 = vector.broadcast %95 : vector<1x128xf32> to vector<256x128xf32>
    %97 = arith.addf %94, %96 : vector<256x128xf32>
    %c0_53 = arith.constant 0 : index
    %c0_54 = arith.constant 0 : index
    %98 = vector.load %arg13[%c0_53, %c0_54] : memref<256x128xf32, #tpu.memory_space<vmem>>, vector<256x128xf32>
    tpu.vector_store %arg13[%c0_53, %c0_54], %97 {strides = array<i32>} : memref<256x128xf32, #tpu.memory_space<vmem>>, vector<256x128xf32>,
    return
  }
  func.func @transform_0(%arg0: i32) -> (i32, i32) {
    %c0_i32 = arith.constant 0 : i32
    %c0_i32_0 = arith.constant 0 : i32
    %c0_i32_1 = arith.constant 0 : i32
    return %c0_i32, %c0_i32_0 : i32, i32
  }
  func.func @transform_1(%arg0: i32) -> (i32, i32) {
    %c0_i32 = arith.constant 0 : i32
    %c0_i32_0 = arith.constant 0 : i32
    %c0_i32_1 = arith.constant 0 : i32
    return %c0_i32, %c0_i32_0 : i32, i32
  }
  func.func @transform_2(%arg0: i32) -> (i32, i32) {
    %c0_i32 = arith.constant 0 : i32
    %c0_i32_0 = arith.constant 0 : i32
    %c0_i32_1 = arith.constant 0 : i32
    return %c0_i32, %c0_i32_0 : i32, i32
  }
  func.func @transform_3(%arg0: i32) -> (i32, i32) {
    %c0_i32 = arith.constant 0 : i32
    %c0_i32_0 = arith.constant 0 : i32
    %c0_i32_1 = arith.constant 0 : i32
    return %c0_i32, %c0_i32_0 : i32, i32
  }
  func.func @transform_4(%arg0: i32) -> (i32, i32) {
    %c0_i32 = arith.constant 0 : i32
    %c0_i32_0 = arith.constant 0 : i32
    %c0_i32_1 = arith.constant 0 : i32
    return %c0_i32, %c0_i32_0 : i32, i32
  }
  func.func @transform_5(%arg0: i32) -> (i32, i32) {
    %c0_i32 = arith.constant 0 : i32
    %c0_i32_0 = arith.constant 0 : i32
    %c0_i32_1 = arith.constant 0 : i32
    return %c0_i32, %c0_i32_0 : i32, i32
  }
  func.func @transform_6(%arg0: i32) -> (i32, i32) {
    %c0_i32 = arith.constant 0 : i32
    %c0_i32_0 = arith.constant 0 : i32
    %c0_i32_1 = arith.constant 0 : i32
    return %c0_i32, %c0_i32_0 : i32, i32
  }
  func.func @transform_7(%arg0: i32) -> (i32, i32) {
    %c0_i32 = arith.constant 0 : i32
    %c0_i32_0 = arith.constant 0 : i32
    %c0_i32_1 = arith.constant 0 : i32
    return %c0_i32, %c0_i32_0 : i32, i32
  }
  func.func @transform_8(%arg0: i32) -> (i32, i32) {
    %c0_i32 = arith.constant 0 : i32
    %c0_i32_0 = arith.constant 0 : i32
    %c0_i32_1 = arith.constant 0 : i32
    return %c0_i32, %c0_i32_0 : i32, i32
  }
  func.func @transform_9(%arg0: i32) -> (i32, i32) {
    %c0_i32 = arith.constant 0 : i32
    %c0_i32_0 = arith.constant 0 : i32
    %c0_i32_1 = arith.constant 0 : i32
    return %c0_i32, %c0_i32_0 : i32, i32
  }
  func.func @transform_10(%arg0: i32) -> (i32, i32) {
    %c0_i32 = arith.constant 0 : i32
    %c0_i32_0 = arith.constant 0 : i32
    %c0_i32_1 = arith.constant 0 : i32
    return %c0_i32, %c0_i32_0 : i32, i32
  }
  func.func @transform_11(%arg0: i32) -> (i32, i32) {
    %c0_i32 = arith.constant 0 : i32
    %c0_i32_0 = arith.constant 0 : i32
    %c0_i32_1 = arith.constant 0 : i32
    return %c0_i32, %c0_i32_0 : i32, i32
  }
  func.func @transform_12(%arg0: i32) -> (i32, i32) {
    %c0_i32 = arith.constant 0 : i32
    %c0_i32_0 = arith.constant 0 : i32
    %c0_i32_1 = arith.constant 0 : i32
    return %c0_i32, %c0_i32_0 : i32, i32
  }
}

</mosaic_0001>

<llo_original>
// kernel: hypermodel_forward.1
$region0: #{hypermodel_forward.1}
  #allocation0 [shape = 'u32[]', space=smem, size = 0x4, offset = 0x4, fixed_abs, tag = 'smem constant byte address 0x4 - core index']
  #allocation1 [shape = 'u32[144,128]{1,0:T(1,128)}', space=vmem, size = 0x12000, scoped, tag = 'internal scratch']
  %s0 = inlined_call_operand.vmem [shape: s32[256,1], index: 0, kind: input, shape index: {}]
  %s1 = inlined_call_operand.vmem [shape: s32[256,1], index: 1, kind: input, shape index: {}]
  %s2 = inlined_call_operand.vmem [shape: bf16[128,384], index: 2, kind: input, shape index: {}]
  %s3 = inlined_call_operand.vmem [shape: bf16[384,128], index: 3, kind: input, shape index: {}]
  %s4 = inlined_call_operand.vmem [shape: f32[128,32], index: 4, kind: input, shape index: {}]
  %s5 = inlined_call_operand.vmem [shape: f32[384,32], index: 5, kind: input, shape index: {}]
  %s6 = inlined_call_operand.vmem [shape: f32[32,16], index: 6, kind: input, shape index: {}]
  %s7 = inlined_call_operand.vmem [shape: f32[32,16], index: 7, kind: input, shape index: {}]
  %s8 = inlined_call_operand.vmem [shape: f32[6,16], index: 8, kind: input, shape index: {}]
  %s9 = inlined_call_operand.vmem [shape: f32[16,16], index: 9, kind: input, shape index: {}]
  %s10 = inlined_call_operand.vmem [shape: f32[16,128], index: 10, kind: input, shape index: {}]
  %s11 = inlined_call_operand.vmem [shape: f32[1,128], index: 11, kind: input, shape index: {}]
  %s12 = inlined_call_operand.vmem [shape: f32[256,128], index: 12, kind: output, shape index: {}]
  %s13 = sld [smem:[#allocation0]]
  $region58: #{hypermodel_forward.1} parent=0
    _
  %s15 = ssub.s32 1, %s13
  %s16 = scalar_select 0, %s15, %s13
  // Predicated region
  $region2: #{hypermodel_forward.1} parent=0 // pred_check
    _
  $region3: #{hypermodel_forward.1} parent=0 // pred_check_branch
    %18 = sbr.rel (0) target = $region5
  $region4: #{hypermodel_forward.1} parent=0 // pred_region
    _
  $region5: #{hypermodel_forward.1} parent=0 // pred_fallthru
    _
  // Predicated region
  $region6: #{hypermodel_forward.1} parent=0 // pred_check
    _
  $region7: #{hypermodel_forward.1} parent=0 // pred_check_branch
    %20 = sbr.rel (0) target = $region9
  $region8: #{hypermodel_forward.1} parent=0 // pred_region
    _
  $region9: #{hypermodel_forward.1} parent=0 // pred_fallthru
    _
  // Predicated region
  $region10: #{hypermodel_forward.1} parent=0 // pred_check
    _
  $region11: #{hypermodel_forward.1} parent=0 // pred_check_branch
    %22 = sbr.rel (0) target = $region13
  $region12: #{hypermodel_forward.1} parent=0 // pred_region
    _
  $region13: #{hypermodel_forward.1} parent=0 // pred_fallthru
    _
  // Predicated region
  $region14: #{hypermodel_forward.1} parent=0 // pred_check
    _
  $region15: #{hypermodel_forward.1} parent=0 // pred_check_branch
    %24 = sbr.rel (0) target = $region17
  $region16: #{hypermodel_forward.1} parent=0 // pred_region
    _
  $region17: #{hypermodel_forward.1} parent=0 // pred_fallthru
    _
  // Predicated region
  $region18: #{hypermodel_forward.1} parent=0 // pred_check
    _
  $region19: #{hypermodel_forward.1} parent=0 // pred_check_branch
    %26 = sbr.rel (0) target = $region21
  $region20: #{hypermodel_forward.1} parent=0 // pred_region
    _
  $region21: #{hypermodel_forward.1} parent=0 // pred_fallthru
    _
  // Predicated region
  $region22: #{hypermodel_forward.1} parent=0 // pred_check
    _
  $region23: #{hypermodel_forward.1} parent=0 // pred_check_branch
    %28 = sbr.rel (0) target = $region25
  $region24: #{hypermodel_forward.1} parent=0 // pred_region
    _
  $region25: #{hypermodel_forward.1} parent=0 // pred_fallthru
    _
  // Predicated region
  $region26: #{hypermodel_forward.1} parent=0 // pred_check
    _
  $region27: #{hypermodel_forward.1} parent=0 // pred_check_branch
    %30 = sbr.rel (0) target = $region29
  $region28: #{hypermodel_forward.1} parent=0 // pred_region
    _
  $region29: #{hypermodel_forward.1} parent=0 // pred_fallthru
    _
  // Predicated region
  $region30: #{hypermodel_forward.1} parent=0 // pred_check
    _
  $region31: #{hypermodel_forward.1} parent=0 // pred_check_branch
    %32 = sbr.rel (0) target = $region33
  $region32: #{hypermodel_forward.1} parent=0 // pred_region
    _
  $region33: #{hypermodel_forward.1} parent=0 // pred_fallthru
    _
  // Predicated region
  $region34: #{hypermodel_forward.1} parent=0 // pred_check
    _
  $region35: #{hypermodel_forward.1} parent=0 // pred_check_branch
    %34 = sbr.rel (0) target = $region37
  $region36: #{hypermodel_forward.1} parent=0 // pred_region
    _
  $region37: #{hypermodel_forward.1} parent=0 // pred_fallthru
    _
  // Predicated region
  $region38: #{hypermodel_forward.1} parent=0 // pred_check
    _
  $region39: #{hypermodel_forward.1} parent=0 // pred_check_branch
    %36 = sbr.rel (0) target = $region41
  $region40: #{hypermodel_forward.1} parent=0 // pred_region
    _
  $region41: #{hypermodel_forward.1} parent=0 // pred_fallthru
    _
  // Predicated region
  $region42: #{hypermodel_forward.1} parent=0 // pred_check
    _
  $region43: #{hypermodel_forward.1} parent=0 // pred_check_branch
    %38 = sbr.rel (0) target = $region45
  $region44: #{hypermodel_forward.1} parent=0 // pred_region
    _
  $region45: #{hypermodel_forward.1} parent=0 // pred_fallthru
    _
  // Predicated region
  $region46: #{hypermodel_forward.1} parent=0 // pred_check
    _
  $region47: #{hypermodel_forward.1} parent=0 // pred_check_branch
    %40 = sbr.rel (0) target = $region49
  $region48: #{hypermodel_forward.1} parent=0 // pred_region
    _
  $region49: #{hypermodel_forward.1} parent=0 // pred_fallthru
    _
  %v42 = vld [vmem:[%s4] sm:$0xff]
  %v43 = vld [vmem:[%s4 + $0x8] sm:$0xff]
  %v44 = vld [vmem:[%s4 + $0x10] sm:$0xff]
  %v45 = vld [vmem:[%s4 + $0x18] sm:$0xff]
  %v46 = vld [vmem:[%s4 + $0x20] sm:$0xff]
  %v47 = vld [vmem:[%s4 + $0x28] sm:$0xff]
  %v48 = vld [vmem:[%s4 + $0x30] sm:$0xff]
  %v49 = vld [vmem:[%s4 + $0x38] sm:$0xff]
  %v50 = vld [vmem:[%s4 + $0x40] sm:$0xff]
  %v51 = vld [vmem:[%s4 + $0x48] sm:$0xff]
  %v52 = vld [vmem:[%s4 + $0x50] sm:$0xff]
  %v53 = vld [vmem:[%s4 + $0x58] sm:$0xff]
  %v54 = vld [vmem:[%s4 + $0x60] sm:$0xff]
  %v55 = vld [vmem:[%s4 + $0x68] sm:$0xff]
  %v56 = vld [vmem:[%s4 + $0x70] sm:$0xff]
  %v57 = vld [vmem:[%s4 + $0x78] sm:$0xff]
  %v58 = vld [vmem:[%s5] sm:$0xff]
  %v59 = vld [vmem:[%s5 + $0x8] sm:$0xff]
  %v60 = vld [vmem:[%s5 + $0x10] sm:$0xff]
  %v61 = vld [vmem:[%s5 + $0x18] sm:$0xff]
  %v62 = vld [vmem:[%s5 + $0x20] sm:$0xff]
  %v63 = vld [vmem:[%s5 + $0x28] sm:$0xff]
  %v64 = vld [vmem:[%s5 + $0x30] sm:$0xff]
  %v65 = vld [vmem:[%s5 + $0x38] sm:$0xff]
  %v66 = vld [vmem:[%s5 + $0x40] sm:$0xff]
  %v67 = vld [vmem:[%s5 + $0x48] sm:$0xff]
  %v68 = vld [vmem:[%s5 + $0x50] sm:$0xff]
  %v69 = vld [vmem:[%s5 + $0x58] sm:$0xff]
  %v70 = vld [vmem:[%s5 + $0x60] sm:$0xff]
  %v71 = vld [vmem:[%s5 + $0x68] sm:$0xff]
  %v72 = vld [vmem:[%s5 + $0x70] sm:$0xff]
  %v73 = vld [vmem:[%s5 + $0x78] sm:$0xff]
  %v74 = vld [vmem:[%s5 + $0x80] sm:$0xff]
  %v75 = vld [vmem:[%s5 + $0x88] sm:$0xff]
  %v76 = vld [vmem:[%s5 + $0x90] sm:$0xff]
  %v77 = vld [vmem:[%s5 + $0x98] sm:$0xff]
  %v78 = vld [vmem:[%s5 + $0xa0] sm:$0xff]
  %v79 = vld [vmem:[%s5 + $0xa8] sm:$0xff]
  %v80 = vld [vmem:[%s5 + $0xb0] sm:$0xff]
  %v81 = vld [vmem:[%s5 + $0xb8] sm:$0xff]
  %v82 = vld [vmem:[%s5 + $0xc0] sm:$0xff]
  %v83 = vld [vmem:[%s5 + $0xc8] sm:$0xff]
  %v84 = vld [vmem:[%s5 + $0xd0] sm:$0xff]
  %v85 = vld [vmem:[%s5 + $0xd8] sm:$0xff]
  %v86 = vld [vmem:[%s5 + $0xe0] sm:$0xff]
  %v87 = vld [vmem:[%s5 + $0xe8] sm:$0xff]
  %v88 = vld [vmem:[%s5 + $0xf0] sm:$0xff]
  %v89 = vld [vmem:[%s5 + $0xf8] sm:$0xff]
  %v90 = vld [vmem:[%s5 + $0x100] sm:$0xff]
  %v91 = vld [vmem:[%s5 + $0x108] sm:$0xff]
  %v92 = vld [vmem:[%s5 + $0x110] sm:$0xff]
  %v93 = vld [vmem:[%s5 + $0x118] sm:$0xff]
  %v94 = vld [vmem:[%s5 + $0x120] sm:$0xff]
  %v95 = vld [vmem:[%s5 + $0x128] sm:$0xff]
  %v96 = vld [vmem:[%s5 + $0x130] sm:$0xff]
  %v97 = vld [vmem:[%s5 + $0x138] sm:$0xff]
  %v98 = vld [vmem:[%s5 + $0x140] sm:$0xff]
  %v99 = vld [vmem:[%s5 + $0x148] sm:$0xff]
  %v100 = vld [vmem:[%s5 + $0x150] sm:$0xff]
  %v101 = vld [vmem:[%s5 + $0x158] sm:$0xff]
  %v102 = vld [vmem:[%s5 + $0x160] sm:$0xff]
  %v103 = vld [vmem:[%s5 + $0x168] sm:$0xff]
  %v104 = vld [vmem:[%s5 + $0x170] sm:$0xff]
  %v105 = vld [vmem:[%s5 + $0x178] sm:$0xff]
  %v106 = vld [vmem:[%s2] sm:$0xff]
  %v107 = vld [vmem:[%s2 + $0x8] sm:$0xf]
  %v108 = vld [vmem:[%s2 + $0xc] sm:$0xff]
  %v109 = vld [vmem:[%s2 + $0x14] sm:$0xf]
  %v110 = vld [vmem:[%s2 + $0x18] sm:$0xff]
  %v111 = vld [vmem:[%s2 + $0x20] sm:$0xf]
  %v112 = vld [vmem:[%s2 + $0x24] sm:$0xff]
  %v113 = vld [vmem:[%s2 + $0x2c] sm:$0xf]
  %v114 = vld [vmem:[%s2 + $0x30] sm:$0xff]
  %v115 = vld [vmem:[%s2 + $0x38] sm:$0xf]
  %v116 = vld [vmem:[%s2 + $0x3c] sm:$0xff]
  %v117 = vld [vmem:[%s2 + $0x44] sm:$0xf]
  %v118 = vld [vmem:[%s2 + $0x48] sm:$0xff]
  %v119 = vld [vmem:[%s2 + $0x50] sm:$0xf]
  %v120 = vld [vmem:[%s2 + $0x54] sm:$0xff]
  %v121 = vld [vmem:[%s2 + $0x5c] sm:$0xf]
  %v122 = vld [vmem:[%s2 + $0x60] sm:$0xff]
  %v123 = vld [vmem:[%s2 + $0x68] sm:$0xf]
  %v124 = vld [vmem:[%s2 + $0x6c] sm:$0xff]
  %v125 = vld [vmem:[%s2 + $0x74] sm:$0xf]
  %v126 = vld [vmem:[%s2 + $0x78] sm:$0xff]
  %v127 = vld [vmem:[%s2 + $0x80] sm:$0xf]
  %v128 = vld [vmem:[%s2 + $0x84] sm:$0xff]
  %v129 = vld [vmem:[%s2 + $0x8c] sm:$0xf]
  %v130 = vld [vmem:[%s2 + $0x90] sm:$0xff]
  %v131 = vld [vmem:[%s2 + $0x98] sm:$0xf]
  %v132 = vld [vmem:[%s2 + $0x9c] sm:$0xff]
  %v133 = vld [vmem:[%s2 + $0xa4] sm:$0xf]
  %v134 = vld [vmem:[%s2 + $0xa8] sm:$0xff]
  %v135 = vld [vmem:[%s2 + $0xb0] sm:$0xf]
  %v136 = vld [vmem:[%s2 + $0xb4] sm:$0xff]
  %v137 = vld [vmem:[%s2 + $0xbc] sm:$0xf]
  %v138 = vld [vmem:[%s3] sm:$0xf]
  %v139 = vld [vmem:[%s3 + $0x4] sm:$0xf]
  %v140 = vld [vmem:[%s3 + $0x8] sm:$0xf]
  %v141 = vld [vmem:[%s3 + $0xc] sm:$0xf]
  %v142 = vld [vmem:[%s3 + $0x10] sm:$0xf]
  %v143 = vld [vmem:[%s3 + $0x14] sm:$0xf]
  %v144 = vld [vmem:[%s3 + $0x18] sm:$0xf]
  %v145 = vld [vmem:[%s3 + $0x1c] sm:$0xf]
  %v146 = vld [vmem:[%s3 + $0x20] sm:$0xf]
  %v147 = vld [vmem:[%s3 + $0x24] sm:$0xf]
  %v148 = vld [vmem:[%s3 + $0x28] sm:$0xf]
  %v149 = vld [vmem:[%s3 + $0x2c] sm:$0xf]
  %v150 = vld [vmem:[%s3 + $0x30] sm:$0xf]
  %v151 = vld [vmem:[%s3 + $0x34] sm:$0xf]
  %v152 = vld [vmem:[%s3 + $0x38] sm:$0xf]
  %v153 = vld [vmem:[%s3 + $0x3c] sm:$0xf]
  %v154 = vld [vmem:[%s3 + $0x40] sm:$0xf]
  %v155 = vld [vmem:[%s3 + $0x44] sm:$0xf]
  %v156 = vld [vmem:[%s3 + $0x48] sm:$0xf]
  %v157 = vld [vmem:[%s3 + $0x4c] sm:$0xf]
  %v158 = vld [vmem:[%s3 + $0x50] sm:$0xf]
  %v159 = vld [vmem:[%s3 + $0x54] sm:$0xf]
  %v160 = vld [vmem:[%s3 + $0x58] sm:$0xf]
  %v161 = vld [vmem:[%s3 + $0x5c] sm:$0xf]
  %v162 = vld [vmem:[%s3 + $0x60] sm:$0xf]
  %v163 = vld [vmem:[%s3 + $0x64] sm:$0xf]
  %v164 = vld [vmem:[%s3 + $0x68] sm:$0xf]
  %v165 = vld [vmem:[%s3 + $0x6c] sm:$0xf]
  %v166 = vld [vmem:[%s3 + $0x70] sm:$0xf]
  %v167 = vld [vmem:[%s3 + $0x74] sm:$0xf]
  %v168 = vld [vmem:[%s3 + $0x78] sm:$0xf]
  %v169 = vld [vmem:[%s3 + $0x7c] sm:$0xf]
  %v170 = vld [vmem:[%s3 + $0x80] sm:$0xf]
  %v171 = vld [vmem:[%s3 + $0x84] sm:$0xf]
  %v172 = vld [vmem:[%s3 + $0x88] sm:$0xf]
  %v173 = vld [vmem:[%s3 + $0x8c] sm:$0xf]
  %v174 = vld [vmem:[%s3 + $0x90] sm:$0xf]
  %v175 = vld [vmem:[%s3 + $0x94] sm:$0xf]
  %v176 = vld [vmem:[%s3 + $0x98] sm:$0xf]
  %v177 = vld [vmem:[%s3 + $0x9c] sm:$0xf]
  %v178 = vld [vmem:[%s3 + $0xa0] sm:$0xf]
  %v179 = vld [vmem:[%s3 + $0xa4] sm:$0xf]
  %v180 = vld [vmem:[%s3 + $0xa8] sm:$0xf]
  %v181 = vld [vmem:[%s3 + $0xac] sm:$0xf]
  %v182 = vld [vmem:[%s3 + $0xb0] sm:$0xf]
  %v183 = vld [vmem:[%s3 + $0xb4] sm:$0xf]
  %v184 = vld [vmem:[%s3 + $0xb8] sm:$0xf]
  %v185 = vld [vmem:[%s3 + $0xbc] sm:$0xf]
  %v186 = vpack.c.bf16 %v59, %v58
  %v187 = vpack.c.bf16 %v61, %v60
  %v188 = vpack.c.bf16 %v63, %v62
  %v189 = vpack.c.bf16 %v65, %v64
  %v190 = vpack.c.bf16 %v67, %v66
  %v191 = vpack.c.bf16 %v69, %v68
  %v192 = vpack.c.bf16 %v71, %v70
  %v193 = vpack.c.bf16 %v73, %v72
  %v194 = vpack.c.bf16 %v75, %v74
  %v195 = vpack.c.bf16 %v77, %v76
  %v196 = vpack.c.bf16 %v79, %v78
  %v197 = vpack.c.bf16 %v81, %v80
  %v198 = vpack.c.bf16 %v83, %v82
  %v199 = vpack.c.bf16 %v85, %v84
  %v200 = vpack.c.bf16 %v87, %v86
  %v201 = vpack.c.bf16 %v89, %v88
  %v202 = vpack.c.bf16 %v91, %v90
  %v203 = vpack.c.bf16 %v93, %v92
  %v204 = vpack.c.bf16 %v95, %v94
  %v205 = vpack.c.bf16 %v97, %v96
  %v206 = vpack.c.bf16 %v99, %v98
  %v207 = vpack.c.bf16 %v101, %v100
  %v208 = vpack.c.bf16 %v103, %v102
  %v209 = vpack.c.bf16 %v105, %v104
  %v242 = vunpack.c.l.b16 %v106
  %v243 = vunpack.c.h.b16 %v106
  %v244 = vunpack.c.l.b16 %v107
  %v245 = vunpack.c.l.b16 %v108
  %v246 = vunpack.c.h.b16 %v108
  %v247 = vunpack.c.l.b16 %v109
  %v248 = vunpack.c.l.b16 %v110
  %v249 = vunpack.c.h.b16 %v110
  %v250 = vunpack.c.l.b16 %v111
  %v251 = vunpack.c.l.b16 %v112
  %v252 = vunpack.c.h.b16 %v112
  %v253 = vunpack.c.l.b16 %v113
  %v254 = vunpack.c.l.b16 %v114
  %v255 = vunpack.c.h.b16 %v114
  %v256 = vunpack.c.l.b16 %v115
  %v257 = vunpack.c.l.b16 %v116
  %v258 = vunpack.c.h.b16 %v116
  %v259 = vunpack.c.l.b16 %v117
  %v260 = vunpack.c.l.b16 %v118
  %v261 = vunpack.c.h.b16 %v118
  %v262 = vunpack.c.l.b16 %v119
  %v263 = vunpack.c.l.b16 %v120
  %v264 = vunpack.c.h.b16 %v120
  %v265 = vunpack.c.l.b16 %v121
  %v266 = vunpack.c.l.b16 %v122
  %v267 = vunpack.c.h.b16 %v122
  %v268 = vunpack.c.l.b16 %v123
  %v269 = vunpack.c.l.b16 %v124
  %v270 = vunpack.c.h.b16 %v124
  %v271 = vunpack.c.l.b16 %v125
  %v272 = vunpack.c.l.b16 %v126
  %v273 = vunpack.c.h.b16 %v126
  %v274 = vunpack.c.l.b16 %v127
  %v275 = vunpack.c.l.b16 %v128
  %v276 = vunpack.c.h.b16 %v128
  %v277 = vunpack.c.l.b16 %v129
  %v278 = vunpack.c.l.b16 %v130
  %v279 = vunpack.c.h.b16 %v130
  %v280 = vunpack.c.l.b16 %v131
  %v281 = vunpack.c.l.b16 %v132
  %v282 = vunpack.c.h.b16 %v132
  %v283 = vunpack.c.l.b16 %v133
  %v284 = vunpack.c.l.b16 %v134
  %v285 = vunpack.c.h.b16 %v134
  %v286 = vunpack.c.l.b16 %v135
  %v287 = vunpack.c.l.b16 %v136
  %v288 = vunpack.c.h.b16 %v136
  %v289 = vunpack.c.l.b16 %v137
  %v290 = vpack.c.b16 %v245, %v242
  %v291 = vpack.c.b16 %v246, %v243
  %v292 = vpack.c.b16 %v247, %v244
  %v293 = vpack.c.b16 %v251, %v248
  %v294 = vpack.c.b16 %v252, %v249
  %v295 = vpack.c.b16 %v253, %v250
  %v296 = vpack.c.b16 %v257, %v254
  %v297 = vpack.c.b16 %v258, %v255
  %v298 = vpack.c.b16 %v259, %v256
  %v299 = vpack.c.b16 %v263, %v260
  %v300 = vpack.c.b16 %v264, %v261
  %v301 = vpack.c.b16 %v265, %v262
  %v302 = vpack.c.b16 %v269, %v266
  %v303 = vpack.c.b16 %v270, %v267
  %v304 = vpack.c.b16 %v271, %v268
  %v305 = vpack.c.b16 %v275, %v272
  %v306 = vpack.c.b16 %v276, %v273
  %v307 = vpack.c.b16 %v277, %v274
  %v308 = vpack.c.b16 %v281, %v278
  %v309 = vpack.c.b16 %v282, %v279
  %v310 = vpack.c.b16 %v283, %v280
  %v311 = vpack.c.b16 %v287, %v284
  %v312 = vpack.c.b16 %v288, %v285
  %v313 = vpack.c.b16 %v289, %v286
  %338 = vmatprep.subr.bf16.mxu0 0
  %339 = vmatpush1.bf16.msra.mxu0 %v193
  %340 = vmatprep.subr.bf16.mxu0 0
  %341 = vmatpush1.bf16.msra.mxu0 %v192
  %342 = vmatprep.subr.bf16.mxu0 0
  %343 = vmatpush1.bf16.msra.mxu0 %v191
  %344 = vmatprep.subr.bf16.mxu0 0
  %345 = vmatpush1.bf16.msra.mxu0 %v190
  %346 = vmatprep.subr.bf16.mxu0 0
  %347 = vmatpush1.bf16.msra.mxu0 %v189
  %348 = vmatprep.subr.bf16.mxu0 0
  %349 = vmatpush1.bf16.msra.mxu0 %v188
  %350 = vmatprep.subr.bf16.mxu0 0
  %351 = vmatpush1.bf16.msra.mxu0 %v187
  %352 = vmatprep.subr.bf16.mxu0 0
  %353 = vmatpush1.bf16.msra.mxu0 %v186
  %354 = vmatprep.subr.bf16.mxu0 0
  %355 = vmatpush2.bf16.msra.mxu0 %v201
  %356 = vmatprep.subr.bf16.mxu0 0
  %357 = vmatpush2.bf16.msra.mxu0 %v200
  %358 = vmatprep.subr.bf16.mxu0 0
  %359 = vmatpush2.bf16.msra.mxu0 %v199
  %360 = vmatprep.subr.bf16.mxu0 0
  %361 = vmatpush2.bf16.msra.mxu0 %v198
  %362 = vmatprep.subr.bf16.mxu0 0
  %363 = vmatpush2.bf16.msra.mxu0 %v197
  %364 = vmatprep.subr.bf16.mxu0 0
  %365 = vmatpush2.bf16.msra.mxu0 %v196
  %366 = vmatprep.subr.bf16.mxu0 0
  %367 = vmatpush2.bf16.msra.mxu0 %v195
  %368 = vmatprep.subr.bf16.mxu0 0
  %369 = vmatpush2.bf16.msra.mxu0 %v194
  %370 = vmatprep.mubr.bf16.mxu0 %v291
  %371 = vmatmul.mubr.bf16.gmra.mxu0 %v290
  %v372 = vpop.f32.mrf.mxu0
  %v373 = vadd.f32 0.0, %v372
  %v374 = vpop.f32.mrf.mxu0
  %v375 = vpop.f32.mrf.mxu0
  %v376 = vadd.f32 0.0, %v375
  %v377 = vpop.f32.mrf.mxu0
  %378 = vmatprep.mubr.bf16.mxu0 %v294
  %379 = vmatmul.mubr.bf16.gmra.mxu0 %v293
  %v380 = vpop.f32.mrf.mxu0
  %v381 = vadd.f32 0.0, %v380
  %v382 = vpop.f32.mrf.mxu0
  %v383 = vpop.f32.mrf.mxu0
  %v384 = vadd.f32 0.0, %v383
  %v385 = vpop.f32.mrf.mxu0
  %386 = vmatprep.mubr.bf16.mxu0 %v297
  %387 = vmatmul.mubr.bf16.gmra.mxu0 %v296
  %v388 = vpop.f32.mrf.mxu0
  %v389 = vadd.f32 0.0, %v388
  %v390 = vpop.f32.mrf.mxu0
  %v391 = vpop.f32.mrf.mxu0
  %v392 = vadd.f32 0.0, %v391
  %v393 = vpop.f32.mrf.mxu0
  %394 = vmatprep.mubr.bf16.mxu0 %v300
  %395 = vmatmul.mubr.bf16.gmra.mxu0 %v299
  %v396 = vpop.f32.mrf.mxu0
  %v397 = vadd.f32 0.0, %v396
  %v398 = vpop.f32.mrf.mxu0
  %v399 = vpop.f32.mrf.mxu0
  %v400 = vadd.f32 0.0, %v399
  %v401 = vpop.f32.mrf.mxu0
  %402 = vmatprep.mubr.bf16.mxu0 %v303
  %403 = vmatmul.mubr.bf16.gmra.mxu0 %v302
  %v404 = vpop.f32.mrf.mxu0
  %v405 = vadd.f32 0.0, %v404
  %v406 = vpop.f32.mrf.mxu0
  %v407 = vpop.f32.mrf.mxu0
  %v408 = vadd.f32 0.0, %v407
  %v409 = vpop.f32.mrf.mxu0
  %410 = vmatprep.mubr.bf16.mxu0 %v306
  %411 = vmatmul.mubr.bf16.gmra.mxu0 %v305
  %v412 = vpop.f32.mrf.mxu0
  %v413 = vadd.f32 0.0, %v412
  %v414 = vpop.f32.mrf.mxu0
  %v415 = vpop.f32.mrf.mxu0
  %v416 = vadd.f32 0.0, %v415
  %v417 = vpop.f32.mrf.mxu0
  %418 = vmatprep.mubr.bf16.mxu0 %v309
  %419 = vmatmul.mubr.bf16.gmra.mxu0 %v308
  %v420 = vpop.f32.mrf.mxu0
  %v421 = vadd.f32 0.0, %v420
  %v422 = vpop.f32.mrf.mxu0
  %v423 = vpop.f32.mrf.mxu0
  %v424 = vadd.f32 0.0, %v423
  %v425 = vpop.f32.mrf.mxu0
  %426 = vmatprep.mubr.bf16.mxu0 %v312
  %427 = vmatmul.mubr.bf16.gmra.mxu0 %v311
  %v428 = vpop.f32.mrf.mxu0
  %v429 = vadd.f32 0.0, %v428
  %v430 = vpop.f32.mrf.mxu0
  %v431 = vpop.f32.mrf.mxu0
  %v432 = vadd.f32 0.0, %v431
  %v433 = vpop.f32.mrf.mxu0
  %434 = vdwg.mxu0
  %435 = vmatprep.subr.bf16.mxu0 0
  %436 = vmatpush1.bf16.msra.mxu0 %v209
  %437 = vmatprep.subr.bf16.mxu0 0
  %438 = vmatpush1.bf16.msra.mxu0 %v208
  %439 = vmatprep.subr.bf16.mxu0 0
  %440 = vmatpush1.bf16.msra.mxu0 %v207
  %441 = vmatprep.subr.bf16.mxu0 0
  %442 = vmatpush1.bf16.msra.mxu0 %v206
  %443 = vmatprep.subr.bf16.mxu0 0
  %444 = vmatpush1.bf16.msra.mxu0 %v205
  %445 = vmatprep.subr.bf16.mxu0 0
  %446 = vmatpush1.bf16.msra.mxu0 %v204
  %447 = vmatprep.subr.bf16.mxu0 0
  %448 = vmatpush1.bf16.msra.mxu0 %v203
  %449 = vmatprep.subr.bf16.mxu0 0
  %450 = vmatpush1.bf16.msra.mxu0 %v202
  %451 = vmatprep.subr.bf16.mxu0 0
  %452 = vmatpush2.bf16.msra.mxu0 0
  %453 = vmatprep.subr.bf16.mxu0 0
  %454 = vmatpush2.bf16.msra.mxu0 0
  %455 = vmatprep.subr.bf16.mxu0 0
  %456 = vmatpush2.bf16.msra.mxu0 0
  %457 = vmatprep.subr.bf16.mxu0 0
  %458 = vmatpush2.bf16.msra.mxu0 0
  %459 = vmatprep.subr.bf16.mxu0 0
  %460 = vmatpush2.bf16.msra.mxu0 0
  %461 = vmatprep.subr.bf16.mxu0 0
  %462 = vmatpush2.bf16.msra.mxu0 0
  %463 = vmatprep.subr.bf16.mxu0 0
  %464 = vmatpush2.bf16.msra.mxu0 0
  %465 = vmatprep.subr.bf16.mxu0 0
  %466 = vmatpush2.bf16.msra.mxu0 0
  %467 = vmatprep.mubr.bf16.mxu0 0
  %468 = vmatmul.mubr.bf16.gmra.mxu0 %v292
  %v469 = vpop.f32.mrf.mxu0
  %v470 = vadd.f32 %v373, %v469
  %v471 = vpop.f32.mrf.mxu0
  %v472 = vpop.f32.mrf.mxu0
  %v473 = vadd.f32 %v376, %v472
  %v474 = vpop.f32.mrf.mxu0
  %475 = vmatprep.mubr.bf16.mxu0 0
  %476 = vmatmul.mubr.bf16.gmra.mxu0 %v295
  %v477 = vpop.f32.mrf.mxu0
  %v478 = vadd.f32 %v381, %v477
  %v479 = vpop.f32.mrf.mxu0
  %v480 = vpop.f32.mrf.mxu0
  %v481 = vadd.f32 %v384, %v480
  %v482 = vpop.f32.mrf.mxu0
  %483 = vmatprep.mubr.bf16.mxu0 0
  %484 = vmatmul.mubr.bf16.gmra.mxu0 %v298
  %v485 = vpop.f32.mrf.mxu0
  %v486 = vadd.f32 %v389, %v485
  %v487 = vpop.f32.mrf.mxu0
  %v488 = vpop.f32.mrf.mxu0
  %v489 = vadd.f32 %v392, %v488
  %v490 = vpop.f32.mrf.mxu0
  %491 = vmatprep.mubr.bf16.mxu0 0
  %492 = vmatmul.mubr.bf16.gmra.mxu0 %v301
  %v493 = vpop.f32.mrf.mxu0
  %v494 = vadd.f32 %v397, %v493
  %v495 = vpop.f32.mrf.mxu0
  %v496 = vpop.f32.mrf.mxu0
  %v497 = vadd.f32 %v400, %v496
  %v498 = vpop.f32.mrf.mxu0
  %499 = vmatprep.mubr.bf16.mxu0 0
  %500 = vmatmul.mubr.bf16.gmra.mxu0 %v304
  %v501 = vpop.f32.mrf.mxu0
  %v502 = vadd.f32 %v405, %v501
  %v503 = vpop.f32.mrf.mxu0
  %v504 = vpop.f32.mrf.mxu0
  %v505 = vadd.f32 %v408, %v504
  %v506 = vpop.f32.mrf.mxu0
  %507 = vmatprep.mubr.bf16.mxu0 0
  %508 = vmatmul.mubr.bf16.gmra.mxu0 %v307
  %v509 = vpop.f32.mrf.mxu0
  %v510 = vadd.f32 %v413, %v509
  %v511 = vpop.f32.mrf.mxu0
  %v512 = vpop.f32.mrf.mxu0
  %v513 = vadd.f32 %v416, %v512
  %v514 = vpop.f32.mrf.mxu0
  %515 = vmatprep.mubr.bf16.mxu0 0
  %516 = vmatmul.mubr.bf16.gmra.mxu0 %v310
  %v517 = vpop.f32.mrf.mxu0
  %v518 = vadd.f32 %v421, %v517
  %v519 = vpop.f32.mrf.mxu0
  %v520 = vpop.f32.mrf.mxu0
  %v521 = vadd.f32 %v424, %v520
  %v522 = vpop.f32.mrf.mxu0
  %523 = vmatprep.mubr.bf16.mxu0 0
  %524 = vmatmul.mubr.bf16.gmra.mxu0 %v313
  %v525 = vpop.f32.mrf.mxu0
  %v526 = vadd.f32 %v429, %v525
  %v527 = vpop.f32.mrf.mxu0
  %v528 = vpop.f32.mrf.mxu0
  %v529 = vadd.f32 %v432, %v528
  %v530 = vpop.f32.mrf.mxu0
  %531 = vdwg.mxu0
  %v532 = vpack.c.bf16 %v43, %v42
  %v533 = vpack.c.bf16 %v45, %v44
  %v534 = vpack.c.bf16 %v47, %v46
  %v535 = vpack.c.bf16 %v49, %v48
  %v536 = vpack.c.bf16 %v51, %v50
  %v537 = vpack.c.bf16 %v53, %v52
  %v538 = vpack.c.bf16 %v55, %v54
  %v539 = vpack.c.bf16 %v57, %v56
  %v588 = vunpack.c.l.b16 %v138
  %v589 = vunpack.c.l.b16 %v139
  %v590 = vunpack.c.l.b16 %v140
  %v591 = vunpack.c.l.b16 %v141
  %v592 = vunpack.c.l.b16 %v142
  %v593 = vunpack.c.l.b16 %v143
  %v594 = vunpack.c.l.b16 %v144
  %v595 = vunpack.c.l.b16 %v145
  %v596 = vunpack.c.l.b16 %v146
  %v597 = vunpack.c.l.b16 %v147
  %v598 = vunpack.c.l.b16 %v148
  %v599 = vunpack.c.l.b16 %v149
  %v600 = vunpack.c.l.b16 %v150
  %v601 = vunpack.c.l.b16 %v151
  %v602 = vunpack.c.l.b16 %v152
  %v603 = vunpack.c.l.b16 %v153
  %v604 = vunpack.c.l.b16 %v154
  %v605 = vunpack.c.l.b16 %v155
  %v606 = vunpack.c.l.b16 %v156
  %v607 = vunpack.c.l.b16 %v157
  %v608 = vunpack.c.l.b16 %v158
  %v609 = vunpack.c.l.b16 %v159
  %v610 = vunpack.c.l.b16 %v160
  %v611 = vunpack.c.l.b16 %v161
  %v612 = vunpack.c.l.b16 %v162
  %v613 = vunpack.c.l.b16 %v163
  %v614 = vunpack.c.l.b16 %v164
  %v615 = vunpack.c.l.b16 %v165
  %v616 = vunpack.c.l.b16 %v166
  %v617 = vunpack.c.l.b16 %v167
  %v618 = vunpack.c.l.b16 %v168
  %v619 = vunpack.c.l.b16 %v169
  %v620 = vunpack.c.l.b16 %v170
  %v621 = vunpack.c.l.b16 %v171
  %v622 = vunpack.c.l.b16 %v172
  %v623 = vunpack.c.l.b16 %v173
  %v624 = vunpack.c.l.b16 %v174
  %v625 = vunpack.c.l.b16 %v175
  %v626 = vunpack.c.l.b16 %v176
  %v627 = vunpack.c.l.b16 %v177
  %v628 = vunpack.c.l.b16 %v178
  %v629 = vunpack.c.l.b16 %v179
  %v630 = vunpack.c.l.b16 %v180
  %v631 = vunpack.c.l.b16 %v181
  %v632 = vunpack.c.l.b16 %v182
  %v633 = vunpack.c.l.b16 %v183
  %v634 = vunpack.c.l.b16 %v184
  %v635 = vunpack.c.l.b16 %v185
  %v636 = vpack.c.b16 %v589, %v588
  %v637 = vpack.c.b16 %v591, %v590
  %v638 = vpack.c.b16 %v593, %v592
  %v639 = vpack.c.b16 %v595, %v594
  %v640 = vpack.c.b16 %v597, %v596
  %v641 = vpack.c.b16 %v599, %v598
  %v642 = vpack.c.b16 %v601, %v600
  %v643 = vpack.c.b16 %v603, %v602
  %v644 = vpack.c.b16 %v605, %v604
  %v645 = vpack.c.b16 %v607, %v606
  %v646 = vpack.c.b16 %v609, %v608
  %v647 = vpack.c.b16 %v611, %v610
  %v648 = vpack.c.b16 %v613, %v612
  %v649 = vpack.c.b16 %v615, %v614
  %v650 = vpack.c.b16 %v617, %v616
  %v651 = vpack.c.b16 %v619, %v618
  %v652 = vpack.c.b16 %v621, %v620
  %v653 = vpack.c.b16 %v623, %v622
  %v654 = vpack.c.b16 %v625, %v624
  %v655 = vpack.c.b16 %v627, %v626
  %v656 = vpack.c.b16 %v629, %v628
  %v657 = vpack.c.b16 %v631, %v630
  %v658 = vpack.c.b16 %v633, %v632
  %v659 = vpack.c.b16 %v635, %v634
  %684 = vmatprep.subr.bf16.mxu0 0
  %685 = vmatpush1.bf16.msra.mxu0 %v539
  %686 = vmatprep.subr.bf16.mxu0 0
  %687 = vmatpush1.bf16.msra.mxu0 %v538
  %688 = vmatprep.subr.bf16.mxu0 0
  %689 = vmatpush1.bf16.msra.mxu0 %v537
  %690 = vmatprep.subr.bf16.mxu0 0
  %691 = vmatpush1.bf16.msra.mxu0 %v536
  %692 = vmatprep.subr.bf16.mxu0 0
  %693 = vmatpush1.bf16.msra.mxu0 %v535
  %694 = vmatprep.subr.bf16.mxu0 0
  %695 = vmatpush1.bf16.msra.mxu0 %v534
  %696 = vmatprep.subr.bf16.mxu0 0
  %697 = vmatpush1.bf16.msra.mxu0 %v533
  %698 = vmatprep.subr.bf16.mxu0 0
  %699 = vmatpush1.bf16.msra.mxu0 %v532
  %700 = vmatprep.subr.bf16.mxu0 0
  %701 = vmatpush2.bf16.msra.mxu0 0
  %702 = vmatprep.subr.bf16.mxu0 0
  %703 = vmatpush2.bf16.msra.mxu0 0
  %704 = vmatprep.subr.bf16.mxu0 0
  %705 = vmatpush2.bf16.msra.mxu0 0
  %706 = vmatprep.subr.bf16.mxu0 0
  %707 = vmatpush2.bf16.msra.mxu0 0
  %708 = vmatprep.subr.bf16.mxu0 0
  %709 = vmatpush2.bf16.msra.mxu0 0
  %710 = vmatprep.subr.bf16.mxu0 0
  %711 = vmatpush2.bf16.msra.mxu0 0
  %712 = vmatprep.subr.bf16.mxu0 0
  %713 = vmatpush2.bf16.msra.mxu0 0
  %714 = vmatprep.subr.bf16.mxu0 0
  %715 = vmatpush2.bf16.msra.mxu0 0
  %716 = vmatprep.mubr.bf16.mxu0 0
  %717 = vmatmul.mubr.bf16.gmra.mxu0 %v636
  %v718 = vpop.f32.mrf.mxu0
  %v719 = vadd.f32 0.0, %v718
  %v720 = vpop.f32.mrf.mxu0
  %v721 = vpop.f32.mrf.mxu0
  %v722 = vadd.f32 0.0, %v721
  %v723 = vpop.f32.mrf.mxu0
  %724 = vmatprep.mubr.bf16.mxu0 0
  %725 = vmatmul.mubr.bf16.gmra.mxu0 %v637
  %v726 = vpop.f32.mrf.mxu0
  %v727 = vadd.f32 0.0, %v726
  %v728 = vpop.f32.mrf.mxu0
  %v729 = vpop.f32.mrf.mxu0
  %v730 = vadd.f32 0.0, %v729
  %v731 = vpop.f32.mrf.mxu0
  %732 = vmatprep.mubr.bf16.mxu0 0
  %733 = vmatmul.mubr.bf16.gmra.mxu0 %v638
  %v734 = vpop.f32.mrf.mxu0
  %v735 = vadd.f32 0.0, %v734
  %v736 = vpop.f32.mrf.mxu0
  %v737 = vpop.f32.mrf.mxu0
  %v738 = vadd.f32 0.0, %v737
  %v739 = vpop.f32.mrf.mxu0
  %740 = vmatprep.mubr.bf16.mxu0 0
  %741 = vmatmul.mubr.bf16.gmra.mxu0 %v639
  %v742 = vpop.f32.mrf.mxu0
  %v743 = vadd.f32 0.0, %v742
  %v744 = vpop.f32.mrf.mxu0
  %v745 = vpop.f32.mrf.mxu0
  %v746 = vadd.f32 0.0, %v745
  %v747 = vpop.f32.mrf.mxu0
  %748 = vmatprep.mubr.bf16.mxu0 0
  %749 = vmatmul.mubr.bf16.gmra.mxu0 %v640
  %v750 = vpop.f32.mrf.mxu0
  %v751 = vadd.f32 0.0, %v750
  %v752 = vpop.f32.mrf.mxu0
  %v753 = vpop.f32.mrf.mxu0
  %v754 = vadd.f32 0.0, %v753
  %v755 = vpop.f32.mrf.mxu0
  %756 = vmatprep.mubr.bf16.mxu0 0
  %757 = vmatmul.mubr.bf16.gmra.mxu0 %v641
  %v758 = vpop.f32.mrf.mxu0
  %v759 = vadd.f32 0.0, %v758
  %v760 = vpop.f32.mrf.mxu0
  %v761 = vpop.f32.mrf.mxu0
  %v762 = vadd.f32 0.0, %v761
  %v763 = vpop.f32.mrf.mxu0
  %764 = vmatprep.mubr.bf16.mxu0 0
  %765 = vmatmul.mubr.bf16.gmra.mxu0 %v642
  %v766 = vpop.f32.mrf.mxu0
  %v767 = vadd.f32 0.0, %v766
  %v768 = vpop.f32.mrf.mxu0
  %v769 = vpop.f32.mrf.mxu0
  %v770 = vadd.f32 0.0, %v769
  %v771 = vpop.f32.mrf.mxu0
  %772 = vmatprep.mubr.bf16.mxu0 0
  %773 = vmatmul.mubr.bf16.gmra.mxu0 %v643
  %v774 = vpop.f32.mrf.mxu0
  %v775 = vadd.f32 0.0, %v774
  %v776 = vpop.f32.mrf.mxu0
  %v777 = vpop.f32.mrf.mxu0
  %v778 = vadd.f32 0.0, %v777
  %v779 = vpop.f32.mrf.mxu0
  %780 = vmatprep.mubr.bf16.mxu0 0
  %781 = vmatmul.mubr.bf16.gmra.mxu0 %v644
  %v782 = vpop.f32.mrf.mxu0
  %v783 = vadd.f32 0.0, %v782
  %v784 = vpop.f32.mrf.mxu0
  %v785 = vpop.f32.mrf.mxu0
  %v786 = vadd.f32 0.0, %v785
  %v787 = vpop.f32.mrf.mxu0
  %788 = vmatprep.mubr.bf16.mxu0 0
  %789 = vmatmul.mubr.bf16.gmra.mxu0 %v645
  %v790 = vpop.f32.mrf.mxu0
  %v791 = vadd.f32 0.0, %v790
  %v792 = vpop.f32.mrf.mxu0
  %v793 = vpop.f32.mrf.mxu0
  %v794 = vadd.f32 0.0, %v793
  %v795 = vpop.f32.mrf.mxu0
  %796 = vmatprep.mubr.bf16.mxu0 0
  %797 = vmatmul.mubr.bf16.gmra.mxu0 %v646
  %v798 = vpop.f32.mrf.mxu0
  %v799 = vadd.f32 0.0, %v798
  %v800 = vpop.f32.mrf.mxu0
  %v801 = vpop.f32.mrf.mxu0
  %v802 = vadd.f32 0.0, %v801
  %v803 = vpop.f32.mrf.mxu0
  %804 = vmatprep.mubr.bf16.mxu0 0
  %805 = vmatmul.mubr.bf16.gmra.mxu0 %v647
  %v806 = vpop.f32.mrf.mxu0
  %v807 = vadd.f32 0.0, %v806
  %v808 = vpop.f32.mrf.mxu0
  %v809 = vpop.f32.mrf.mxu0
  %v810 = vadd.f32 0.0, %v809
  %v811 = vpop.f32.mrf.mxu0
  %812 = vmatprep.mubr.bf16.mxu0 0
  %813 = vmatmul.mubr.bf16.gmra.mxu0 %v648
  %v814 = vpop.f32.mrf.mxu0
  %v815 = vadd.f32 0.0, %v814
  %v816 = vpop.f32.mrf.mxu0
  %v817 = vpop.f32.mrf.mxu0
  %v818 = vadd.f32 0.0, %v817
  %v819 = vpop.f32.mrf.mxu0
  %820 = vmatprep.mubr.bf16.mxu0 0
  %821 = vmatmul.mubr.bf16.gmra.mxu0 %v649
  %v822 = vpop.f32.mrf.mxu0
  %v823 = vadd.f32 0.0, %v822
  %v824 = vpop.f32.mrf.mxu0
  %v825 = vpop.f32.mrf.mxu0
  %v826 = vadd.f32 0.0, %v825
  %v827 = vpop.f32.mrf.mxu0
  %828 = vmatprep.mubr.bf16.mxu0 0
  %829 = vmatmul.mubr.bf16.gmra.mxu0 %v650
  %v830 = vpop.f32.mrf.mxu0
  %v831 = vadd.f32 0.0, %v830
  %v832 = vpop.f32.mrf.mxu0
  %v833 = vpop.f32.mrf.mxu0
  %v834 = vadd.f32 0.0, %v833
  %v835 = vpop.f32.mrf.mxu0
  %836 = vmatprep.mubr.bf16.mxu0 0
  %837 = vmatmul.mubr.bf16.gmra.mxu0 %v651
  %v838 = vpop.f32.mrf.mxu0
  %v839 = vadd.f32 0.0, %v838
  %v840 = vpop.f32.mrf.mxu0
  %v841 = vpop.f32.mrf.mxu0
  %v842 = vadd.f32 0.0, %v841
  %v843 = vpop.f32.mrf.mxu0
  %844 = vmatprep.mubr.bf16.mxu0 0
  %845 = vmatmul.mubr.bf16.gmra.mxu0 %v652
  %v846 = vpop.f32.mrf.mxu0
  %v847 = vadd.f32 0.0, %v846
  %v848 = vpop.f32.mrf.mxu0
  %v849 = vpop.f32.mrf.mxu0
  %v850 = vadd.f32 0.0, %v849
  %v851 = vpop.f32.mrf.mxu0
  %852 = vmatprep.mubr.bf16.mxu0 0
  %853 = vmatmul.mubr.bf16.gmra.mxu0 %v653
  %v854 = vpop.f32.mrf.mxu0
  %v855 = vadd.f32 0.0, %v854
  %v856 = vpop.f32.mrf.mxu0
  %v857 = vpop.f32.mrf.mxu0
  %v858 = vadd.f32 0.0, %v857
  %v859 = vpop.f32.mrf.mxu0
  %860 = vmatprep.mubr.bf16.mxu0 0
  %861 = vmatmul.mubr.bf16.gmra.mxu0 %v654
  %v862 = vpop.f32.mrf.mxu0
  %v863 = vadd.f32 0.0, %v862
  %v864 = vpop.f32.mrf.mxu0
  %v865 = vpop.f32.mrf.mxu0
  %v866 = vadd.f32 0.0, %v865
  %v867 = vpop.f32.mrf.mxu0
  %868 = vmatprep.mubr.bf16.mxu0 0
  %869 = vmatmul.mubr.bf16.gmra.mxu0 %v655
  %v870 = vpop.f32.mrf.mxu0
  %v871 = vadd.f32 0.0, %v870
  %v872 = vpop.f32.mrf.mxu0
  %v873 = vpop.f32.mrf.mxu0
  %v874 = vadd.f32 0.0, %v873
  %v875 = vpop.f32.mrf.mxu0
  %876 = vmatprep.mubr.bf16.mxu0 0
  %877 = vmatmul.mubr.bf16.gmra.mxu0 %v656
  %v878 = vpop.f32.mrf.mxu0
  %v879 = vadd.f32 0.0, %v878
  %v880 = vpop.f32.mrf.mxu0
  %v881 = vpop.f32.mrf.mxu0
  %v882 = vadd.f32 0.0, %v881
  %v883 = vpop.f32.mrf.mxu0
  %884 = vmatprep.mubr.bf16.mxu0 0
  %885 = vmatmul.mubr.bf16.gmra.mxu0 %v657
  %v886 = vpop.f32.mrf.mxu0
  %v887 = vadd.f32 0.0, %v886
  %v888 = vpop.f32.mrf.mxu0
  %v889 = vpop.f32.mrf.mxu0
  %v890 = vadd.f32 0.0, %v889
  %v891 = vpop.f32.mrf.mxu0
  %892 = vmatprep.mubr.bf16.mxu0 0
  %893 = vmatmul.mubr.bf16.gmra.mxu0 %v658
  %v894 = vpop.f32.mrf.mxu0
  %v895 = vadd.f32 0.0, %v894
  %v896 = vpop.f32.mrf.mxu0
  %v897 = vpop.f32.mrf.mxu0
  %v898 = vadd.f32 0.0, %v897
  %v899 = vpop.f32.mrf.mxu0
  %900 = vmatprep.mubr.bf16.mxu0 0
  %901 = vmatmul.mubr.bf16.gmra.mxu0 %v659
  %v902 = vpop.f32.mrf.mxu0
  %v903 = vadd.f32 0.0, %v902
  %v904 = vpop.f32.mrf.mxu0
  %v905 = vpop.f32.mrf.mxu0
  %v906 = vadd.f32 0.0, %v905
  %v907 = vpop.f32.mrf.mxu0
  %908 = vdwg.mxu0
  %v909 = vpack.c.bf16 %v722, %v719
  %v910 = vpack.c.bf16 %v730, %v727
  %v911 = vpack.c.bf16 %v738, %v735
  %v912 = vpack.c.bf16 %v746, %v743
  %v913 = vpack.c.bf16 %v754, %v751
  %v914 = vpack.c.bf16 %v762, %v759
  %v915 = vpack.c.bf16 %v770, %v767
  %v916 = vpack.c.bf16 %v778, %v775
  %v917 = vpack.c.bf16 %v786, %v783
  %v918 = vpack.c.bf16 %v794, %v791
  %v919 = vpack.c.bf16 %v802, %v799
  %v920 = vpack.c.bf16 %v810, %v807
  %v921 = vpack.c.bf16 %v818, %v815
  %v922 = vpack.c.bf16 %v826, %v823
  %v923 = vpack.c.bf16 %v834, %v831
  %v924 = vpack.c.bf16 %v842, %v839
  %v925 = vpack.c.bf16 %v850, %v847
  %v926 = vpack.c.bf16 %v858, %v855
  %v927 = vpack.c.bf16 %v866, %v863
  %v928 = vpack.c.bf16 %v874, %v871
  %v929 = vpack.c.bf16 %v882, %v879
  %v930 = vpack.c.bf16 %v890, %v887
  %v931 = vpack.c.bf16 %v898, %v895
  %v932 = vpack.c.bf16 %v906, %v903
  %933 = vmatprep.subr.bf16.mxu0 0
  %934 = vmatpush1.bf16.msra.mxu0 %v916
  %935 = vmatprep.subr.bf16.mxu0 0
  %936 = vmatpush1.bf16.msra.mxu0 %v915
  %937 = vmatprep.subr.bf16.mxu0 0
  %938 = vmatpush1.bf16.msra.mxu0 %v914
  %939 = vmatprep.subr.bf16.mxu0 0
  %940 = vmatpush1.bf16.msra.mxu0 %v913
  %941 = vmatprep.subr.bf16.mxu0 0
  %942 = vmatpush1.bf16.msra.mxu0 %v912
  %943 = vmatprep.subr.bf16.mxu0 0
  %944 = vmatpush1.bf16.msra.mxu0 %v911
  %945 = vmatprep.subr.bf16.mxu0 0
  %946 = vmatpush1.bf16.msra.mxu0 %v910
  %947 = vmatprep.subr.bf16.mxu0 0
  %948 = vmatpush1.bf16.msra.mxu0 %v909
  %949 = vmatprep.subr.bf16.mxu0 0
  %950 = vmatpush2.bf16.msra.mxu0 %v924
  %951 = vmatprep.subr.bf16.mxu0 0
  %952 = vmatpush2.bf16.msra.mxu0 %v923
  %953 = vmatprep.subr.bf16.mxu0 0
  %954 = vmatpush2.bf16.msra.mxu0 %v922
  %955 = vmatprep.subr.bf16.mxu0 0
  %956 = vmatpush2.bf16.msra.mxu0 %v921
  %957 = vmatprep.subr.bf16.mxu0 0
  %958 = vmatpush2.bf16.msra.mxu0 %v920
  %959 = vmatprep.subr.bf16.mxu0 0
  %960 = vmatpush2.bf16.msra.mxu0 %v919
  %961 = vmatprep.subr.bf16.mxu0 0
  %962 = vmatpush2.bf16.msra.mxu0 %v918
  %963 = vmatprep.subr.bf16.mxu0 0
  %964 = vmatpush2.bf16.msra.mxu0 %v917
  %965 = vmatprep.mubr.bf16.mxu0 %v291
  %966 = vmatmul.mubr.bf16.gmra.mxu0 %v290
  %v967 = vpop.f32.mrf.mxu0
  %v968 = vadd.f32 0.0, %v967
  %v969 = vpop.f32.mrf.mxu0
  %v970 = vpop.f32.mrf.mxu0
  %v971 = vadd.f32 0.0, %v970
  %v972 = vpop.f32.mrf.mxu0
  %973 = vmatprep.mubr.bf16.mxu0 %v294
  %974 = vmatmul.mubr.bf16.gmra.mxu0 %v293
  %v975 = vpop.f32.mrf.mxu0
  %v976 = vadd.f32 0.0, %v975
  %v977 = vpop.f32.mrf.mxu0
  %v978 = vpop.f32.mrf.mxu0
  %v979 = vadd.f32 0.0, %v978
  %v980 = vpop.f32.mrf.mxu0
  %981 = vmatprep.mubr.bf16.mxu0 %v297
  %982 = vmatmul.mubr.bf16.gmra.mxu0 %v296
  %v983 = vpop.f32.mrf.mxu0
  %v984 = vadd.f32 0.0, %v983
  %v985 = vpop.f32.mrf.mxu0
  %v986 = vpop.f32.mrf.mxu0
  %v987 = vadd.f32 0.0, %v986
  %v988 = vpop.f32.mrf.mxu0
  %989 = vmatprep.mubr.bf16.mxu0 %v300
  %990 = vmatmul.mubr.bf16.gmra.mxu0 %v299
  %v991 = vpop.f32.mrf.mxu0
  %v992 = vadd.f32 0.0, %v991
  %v993 = vpop.f32.mrf.mxu0
  %v994 = vpop.f32.mrf.mxu0
  %v995 = vadd.f32 0.0, %v994
  %v996 = vpop.f32.mrf.mxu0
  %997 = vmatprep.mubr.bf16.mxu0 %v303
  %998 = vmatmul.mubr.bf16.gmra.mxu0 %v302
  %v999 = vpop.f32.mrf.mxu0
  %v1000 = vadd.f32 0.0, %v999
  %v1001 = vpop.f32.mrf.mxu0
  %v1002 = vpop.f32.mrf.mxu0
  %v1003 = vadd.f32 0.0, %v1002
  %v1004 = vpop.f32.mrf.mxu0
  %1005 = vmatprep.mubr.bf16.mxu0 %v306
  %1006 = vmatmul.mubr.bf16.gmra.mxu0 %v305
  %v1007 = vpop.f32.mrf.mxu0
  %v1008 = vadd.f32 0.0, %v1007
  %v1009 = vpop.f32.mrf.mxu0
  %v1010 = vpop.f32.mrf.mxu0
  %v1011 = vadd.f32 0.0, %v1010
  %v1012 = vpop.f32.mrf.mxu0
  %1013 = vmatprep.mubr.bf16.mxu0 %v309
  %1014 = vmatmul.mubr.bf16.gmra.mxu0 %v308
  %v1015 = vpop.f32.mrf.mxu0
  %v1016 = vadd.f32 0.0, %v1015
  %v1017 = vpop.f32.mrf.mxu0
  %v1018 = vpop.f32.mrf.mxu0
  %v1019 = vadd.f32 0.0, %v1018
  %v1020 = vpop.f32.mrf.mxu0
  %1021 = vmatprep.mubr.bf16.mxu0 %v312
  %1022 = vmatmul.mubr.bf16.gmra.mxu0 %v311
  %v1023 = vpop.f32.mrf.mxu0
  %v1024 = vadd.f32 0.0, %v1023
  %v1025 = vpop.f32.mrf.mxu0
  %v1026 = vpop.f32.mrf.mxu0
  %v1027 = vadd.f32 0.0, %v1026
  %v1028 = vpop.f32.mrf.mxu0
  %1029 = vdwg.mxu0
  %1030 = vmatprep.subr.bf16.mxu0 0
  %1031 = vmatpush1.bf16.msra.mxu0 %v932
  %1032 = vmatprep.subr.bf16.mxu0 0
  %1033 = vmatpush1.bf16.msra.mxu0 %v931
  %1034 = vmatprep.subr.bf16.mxu0 0
  %1035 = vmatpush1.bf16.msra.mxu0 %v930
  %1036 = vmatprep.subr.bf16.mxu0 0
  %1037 = vmatpush1.bf16.msra.mxu0 %v929
  %1038 = vmatprep.subr.bf16.mxu0 0
  %1039 = vmatpush1.bf16.msra.mxu0 %v928
  %1040 = vmatprep.subr.bf16.mxu0 0
  %1041 = vmatpush1.bf16.msra.mxu0 %v927
  %1042 = vmatprep.subr.bf16.mxu0 0
  %1043 = vmatpush1.bf16.msra.mxu0 %v926
  %1044 = vmatprep.subr.bf16.mxu0 0
  %1045 = vmatpush1.bf16.msra.mxu0 %v925
  %1046 = vmatprep.subr.bf16.mxu0 0
  %1047 = vmatpush2.bf16.msra.mxu0 0
  %1048 = vmatprep.subr.bf16.mxu0 0
  %1049 = vmatpush2.bf16.msra.mxu0 0
  %1050 = vmatprep.subr.bf16.mxu0 0
  %1051 = vmatpush2.bf16.msra.mxu0 0
  %1052 = vmatprep.subr.bf16.mxu0 0
  %1053 = vmatpush2.bf16.msra.mxu0 0
  %1054 = vmatprep.subr.bf16.mxu0 0
  %1055 = vmatpush2.bf16.msra.mxu0 0
  %1056 = vmatprep.subr.bf16.mxu0 0
  %1057 = vmatpush2.bf16.msra.mxu0 0
  %1058 = vmatprep.subr.bf16.mxu0 0
  %1059 = vmatpush2.bf16.msra.mxu0 0
  %1060 = vmatprep.subr.bf16.mxu0 0
  %1061 = vmatpush2.bf16.msra.mxu0 0
  %1062 = vmatprep.mubr.bf16.mxu0 0
  %1063 = vmatmul.mubr.bf16.gmra.mxu0 %v292
  %v1064 = vpop.f32.mrf.mxu0
  %v1065 = vadd.f32 %v968, %v1064
  %v1066 = vpop.f32.mrf.mxu0
  %v1067 = vpop.f32.mrf.mxu0
  %v1068 = vadd.f32 %v971, %v1067
  %v1069 = vpop.f32.mrf.mxu0
  %1070 = vmatprep.mubr.bf16.mxu0 0
  %1071 = vmatmul.mubr.bf16.gmra.mxu0 %v295
  %v1072 = vpop.f32.mrf.mxu0
  %v1073 = vadd.f32 %v976, %v1072
  %v1074 = vpop.f32.mrf.mxu0
  %v1075 = vpop.f32.mrf.mxu0
  %v1076 = vadd.f32 %v979, %v1075
  %v1077 = vpop.f32.mrf.mxu0
  %1078 = vmatprep.mubr.bf16.mxu0 0
  %1079 = vmatmul.mubr.bf16.gmra.mxu0 %v298
  %v1080 = vpop.f32.mrf.mxu0
  %v1081 = vadd.f32 %v984, %v1080
  %v1082 = vpop.f32.mrf.mxu0
  %v1083 = vpop.f32.mrf.mxu0
  %v1084 = vadd.f32 %v987, %v1083
  %v1085 = vpop.f32.mrf.mxu0
  %1086 = vmatprep.mubr.bf16.mxu0 0
  %1087 = vmatmul.mubr.bf16.gmra.mxu0 %v301
  %v1088 = vpop.f32.mrf.mxu0
  %v1089 = vadd.f32 %v992, %v1088
  %v1090 = vpop.f32.mrf.mxu0
  %v1091 = vpop.f32.mrf.mxu0
  %v1092 = vadd.f32 %v995, %v1091
  %v1093 = vpop.f32.mrf.mxu0
  %1094 = vmatprep.mubr.bf16.mxu0 0
  %1095 = vmatmul.mubr.bf16.gmra.mxu0 %v304
  %v1096 = vpop.f32.mrf.mxu0
  %v1097 = vadd.f32 %v1000, %v1096
  %v1098 = vpop.f32.mrf.mxu0
  %v1099 = vpop.f32.mrf.mxu0
  %v1100 = vadd.f32 %v1003, %v1099
  %v1101 = vpop.f32.mrf.mxu0
  %1102 = vmatprep.mubr.bf16.mxu0 0
  %1103 = vmatmul.mubr.bf16.gmra.mxu0 %v307
  %v1104 = vpop.f32.mrf.mxu0
  %v1105 = vadd.f32 %v1008, %v1104
  %v1106 = vpop.f32.mrf.mxu0
  %v1107 = vpop.f32.mrf.mxu0
  %v1108 = vadd.f32 %v1011, %v1107
  %v1109 = vpop.f32.mrf.mxu0
  %1110 = vmatprep.mubr.bf16.mxu0 0
  %1111 = vmatmul.mubr.bf16.gmra.mxu0 %v310
  %v1112 = vpop.f32.mrf.mxu0
  %v1113 = vadd.f32 %v1016, %v1112
  %v1114 = vpop.f32.mrf.mxu0
  %v1115 = vpop.f32.mrf.mxu0
  %v1116 = vadd.f32 %v1019, %v1115
  %v1117 = vpop.f32.mrf.mxu0
  %1118 = vmatprep.mubr.bf16.mxu0 0
  %1119 = vmatmul.mubr.bf16.gmra.mxu0 %v313
  %v1120 = vpop.f32.mrf.mxu0
  %v1121 = vadd.f32 %v1024, %v1120
  %v1122 = vpop.f32.mrf.mxu0
  %v1123 = vpop.f32.mrf.mxu0
  %v1124 = vadd.f32 %v1027, %v1123
  %v1125 = vpop.f32.mrf.mxu0
  %1126 = vdwg.mxu0
  %v1127 = vpack.c.bf16 %v473, %v470
  %v1128 = vpack.c.bf16 %v481, %v478
  %v1129 = vpack.c.bf16 %v489, %v486
  %v1130 = vpack.c.bf16 %v497, %v494
  %v1131 = vpack.c.bf16 %v505, %v502
  %v1132 = vpack.c.bf16 %v513, %v510
  %v1133 = vpack.c.bf16 %v521, %v518
  %v1134 = vpack.c.bf16 %v529, %v526
  %1135 = vmatprep.subr.bf16.mxu0 0
  %1136 = vmatpush1.bf16.msra.mxu0 %v1134
  %1137 = vmatprep.subr.bf16.mxu0 0
  %1138 = vmatpush1.bf16.msra.mxu0 %v1133
  %1139 = vmatprep.subr.bf16.mxu0 0
  %1140 = vmatpush1.bf16.msra.mxu0 %v1132
  %1141 = vmatprep.subr.bf16.mxu0 0
  %1142 = vmatpush1.bf16.msra.mxu0 %v1131
  %1143 = vmatprep.subr.bf16.mxu0 0
  %1144 = vmatpush1.bf16.msra.mxu0 %v1130
  %1145 = vmatprep.subr.bf16.mxu0 0
  %1146 = vmatpush1.bf16.msra.mxu0 %v1129
  %1147 = vmatprep.subr.bf16.mxu0 0
  %1148 = vmatpush1.bf16.msra.mxu0 %v1128
  %1149 = vmatprep.subr.bf16.mxu0 0
  %1150 = vmatpush1.bf16.msra.mxu0 %v1127
  %1151 = vmatprep.subr.bf16.mxu0 0
  %1152 = vmatpush2.bf16.msra.mxu0 0
  %1153 = vmatprep.subr.bf16.mxu0 0
  %1154 = vmatpush2.bf16.msra.mxu0 0
  %1155 = vmatprep.subr.bf16.mxu0 0
  %1156 = vmatpush2.bf16.msra.mxu0 0
  %1157 = vmatprep.subr.bf16.mxu0 0
  %1158 = vmatpush2.bf16.msra.mxu0 0
  %1159 = vmatprep.subr.bf16.mxu0 0
  %1160 = vmatpush2.bf16.msra.mxu0 0
  %1161 = vmatprep.subr.bf16.mxu0 0
  %1162 = vmatpush2.bf16.msra.mxu0 0
  %1163 = vmatprep.subr.bf16.mxu0 0
  %1164 = vmatpush2.bf16.msra.mxu0 0
  %1165 = vmatprep.subr.bf16.mxu0 0
  %1166 = vmatpush2.bf16.msra.mxu0 0
  %1167 = vmatprep.mubr.bf16.mxu0 0
  %1168 = vmatmul.mubr.bf16.gmra.mxu0 %v636
  %v1169 = vpop.f32.mrf.mxu0
  %v1170 = vadd.f32 0.0, %v1169
  %v1171 = vpop.f32.mrf.mxu0
  %v1172 = vpop.f32.mrf.mxu0
  %v1173 = vadd.f32 0.0, %v1172
  %v1174 = vpop.f32.mrf.mxu0
  %1175 = vmatprep.mubr.bf16.mxu0 0
  %1176 = vmatmul.mubr.bf16.gmra.mxu0 %v637
  %v1177 = vpop.f32.mrf.mxu0
  %v1178 = vadd.f32 0.0, %v1177
  %v1179 = vpop.f32.mrf.mxu0
  %v1180 = vpop.f32.mrf.mxu0
  %v1181 = vadd.f32 0.0, %v1180
  %v1182 = vpop.f32.mrf.mxu0
  %1183 = vmatprep.mubr.bf16.mxu0 0
  %1184 = vmatmul.mubr.bf16.gmra.mxu0 %v638
  %v1185 = vpop.f32.mrf.mxu0
  %v1186 = vadd.f32 0.0, %v1185
  %v1187 = vpop.f32.mrf.mxu0
  %v1188 = vpop.f32.mrf.mxu0
  %v1189 = vadd.f32 0.0, %v1188
  %v1190 = vpop.f32.mrf.mxu0
  %1191 = vmatprep.mubr.bf16.mxu0 0
  %1192 = vmatmul.mubr.bf16.gmra.mxu0 %v639
  %v1193 = vpop.f32.mrf.mxu0
  %v1194 = vadd.f32 0.0, %v1193
  %v1195 = vpop.f32.mrf.mxu0
  %v1196 = vpop.f32.mrf.mxu0
  %v1197 = vadd.f32 0.0, %v1196
  %v1198 = vpop.f32.mrf.mxu0
  %1199 = vmatprep.mubr.bf16.mxu0 0
  %1200 = vmatmul.mubr.bf16.gmra.mxu0 %v640
  %v1201 = vpop.f32.mrf.mxu0
  %v1202 = vadd.f32 0.0, %v1201
  %v1203 = vpop.f32.mrf.mxu0
  %v1204 = vpop.f32.mrf.mxu0
  %v1205 = vadd.f32 0.0, %v1204
  %v1206 = vpop.f32.mrf.mxu0
  %1207 = vmatprep.mubr.bf16.mxu0 0
  %1208 = vmatmul.mubr.bf16.gmra.mxu0 %v641
  %v1209 = vpop.f32.mrf.mxu0
  %v1210 = vadd.f32 0.0, %v1209
  %v1211 = vpop.f32.mrf.mxu0
  %v1212 = vpop.f32.mrf.mxu0
  %v1213 = vadd.f32 0.0, %v1212
  %v1214 = vpop.f32.mrf.mxu0
  %1215 = vmatprep.mubr.bf16.mxu0 0
  %1216 = vmatmul.mubr.bf16.gmra.mxu0 %v642
  %v1217 = vpop.f32.mrf.mxu0
  %v1218 = vadd.f32 0.0, %v1217
  %v1219 = vpop.f32.mrf.mxu0
  %v1220 = vpop.f32.mrf.mxu0
  %v1221 = vadd.f32 0.0, %v1220
  %v1222 = vpop.f32.mrf.mxu0
  %1223 = vmatprep.mubr.bf16.mxu0 0
  %1224 = vmatmul.mubr.bf16.gmra.mxu0 %v643
  %v1225 = vpop.f32.mrf.mxu0
  %v1226 = vadd.f32 0.0, %v1225
  %v1227 = vpop.f32.mrf.mxu0
  %v1228 = vpop.f32.mrf.mxu0
  %v1229 = vadd.f32 0.0, %v1228
  %v1230 = vpop.f32.mrf.mxu0
  %1231 = vmatprep.mubr.bf16.mxu0 0
  %1232 = vmatmul.mubr.bf16.gmra.mxu0 %v644
  %v1233 = vpop.f32.mrf.mxu0
  %v1234 = vadd.f32 0.0, %v1233
  %v1235 = vpop.f32.mrf.mxu0
  %v1236 = vpop.f32.mrf.mxu0
  %v1237 = vadd.f32 0.0, %v1236
  %v1238 = vpop.f32.mrf.mxu0
  %1239 = vmatprep.mubr.bf16.mxu0 0
  %1240 = vmatmul.mubr.bf16.gmra.mxu0 %v645
  %v1241 = vpop.f32.mrf.mxu0
  %v1242 = vadd.f32 0.0, %v1241
  %v1243 = vpop.f32.mrf.mxu0
  %v1244 = vpop.f32.mrf.mxu0
  %v1245 = vadd.f32 0.0, %v1244
  %v1246 = vpop.f32.mrf.mxu0
  %1247 = vmatprep.mubr.bf16.mxu0 0
  %1248 = vmatmul.mubr.bf16.gmra.mxu0 %v646
  %v1249 = vpop.f32.mrf.mxu0
  %v1250 = vadd.f32 0.0, %v1249
  %v1251 = vpop.f32.mrf.mxu0
  %v1252 = vpop.f32.mrf.mxu0
  %v1253 = vadd.f32 0.0, %v1252
  %v1254 = vpop.f32.mrf.mxu0
  %1255 = vmatprep.mubr.bf16.mxu0 0
  %1256 = vmatmul.mubr.bf16.gmra.mxu0 %v647
  %v1257 = vpop.f32.mrf.mxu0
  %v1258 = vadd.f32 0.0, %v1257
  %v1259 = vpop.f32.mrf.mxu0
  %v1260 = vpop.f32.mrf.mxu0
  %v1261 = vadd.f32 0.0, %v1260
  %v1262 = vpop.f32.mrf.mxu0
  %1263 = vmatprep.mubr.bf16.mxu0 0
  %1264 = vmatmul.mubr.bf16.gmra.mxu0 %v648
  %v1265 = vpop.f32.mrf.mxu0
  %v1266 = vadd.f32 0.0, %v1265
  %v1267 = vpop.f32.mrf.mxu0
  %v1268 = vpop.f32.mrf.mxu0
  %v1269 = vadd.f32 0.0, %v1268
  %v1270 = vpop.f32.mrf.mxu0
  %1271 = vmatprep.mubr.bf16.mxu0 0
  %1272 = vmatmul.mubr.bf16.gmra.mxu0 %v649
  %v1273 = vpop.f32.mrf.mxu0
  %v1274 = vadd.f32 0.0, %v1273
  %v1275 = vpop.f32.mrf.mxu0
  %v1276 = vpop.f32.mrf.mxu0
  %v1277 = vadd.f32 0.0, %v1276
  %v1278 = vpop.f32.mrf.mxu0
  %1279 = vmatprep.mubr.bf16.mxu0 0
  %1280 = vmatmul.mubr.bf16.gmra.mxu0 %v650
  %v1281 = vpop.f32.mrf.mxu0
  %v1282 = vadd.f32 0.0, %v1281
  %v1283 = vpop.f32.mrf.mxu0
  %v1284 = vpop.f32.mrf.mxu0
  %v1285 = vadd.f32 0.0, %v1284
  %v1286 = vpop.f32.mrf.mxu0
  %1287 = vmatprep.mubr.bf16.mxu0 0
  %1288 = vmatmul.mubr.bf16.gmra.mxu0 %v651
  %v1289 = vpop.f32.mrf.mxu0
  %v1290 = vadd.f32 0.0, %v1289
  %v1291 = vpop.f32.mrf.mxu0
  %v1292 = vpop.f32.mrf.mxu0
  %v1293 = vadd.f32 0.0, %v1292
  %v1294 = vpop.f32.mrf.mxu0
  %1295 = vmatprep.mubr.bf16.mxu0 0
  %1296 = vmatmul.mubr.bf16.gmra.mxu0 %v652
  %v1297 = vpop.f32.mrf.mxu0
  %v1298 = vadd.f32 0.0, %v1297
  %v1299 = vpop.f32.mrf.mxu0
  %v1300 = vpop.f32.mrf.mxu0
  %v1301 = vadd.f32 0.0, %v1300
  %v1302 = vpop.f32.mrf.mxu0
  %1303 = vmatprep.mubr.bf16.mxu0 0
  %1304 = vmatmul.mubr.bf16.gmra.mxu0 %v653
  %v1305 = vpop.f32.mrf.mxu0
  %v1306 = vadd.f32 0.0, %v1305
  %v1307 = vpop.f32.mrf.mxu0
  %v1308 = vpop.f32.mrf.mxu0
  %v1309 = vadd.f32 0.0, %v1308
  %v1310 = vpop.f32.mrf.mxu0
  %1311 = vmatprep.mubr.bf16.mxu0 0
  %1312 = vmatmul.mubr.bf16.gmra.mxu0 %v654
  %v1313 = vpop.f32.mrf.mxu0
  %v1314 = vadd.f32 0.0, %v1313
  %v1315 = vpop.f32.mrf.mxu0
  %v1316 = vpop.f32.mrf.mxu0
  %v1317 = vadd.f32 0.0, %v1316
  %v1318 = vpop.f32.mrf.mxu0
  %1319 = vmatprep.mubr.bf16.mxu0 0
  %1320 = vmatmul.mubr.bf16.gmra.mxu0 %v655
  %v1321 = vpop.f32.mrf.mxu0
  %v1322 = vadd.f32 0.0, %v1321
  %v1323 = vpop.f32.mrf.mxu0
  %v1324 = vpop.f32.mrf.mxu0
  %v1325 = vadd.f32 0.0, %v1324
  %v1326 = vpop.f32.mrf.mxu0
  %1327 = vmatprep.mubr.bf16.mxu0 0
  %1328 = vmatmul.mubr.bf16.gmra.mxu0 %v656
  %v1329 = vpop.f32.mrf.mxu0
  %v1330 = vadd.f32 0.0, %v1329
  %v1331 = vpop.f32.mrf.mxu0
  %v1332 = vpop.f32.mrf.mxu0
  %v1333 = vadd.f32 0.0, %v1332
  %v1334 = vpop.f32.mrf.mxu0
  %1335 = vmatprep.mubr.bf16.mxu0 0
  %1336 = vmatmul.mubr.bf16.gmra.mxu0 %v657
  %v1337 = vpop.f32.mrf.mxu0
  %v1338 = vadd.f32 0.0, %v1337
  %v1339 = vpop.f32.mrf.mxu0
  %v1340 = vpop.f32.mrf.mxu0
  %v1341 = vadd.f32 0.0, %v1340
  %v1342 = vpop.f32.mrf.mxu0
  %1343 = vmatprep.mubr.bf16.mxu0 0
  %1344 = vmatmul.mubr.bf16.gmra.mxu0 %v658
  %v1345 = vpop.f32.mrf.mxu0
  %v1346 = vadd.f32 0.0, %v1345
  %v1347 = vpop.f32.mrf.mxu0
  %v1348 = vpop.f32.mrf.mxu0
  %v1349 = vadd.f32 0.0, %v1348
  %v1350 = vpop.f32.mrf.mxu0
  %1351 = vmatprep.mubr.bf16.mxu0 0
  %1352 = vmatmul.mubr.bf16.gmra.mxu0 %v659
  %v1353 = vpop.f32.mrf.mxu0
  %v1354 = vadd.f32 0.0, %v1353
  %v1355 = vpop.f32.mrf.mxu0
  %v1356 = vpop.f32.mrf.mxu0
  %v1357 = vadd.f32 0.0, %v1356
  %v1358 = vpop.f32.mrf.mxu0
  %1359 = vdwg.mxu0
  %v1360 = vld [vmem:[%s0] sm:$0xff]
  %v1361 = vld [vmem:[%s0 + $0x8] sm:$0xff]
  %v1362 = vld [vmem:[%s0 + $0x10] sm:$0xff]
  %v1363 = vld [vmem:[%s0 + $0x18] sm:$0xff]
  %v1364 = vld [vmem:[%s0 + $0x20] sm:$0xff]
  %v1365 = vld [vmem:[%s0 + $0x28] sm:$0xff]
  %v1366 = vld [vmem:[%s0 + $0x30] sm:$0xff]
  %v1367 = vld [vmem:[%s0 + $0x38] sm:$0xff]
  %v1368 = vld [vmem:[%s0 + $0x40] sm:$0xff]
  %v1369 = vld [vmem:[%s0 + $0x48] sm:$0xff]
  %v1370 = vld [vmem:[%s0 + $0x50] sm:$0xff]
  %v1371 = vld [vmem:[%s0 + $0x58] sm:$0xff]
  %v1372 = vld [vmem:[%s0 + $0x60] sm:$0xff]
  %v1373 = vld [vmem:[%s0 + $0x68] sm:$0xff]
  %v1374 = vld [vmem:[%s0 + $0x70] sm:$0xff]
  %v1375 = vld [vmem:[%s0 + $0x78] sm:$0xff]
  %v1376 = vld [vmem:[%s0 + $0x80] sm:$0xff]
  %v1377 = vld [vmem:[%s0 + $0x88] sm:$0xff]
  %v1378 = vld [vmem:[%s0 + $0x90] sm:$0xff]
  %v1379 = vld [vmem:[%s0 + $0x98] sm:$0xff]
  %v1380 = vld [vmem:[%s0 + $0xa0] sm:$0xff]
  %v1381 = vld [vmem:[%s0 + $0xa8] sm:$0xff]
  %v1382 = vld [vmem:[%s0 + $0xb0] sm:$0xff]
  %v1383 = vld [vmem:[%s0 + $0xb8] sm:$0xff]
  %v1384 = vld [vmem:[%s0 + $0xc0] sm:$0xff]
  %v1385 = vld [vmem:[%s0 + $0xc8] sm:$0xff]
  %v1386 = vld [vmem:[%s0 + $0xd0] sm:$0xff]
  %v1387 = vld [vmem:[%s0 + $0xd8] sm:$0xff]
  %v1388 = vld [vmem:[%s0 + $0xe0] sm:$0xff]
  %v1389 = vld [vmem:[%s0 + $0xe8] sm:$0xff]
  %v1390 = vld [vmem:[%s0 + $0xf0] sm:$0xff]
  %v1391 = vld [vmem:[%s0 + $0xf8] sm:$0xff]
  %v1392 = vlaneseq
  %v1393 = vand.u32 %v1392, 127
  %1394 = vset.pattern.permute.xlu0 0
  %1395 = vperm.xlu0 %1394, %v1360
  %v1396 = vpop.permute.xlu0 %1395
  %1397 = vset.pattern.permute.xlu0 0
  %1398 = vperm.xlu0 %1397, %v1361
  %v1399 = vpop.permute.xlu0 %1398
  %1400 = vset.pattern.permute.xlu0 0
  %1401 = vperm.xlu0 %1400, %v1362
  %v1402 = vpop.permute.xlu0 %1401
  %1403 = vset.pattern.permute.xlu0 0
  %1404 = vperm.xlu0 %1403, %v1363
  %v1405 = vpop.permute.xlu0 %1404
  %1406 = vset.pattern.permute.xlu0 0
  %1407 = vperm.xlu0 %1406, %v1364
  %v1408 = vpop.permute.xlu0 %1407
  %1409 = vset.pattern.permute.xlu0 0
  %1410 = vperm.xlu0 %1409, %v1365
  %v1411 = vpop.permute.xlu0 %1410
  %1412 = vset.pattern.permute.xlu0 0
  %1413 = vperm.xlu0 %1412, %v1366
  %v1414 = vpop.permute.xlu0 %1413
  %1415 = vset.pattern.permute.xlu0 0
  %1416 = vperm.xlu0 %1415, %v1367
  %v1417 = vpop.permute.xlu0 %1416
  %1418 = vset.pattern.permute.xlu0 0
  %1419 = vperm.xlu0 %1418, %v1368
  %v1420 = vpop.permute.xlu0 %1419
  %1421 = vset.pattern.permute.xlu0 0
  %1422 = vperm.xlu0 %1421, %v1369
  %v1423 = vpop.permute.xlu0 %1422
  %1424 = vset.pattern.permute.xlu0 0
  %1425 = vperm.xlu0 %1424, %v1370
  %v1426 = vpop.permute.xlu0 %1425
  %1427 = vset.pattern.permute.xlu0 0
  %1428 = vperm.xlu0 %1427, %v1371
  %v1429 = vpop.permute.xlu0 %1428
  %1430 = vset.pattern.permute.xlu0 0
  %1431 = vperm.xlu0 %1430, %v1372
  %v1432 = vpop.permute.xlu0 %1431
  %1433 = vset.pattern.permute.xlu0 0
  %1434 = vperm.xlu0 %1433, %v1373
  %v1435 = vpop.permute.xlu0 %1434
  %1436 = vset.pattern.permute.xlu0 0
  %1437 = vperm.xlu0 %1436, %v1374
  %v1438 = vpop.permute.xlu0 %1437
  %1439 = vset.pattern.permute.xlu0 0
  %1440 = vperm.xlu0 %1439, %v1375
  %v1441 = vpop.permute.xlu0 %1440
  %1442 = vset.pattern.permute.xlu0 0
  %1443 = vperm.xlu0 %1442, %v1376
  %v1444 = vpop.permute.xlu0 %1443
  %1445 = vset.pattern.permute.xlu0 0
  %1446 = vperm.xlu0 %1445, %v1377
  %v1447 = vpop.permute.xlu0 %1446
  %1448 = vset.pattern.permute.xlu0 0
  %1449 = vperm.xlu0 %1448, %v1378
  %v1450 = vpop.permute.xlu0 %1449
  %1451 = vset.pattern.permute.xlu0 0
  %1452 = vperm.xlu0 %1451, %v1379
  %v1453 = vpop.permute.xlu0 %1452
  %1454 = vset.pattern.permute.xlu0 0
  %1455 = vperm.xlu0 %1454, %v1380
  %v1456 = vpop.permute.xlu0 %1455
  %1457 = vset.pattern.permute.xlu0 0
  %1458 = vperm.xlu0 %1457, %v1381
  %v1459 = vpop.permute.xlu0 %1458
  %1460 = vset.pattern.permute.xlu0 0
  %1461 = vperm.xlu0 %1460, %v1382
  %v1462 = vpop.permute.xlu0 %1461
  %1463 = vset.pattern.permute.xlu0 0
  %1464 = vperm.xlu0 %1463, %v1383
  %v1465 = vpop.permute.xlu0 %1464
  %1466 = vset.pattern.permute.xlu0 0
  %1467 = vperm.xlu0 %1466, %v1384
  %v1468 = vpop.permute.xlu0 %1467
  %1469 = vset.pattern.permute.xlu0 0
  %1470 = vperm.xlu0 %1469, %v1385
  %v1471 = vpop.permute.xlu0 %1470
  %1472 = vset.pattern.permute.xlu0 0
  %1473 = vperm.xlu0 %1472, %v1386
  %v1474 = vpop.permute.xlu0 %1473
  %1475 = vset.pattern.permute.xlu0 0
  %1476 = vperm.xlu0 %1475, %v1387
  %v1477 = vpop.permute.xlu0 %1476
  %1478 = vset.pattern.permute.xlu0 0
  %1479 = vperm.xlu0 %1478, %v1388
  %v1480 = vpop.permute.xlu0 %1479
  %1481 = vset.pattern.permute.xlu0 0
  %1482 = vperm.xlu0 %1481, %v1389
  %v1483 = vpop.permute.xlu0 %1482
  %1484 = vset.pattern.permute.xlu0 0
  %1485 = vperm.xlu0 %1484, %v1390
  %v1486 = vpop.permute.xlu0 %1485
  %1487 = vset.pattern.permute.xlu0 0
  %1488 = vperm.xlu0 %1487, %v1391
  %v1489 = vpop.permute.xlu0 %1488
  %vm1490 = vcmp.eq.s32.totalorder %v1396, %v1393
  %vm1491 = vcmp.eq.s32.totalorder %v1399, %v1393
  %vm1492 = vcmp.eq.s32.totalorder %v1402, %v1393
  %vm1493 = vcmp.eq.s32.totalorder %v1405, %v1393
  %vm1494 = vcmp.eq.s32.totalorder %v1408, %v1393
  %vm1495 = vcmp.eq.s32.totalorder %v1411, %v1393
  %vm1496 = vcmp.eq.s32.totalorder %v1414, %v1393
  %vm1497 = vcmp.eq.s32.totalorder %v1417, %v1393
  %vm1498 = vcmp.eq.s32.totalorder %v1420, %v1393
  %vm1499 = vcmp.eq.s32.totalorder %v1423, %v1393
  %vm1500 = vcmp.eq.s32.totalorder %v1426, %v1393
  %vm1501 = vcmp.eq.s32.totalorder %v1429, %v1393
  %vm1502 = vcmp.eq.s32.totalorder %v1432, %v1393
  %vm1503 = vcmp.eq.s32.totalorder %v1435, %v1393
  %vm1504 = vcmp.eq.s32.totalorder %v1438, %v1393
  %vm1505 = vcmp.eq.s32.totalorder %v1441, %v1393
  %vm1506 = vcmp.eq.s32.totalorder %v1444, %v1393
  %vm1507 = vcmp.eq.s32.totalorder %v1447, %v1393
  %vm1508 = vcmp.eq.s32.totalorder %v1450, %v1393
  %vm1509 = vcmp.eq.s32.totalorder %v1453, %v1393
  %vm1510 = vcmp.eq.s32.totalorder %v1456, %v1393
  %vm1511 = vcmp.eq.s32.totalorder %v1459, %v1393
  %vm1512 = vcmp.eq.s32.totalorder %v1462, %v1393
  %vm1513 = vcmp.eq.s32.totalorder %v1465, %v1393
  %vm1514 = vcmp.eq.s32.totalorder %v1468, %v1393
  %vm1515 = vcmp.eq.s32.totalorder %v1471, %v1393
  %vm1516 = vcmp.eq.s32.totalorder %v1474, %v1393
  %vm1517 = vcmp.eq.s32.totalorder %v1477, %v1393
  %vm1518 = vcmp.eq.s32.totalorder %v1480, %v1393
  %vm1519 = vcmp.eq.s32.totalorder %v1483, %v1393
  %vm1520 = vcmp.eq.s32.totalorder %v1486, %v1393
  %vm1521 = vcmp.eq.s32.totalorder %v1489, %v1393
  %v1522 = vsel %vm1490, 1.0, 0.0
  %v1523 = vsel %vm1491, 1.0, 0.0
  %v1524 = vsel %vm1492, 1.0, 0.0
  %v1525 = vsel %vm1493, 1.0, 0.0
  %v1526 = vsel %vm1494, 1.0, 0.0
  %v1527 = vsel %vm1495, 1.0, 0.0
  %v1528 = vsel %vm1496, 1.0, 0.0
  %v1529 = vsel %vm1497, 1.0, 0.0
  %v1530 = vsel %vm1498, 1.0, 0.0
  %v1531 = vsel %vm1499, 1.0, 0.0
  %v1532 = vsel %vm1500, 1.0, 0.0
  %v1533 = vsel %vm1501, 1.0, 0.0
  %v1534 = vsel %vm1502, 1.0, 0.0
  %v1535 = vsel %vm1503, 1.0, 0.0
  %v1536 = vsel %vm1504, 1.0, 0.0
  %v1537 = vsel %vm1505, 1.0, 0.0
  %v1538 = vsel %vm1506, 1.0, 0.0
  %v1539 = vsel %vm1507, 1.0, 0.0
  %v1540 = vsel %vm1508, 1.0, 0.0
  %v1541 = vsel %vm1509, 1.0, 0.0
  %v1542 = vsel %vm1510, 1.0, 0.0
  %v1543 = vsel %vm1511, 1.0, 0.0
  %v1544 = vsel %vm1512, 1.0, 0.0
  %v1545 = vsel %vm1513, 1.0, 0.0
  %v1546 = vsel %vm1514, 1.0, 0.0
  %v1547 = vsel %vm1515, 1.0, 0.0
  %v1548 = vsel %vm1516, 1.0, 0.0
  %v1549 = vsel %vm1517, 1.0, 0.0
  %v1550 = vsel %vm1518, 1.0, 0.0
  %v1551 = vsel %vm1519, 1.0, 0.0
  %v1552 = vsel %vm1520, 1.0, 0.0
  %v1553 = vsel %vm1521, 1.0, 0.0
  %v1554 = vld [vmem:[%s1] sm:$0xff]
  %v1555 = vld [vmem:[%s1 + $0x8] sm:$0xff]
  %v1556 = vld [vmem:[%s1 + $0x10] sm:$0xff]
  %v1557 = vld [vmem:[%s1 + $0x18] sm:$0xff]
  %v1558 = vld [vmem:[%s1 + $0x20] sm:$0xff]
  %v1559 = vld [vmem:[%s1 + $0x28] sm:$0xff]
  %v1560 = vld [vmem:[%s1 + $0x30] sm:$0xff]
  %v1561 = vld [vmem:[%s1 + $0x38] sm:$0xff]
  %v1562 = vld [vmem:[%s1 + $0x40] sm:$0xff]
  %v1563 = vld [vmem:[%s1 + $0x48] sm:$0xff]
  %v1564 = vld [vmem:[%s1 + $0x50] sm:$0xff]
  %v1565 = vld [vmem:[%s1 + $0x58] sm:$0xff]
  %v1566 = vld [vmem:[%s1 + $0x60] sm:$0xff]
  %v1567 = vld [vmem:[%s1 + $0x68] sm:$0xff]
  %v1568 = vld [vmem:[%s1 + $0x70] sm:$0xff]
  %v1569 = vld [vmem:[%s1 + $0x78] sm:$0xff]
  %v1570 = vld [vmem:[%s1 + $0x80] sm:$0xff]
  %v1571 = vld [vmem:[%s1 + $0x88] sm:$0xff]
  %v1572 = vld [vmem:[%s1 + $0x90] sm:$0xff]
  %v1573 = vld [vmem:[%s1 + $0x98] sm:$0xff]
  %v1574 = vld [vmem:[%s1 + $0xa0] sm:$0xff]
  %v1575 = vld [vmem:[%s1 + $0xa8] sm:$0xff]
  %v1576 = vld [vmem:[%s1 + $0xb0] sm:$0xff]
  %v1577 = vld [vmem:[%s1 + $0xb8] sm:$0xff]
  %v1578 = vld [vmem:[%s1 + $0xc0] sm:$0xff]
  %v1579 = vld [vmem:[%s1 + $0xc8] sm:$0xff]
  %v1580 = vld [vmem:[%s1 + $0xd0] sm:$0xff]
  %v1581 = vld [vmem:[%s1 + $0xd8] sm:$0xff]
  %v1582 = vld [vmem:[%s1 + $0xe0] sm:$0xff]
  %v1583 = vld [vmem:[%s1 + $0xe8] sm:$0xff]
  %v1584 = vld [vmem:[%s1 + $0xf0] sm:$0xff]
  %v1585 = vld [vmem:[%s1 + $0xf8] sm:$0xff]
  %v1586 = vadd.s32 %v1393, 128
  %v1587 = vadd.s32 %v1393, 256
  %1588 = vset.pattern.permute.xlu0 0
  %1589 = vperm.xlu0 %1588, %v1554
  %v1590 = vpop.permute.xlu0 %1589
  %1591 = vset.pattern.permute.xlu0 0
  %1592 = vperm.xlu0 %1591, %v1555
  %v1593 = vpop.permute.xlu0 %1592
  %1594 = vset.pattern.permute.xlu0 0
  %1595 = vperm.xlu0 %1594, %v1556
  %v1596 = vpop.permute.xlu0 %1595
  %1597 = vset.pattern.permute.xlu0 0
  %1598 = vperm.xlu0 %1597, %v1557
  %v1599 = vpop.permute.xlu0 %1598
  %1600 = vset.pattern.permute.xlu0 0
  %1601 = vperm.xlu0 %1600, %v1558
  %v1602 = vpop.permute.xlu0 %1601
  %1603 = vset.pattern.permute.xlu0 0
  %1604 = vperm.xlu0 %1603, %v1559
  %v1605 = vpop.permute.xlu0 %1604
  %1606 = vset.pattern.permute.xlu0 0
  %1607 = vperm.xlu0 %1606, %v1560
  %v1608 = vpop.permute.xlu0 %1607
  %1609 = vset.pattern.permute.xlu0 0
  %1610 = vperm.xlu0 %1609, %v1561
  %v1611 = vpop.permute.xlu0 %1610
  %1612 = vset.pattern.permute.xlu0 0
  %1613 = vperm.xlu0 %1612, %v1562
  %v1614 = vpop.permute.xlu0 %1613
  %1615 = vset.pattern.permute.xlu0 0
  %1616 = vperm.xlu0 %1615, %v1563
  %v1617 = vpop.permute.xlu0 %1616
  %1618 = vset.pattern.permute.xlu0 0
  %1619 = vperm.xlu0 %1618, %v1564
  %v1620 = vpop.permute.xlu0 %1619
  %1621 = vset.pattern.permute.xlu0 0
  %1622 = vperm.xlu0 %1621, %v1565
  %v1623 = vpop.permute.xlu0 %1622
  %1624 = vset.pattern.permute.xlu0 0
  %1625 = vperm.xlu0 %1624, %v1566
  %v1626 = vpop.permute.xlu0 %1625
  %1627 = vset.pattern.permute.xlu0 0
  %1628 = vperm.xlu0 %1627, %v1567
  %v1629 = vpop.permute.xlu0 %1628
  %1630 = vset.pattern.permute.xlu0 0
  %1631 = vperm.xlu0 %1630, %v1568
  %v1632 = vpop.permute.xlu0 %1631
  %1633 = vset.pattern.permute.xlu0 0
  %1634 = vperm.xlu0 %1633, %v1569
  %v1635 = vpop.permute.xlu0 %1634
  %1636 = vset.pattern.permute.xlu0 0
  %1637 = vperm.xlu0 %1636, %v1570
  %v1638 = vpop.permute.xlu0 %1637
  %1639 = vset.pattern.permute.xlu0 0
  %1640 = vperm.xlu0 %1639, %v1571
  %v1641 = vpop.permute.xlu0 %1640
  %1642 = vset.pattern.permute.xlu0 0
  %1643 = vperm.xlu0 %1642, %v1572
  %v1644 = vpop.permute.xlu0 %1643
  %1645 = vset.pattern.permute.xlu0 0
  %1646 = vperm.xlu0 %1645, %v1573
  %v1647 = vpop.permute.xlu0 %1646
  %1648 = vset.pattern.permute.xlu0 0
  %1649 = vperm.xlu0 %1648, %v1574
  %v1650 = vpop.permute.xlu0 %1649
  %1651 = vset.pattern.permute.xlu0 0
  %1652 = vperm.xlu0 %1651, %v1575
  %v1653 = vpop.permute.xlu0 %1652
  %1654 = vset.pattern.permute.xlu0 0
  %1655 = vperm.xlu0 %1654, %v1576
  %v1656 = vpop.permute.xlu0 %1655
  %1657 = vset.pattern.permute.xlu0 0
  %1658 = vperm.xlu0 %1657, %v1577
  %v1659 = vpop.permute.xlu0 %1658
  %1660 = vset.pattern.permute.xlu0 0
  %1661 = vperm.xlu0 %1660, %v1578
  %v1662 = vpop.permute.xlu0 %1661
  %1663 = vset.pattern.permute.xlu0 0
  %1664 = vperm.xlu0 %1663, %v1579
  %v1665 = vpop.permute.xlu0 %1664
  %1666 = vset.pattern.permute.xlu0 0
  %1667 = vperm.xlu0 %1666, %v1580
  %v1668 = vpop.permute.xlu0 %1667
  %1669 = vset.pattern.permute.xlu0 0
  %1670 = vperm.xlu0 %1669, %v1581
  %v1671 = vpop.permute.xlu0 %1670
  %1672 = vset.pattern.permute.xlu0 0
  %1673 = vperm.xlu0 %1672, %v1582
  %v1674 = vpop.permute.xlu0 %1673
  %1675 = vset.pattern.permute.xlu0 0
  %1676 = vperm.xlu0 %1675, %v1583
  %v1677 = vpop.permute.xlu0 %1676
  %1678 = vset.pattern.permute.xlu0 0
  %1679 = vperm.xlu0 %1678, %v1584
  %v1680 = vpop.permute.xlu0 %1679
  %1681 = vset.pattern.permute.xlu0 0
  %1682 = vperm.xlu0 %1681, %v1585
  %v1683 = vpop.permute.xlu0 %1682
  %vm1684 = vcmp.eq.s32.totalorder %v1590, %v1393
  %vm1685 = vcmp.eq.s32.totalorder %v1590, %v1586
  %vm1686 = vcmp.eq.s32.totalorder %v1590, %v1587
  %vm1687 = vcmp.eq.s32.totalorder %v1593, %v1393
  %vm1688 = vcmp.eq.s32.totalorder %v1593, %v1586
  %vm1689 = vcmp.eq.s32.totalorder %v1593, %v1587
  %vm1690 = vcmp.eq.s32.totalorder %v1596, %v1393
  %vm1691 = vcmp.eq.s32.totalorder %v1596, %v1586
  %vm1692 = vcmp.eq.s32.totalorder %v1596, %v1587
  %vm1693 = vcmp.eq.s32.totalorder %v1599, %v1393
  %vm1694 = vcmp.eq.s32.totalorder %v1599, %v1586
  %vm1695 = vcmp.eq.s32.totalorder %v1599, %v1587
  %vm1696 = vcmp.eq.s32.totalorder %v1602, %v1393
  %vm1697 = vcmp.eq.s32.totalorder %v1602, %v1586
  %vm1698 = vcmp.eq.s32.totalorder %v1602, %v1587
  %vm1699 = vcmp.eq.s32.totalorder %v1605, %v1393
  %vm1700 = vcmp.eq.s32.totalorder %v1605, %v1586
  %vm1701 = vcmp.eq.s32.totalorder %v1605, %v1587
  %vm1702 = vcmp.eq.s32.totalorder %v1608, %v1393
  %vm1703 = vcmp.eq.s32.totalorder %v1608, %v1586
  %vm1704 = vcmp.eq.s32.totalorder %v1608, %v1587
  %vm1705 = vcmp.eq.s32.totalorder %v1611, %v1393
  %vm1706 = vcmp.eq.s32.totalorder %v1611, %v1586
  %vm1707 = vcmp.eq.s32.totalorder %v1611, %v1587
  %vm1708 = vcmp.eq.s32.totalorder %v1614, %v1393
  %vm1709 = vcmp.eq.s32.totalorder %v1614, %v1586
  %vm1710 = vcmp.eq.s32.totalorder %v1614, %v1587
  %vm1711 = vcmp.eq.s32.totalorder %v1617, %v1393
  %vm1712 = vcmp.eq.s32.totalorder %v1617, %v1586
  %vm1713 = vcmp.eq.s32.totalorder %v1617, %v1587
  %vm1714 = vcmp.eq.s32.totalorder %v1620, %v1393
  %vm1715 = vcmp.eq.s32.totalorder %v1620, %v1586
  %vm1716 = vcmp.eq.s32.totalorder %v1620, %v1587
  %vm1717 = vcmp.eq.s32.totalorder %v1623, %v1393
  %vm1718 = vcmp.eq.s32.totalorder %v1623, %v1586
  %vm1719 = vcmp.eq.s32.totalorder %v1623, %v1587
  %vm1720 = vcmp.eq.s32.totalorder %v1626, %v1393
  %vm1721 = vcmp.eq.s32.totalorder %v1626, %v1586
  %vm1722 = vcmp.eq.s32.totalorder %v1626, %v1587
  %vm1723 = vcmp.eq.s32.totalorder %v1629, %v1393
  %vm1724 = vcmp.eq.s32.totalorder %v1629, %v1586
  %vm1725 = vcmp.eq.s32.totalorder %v1629, %v1587
  %vm1726 = vcmp.eq.s32.totalorder %v1632, %v1393
  %vm1727 = vcmp.eq.s32.totalorder %v1632, %v1586
  %vm1728 = vcmp.eq.s32.totalorder %v1632, %v1587
  %vm1729 = vcmp.eq.s32.totalorder %v1635, %v1393
  %vm1730 = vcmp.eq.s32.totalorder %v1635, %v1586
  %vm1731 = vcmp.eq.s32.totalorder %v1635, %v1587
  %vm1732 = vcmp.eq.s32.totalorder %v1638, %v1393
  %vm1733 = vcmp.eq.s32.totalorder %v1638, %v1586
  %vm1734 = vcmp.eq.s32.totalorder %v1638, %v1587
  %vm1735 = vcmp.eq.s32.totalorder %v1641, %v1393
  %vm1736 = vcmp.eq.s32.totalorder %v1641, %v1586
  %vm1737 = vcmp.eq.s32.totalorder %v1641, %v1587
  %vm1738 = vcmp.eq.s32.totalorder %v1644, %v1393
  %vm1739 = vcmp.eq.s32.totalorder %v1644, %v1586
  %vm1740 = vcmp.eq.s32.totalorder %v1644, %v1587
  %vm1741 = vcmp.eq.s32.totalorder %v1647, %v1393
  %vm1742 = vcmp.eq.s32.totalorder %v1647, %v1586
  %vm1743 = vcmp.eq.s32.totalorder %v1647, %v1587
  %vm1744 = vcmp.eq.s32.totalorder %v1650, %v1393
  %vm1745 = vcmp.eq.s32.totalorder %v1650, %v1586
  %vm1746 = vcmp.eq.s32.totalorder %v1650, %v1587
  %vm1747 = vcmp.eq.s32.totalorder %v1653, %v1393
  %vm1748 = vcmp.eq.s32.totalorder %v1653, %v1586
  %vm1749 = vcmp.eq.s32.totalorder %v1653, %v1587
  %vm1750 = vcmp.eq.s32.totalorder %v1656, %v1393
  %vm1751 = vcmp.eq.s32.totalorder %v1656, %v1586
  %vm1752 = vcmp.eq.s32.totalorder %v1656, %v1587
  %vm1753 = vcmp.eq.s32.totalorder %v1659, %v1393
  %vm1754 = vcmp.eq.s32.totalorder %v1659, %v1586
  %vm1755 = vcmp.eq.s32.totalorder %v1659, %v1587
  %vm1756 = vcmp.eq.s32.totalorder %v1662, %v1393
  %vm1757 = vcmp.eq.s32.totalorder %v1662, %v1586
  %vm1758 = vcmp.eq.s32.totalorder %v1662, %v1587
  %vm1759 = vcmp.eq.s32.totalorder %v1665, %v1393
  %vm1760 = vcmp.eq.s32.totalorder %v1665, %v1586
  %vm1761 = vcmp.eq.s32.totalorder %v1665, %v1587
  %vm1762 = vcmp.eq.s32.totalorder %v1668, %v1393
  %vm1763 = vcmp.eq.s32.totalorder %v1668, %v1586
  %vm1764 = vcmp.eq.s32.totalorder %v1668, %v1587
  %vm1765 = vcmp.eq.s32.totalorder %v1671, %v1393
  %vm1766 = vcmp.eq.s32.totalorder %v1671, %v1586
  %vm1767 = vcmp.eq.s32.totalorder %v1671, %v1587
  %vm1768 = vcmp.eq.s32.totalorder %v1674, %v1393
  %vm1769 = vcmp.eq.s32.totalorder %v1674, %v1586
  %vm1770 = vcmp.eq.s32.totalorder %v1674, %v1587
  %vm1771 = vcmp.eq.s32.totalorder %v1677, %v1393
  %vm1772 = vcmp.eq.s32.totalorder %v1677, %v1586
  %vm1773 = vcmp.eq.s32.totalorder %v1677, %v1587
  %vm1774 = vcmp.eq.s32.totalorder %v1680, %v1393
  %vm1775 = vcmp.eq.s32.totalorder %v1680, %v1586
  %vm1776 = vcmp.eq.s32.totalorder %v1680, %v1587
  %vm1777 = vcmp.eq.s32.totalorder %v1683, %v1393
  %vm1778 = vcmp.eq.s32.totalorder %v1683, %v1586
  %vm1779 = vcmp.eq.s32.totalorder %v1683, %v1587
  %v1780 = vsel %vm1684, 1.0, 0.0
  %v1781 = vsel %vm1685, 1.0, 0.0
  %v1782 = vsel %vm1686, 1.0, 0.0
  %v1783 = vsel %vm1687, 1.0, 0.0
  %v1784 = vsel %vm1688, 1.0, 0.0
  %v1785 = vsel %vm1689, 1.0, 0.0
  %v1786 = vsel %vm1690, 1.0, 0.0
  %v1787 = vsel %vm1691, 1.0, 0.0
  %v1788 = vsel %vm1692, 1.0, 0.0
  %v1789 = vsel %vm1693, 1.0, 0.0
  %v1790 = vsel %vm1694, 1.0, 0.0
  %v1791 = vsel %vm1695, 1.0, 0.0
  %v1792 = vsel %vm1696, 1.0, 0.0
  %v1793 = vsel %vm1697, 1.0, 0.0
  %v1794 = vsel %vm1698, 1.0, 0.0
  %v1795 = vsel %vm1699, 1.0, 0.0
  %v1796 = vsel %vm1700, 1.0, 0.0
  %v1797 = vsel %vm1701, 1.0, 0.0
  %v1798 = vsel %vm1702, 1.0, 0.0
  %v1799 = vsel %vm1703, 1.0, 0.0
  %v1800 = vsel %vm1704, 1.0, 0.0
  %v1801 = vsel %vm1705, 1.0, 0.0
  %v1802 = vsel %vm1706, 1.0, 0.0
  %v1803 = vsel %vm1707, 1.0, 0.0
  %v1804 = vsel %vm1708, 1.0, 0.0
  %v1805 = vsel %vm1709, 1.0, 0.0
  %v1806 = vsel %vm1710, 1.0, 0.0
  %v1807 = vsel %vm1711, 1.0, 0.0
  %v1808 = vsel %vm1712, 1.0, 0.0
  %v1809 = vsel %vm1713, 1.0, 0.0
  %v1810 = vsel %vm1714, 1.0, 0.0
  %v1811 = vsel %vm1715, 1.0, 0.0
  %v1812 = vsel %vm1716, 1.0, 0.0
  %v1813 = vsel %vm1717, 1.0, 0.0
  %v1814 = vsel %vm1718, 1.0, 0.0
  %v1815 = vsel %vm1719, 1.0, 0.0
  %v1816 = vsel %vm1720, 1.0, 0.0
  %v1817 = vsel %vm1721, 1.0, 0.0
  %v1818 = vsel %vm1722, 1.0, 0.0
  %v1819 = vsel %vm1723, 1.0, 0.0
  %v1820 = vsel %vm1724, 1.0, 0.0
  %v1821 = vsel %vm1725, 1.0, 0.0
  %v1822 = vsel %vm1726, 1.0, 0.0
  %v1823 = vsel %vm1727, 1.0, 0.0
  %v1824 = vsel %vm1728, 1.0, 0.0
  %v1825 = vsel %vm1729, 1.0, 0.0
  %v1826 = vsel %vm1730, 1.0, 0.0
  %v1827 = vsel %vm1731, 1.0, 0.0
  %v1828 = vsel %vm1732, 1.0, 0.0
  %v1829 = vsel %vm1733, 1.0, 0.0
  %v1830 = vsel %vm1734, 1.0, 0.0
  %v1831 = vsel %vm1735, 1.0, 0.0
  %v1832 = vsel %vm1736, 1.0, 0.0
  %v1833 = vsel %vm1737, 1.0, 0.0
  %v1834 = vsel %vm1738, 1.0, 0.0
  %v1835 = vsel %vm1739, 1.0, 0.0
  %v1836 = vsel %vm1740, 1.0, 0.0
  %v1837 = vsel %vm1741, 1.0, 0.0
  %v1838 = vsel %vm1742, 1.0, 0.0
  %v1839 = vsel %vm1743, 1.0, 0.0
  %v1840 = vsel %vm1744, 1.0, 0.0
  %v1841 = vsel %vm1745, 1.0, 0.0
  %v1842 = vsel %vm1746, 1.0, 0.0
  %v1843 = vsel %vm1747, 1.0, 0.0
  %v1844 = vsel %vm1748, 1.0, 0.0
  %v1845 = vsel %vm1749, 1.0, 0.0
  %v1846 = vsel %vm1750, 1.0, 0.0
  %v1847 = vsel %vm1751, 1.0, 0.0
  %v1848 = vsel %vm1752, 1.0, 0.0
  %v1849 = vsel %vm1753, 1.0, 0.0
  %v1850 = vsel %vm1754, 1.0, 0.0
  %v1851 = vsel %vm1755, 1.0, 0.0
  %v1852 = vsel %vm1756, 1.0, 0.0
  %v1853 = vsel %vm1757, 1.0, 0.0
  %v1854 = vsel %vm1758, 1.0, 0.0
  %v1855 = vsel %vm1759, 1.0, 0.0
  %v1856 = vsel %vm1760, 1.0, 0.0
  %v1857 = vsel %vm1761, 1.0, 0.0
  %v1858 = vsel %vm1762, 1.0, 0.0
  %v1859 = vsel %vm1763, 1.0, 0.0
  %v1860 = vsel %vm1764, 1.0, 0.0
  %v1861 = vsel %vm1765, 1.0, 0.0
  %v1862 = vsel %vm1766, 1.0, 0.0
  %v1863 = vsel %vm1767, 1.0, 0.0
  %v1864 = vsel %vm1768, 1.0, 0.0
  %v1865 = vsel %vm1769, 1.0, 0.0
  %v1866 = vsel %vm1770, 1.0, 0.0
  %v1867 = vsel %vm1771, 1.0, 0.0
  %v1868 = vsel %vm1772, 1.0, 0.0
  %v1869 = vsel %vm1773, 1.0, 0.0
  %v1870 = vsel %vm1774, 1.0, 0.0
  %v1871 = vsel %vm1775, 1.0, 0.0
  %v1872 = vsel %vm1776, 1.0, 0.0
  %v1873 = vsel %vm1777, 1.0, 0.0
  %v1874 = vsel %vm1778, 1.0, 0.0
  %v1875 = vsel %vm1779, 1.0, 0.0
  %1876 = vmatprep.subr.mxu0 0.0
  %1877 = vmatpush1.msra.mxu0 %v1124
  %1878 = vmatprep.subr.mxu0 0.0
  %1879 = vmatpush1.msra.mxu0 %v1121
  %1880 = vmatprep.subr.mxu0 0.0
  %1881 = vmatpush1.msra.mxu0 %v1116
  %1882 = vmatprep.subr.mxu0 0.0
  %1883 = vmatpush1.msra.mxu0 %v1113
  %1884 = vmatprep.subr.mxu0 0.0
  %1885 = vmatpush1.msra.mxu0 %v1108
  %1886 = vmatprep.subr.mxu0 0.0
  %1887 = vmatpush1.msra.mxu0 %v1105
  %1888 = vmatprep.subr.mxu0 0.0
  %1889 = vmatpush1.msra.mxu0 %v1100
  %1890 = vmatprep.subr.mxu0 0.0
  %1891 = vmatpush1.msra.mxu0 %v1097
  %1892 = vmatprep.subr.mxu0 0.0
  %1893 = vmatpush1.msra.mxu0 %v1092
  %1894 = vmatprep.subr.mxu0 0.0
  %1895 = vmatpush1.msra.mxu0 %v1089
  %1896 = vmatprep.subr.mxu0 0.0
  %1897 = vmatpush1.msra.mxu0 %v1084
  %1898 = vmatprep.subr.mxu0 0.0
  %1899 = vmatpush1.msra.mxu0 %v1081
  %1900 = vmatprep.subr.mxu0 0.0
  %1901 = vmatpush1.msra.mxu0 %v1076
  %1902 = vmatprep.subr.mxu0 0.0
  %1903 = vmatpush1.msra.mxu0 %v1073
  %1904 = vmatprep.subr.mxu0 0.0
  %1905 = vmatpush1.msra.mxu0 %v1068
  %1906 = vmatprep.subr.mxu0 0.0
  %1907 = vmatpush1.msra.mxu0 %v1065
  %1908 = vmatprep.subr.mxu0 0.0
  %1909 = vmatpush2.msra.mxu0 0.0
  %1910 = vmatprep.subr.mxu0 0.0
  %1911 = vmatpush2.msra.mxu0 0.0
  %1912 = vmatprep.subr.mxu0 0.0
  %1913 = vmatpush2.msra.mxu0 0.0
  %1914 = vmatprep.subr.mxu0 0.0
  %1915 = vmatpush2.msra.mxu0 0.0
  %1916 = vmatprep.subr.mxu0 0.0
  %1917 = vmatpush2.msra.mxu0 0.0
  %1918 = vmatprep.subr.mxu0 0.0
  %1919 = vmatpush2.msra.mxu0 0.0
  %1920 = vmatprep.subr.mxu0 0.0
  %1921 = vmatpush2.msra.mxu0 0.0
  %1922 = vmatprep.subr.mxu0 0.0
  %1923 = vmatpush2.msra.mxu0 0.0
  %1924 = vmatprep.subr.mxu0 0.0
  %1925 = vmatpush2.msra.mxu0 0.0
  %1926 = vmatprep.subr.mxu0 0.0
  %1927 = vmatpush2.msra.mxu0 0.0
  %1928 = vmatprep.subr.mxu0 0.0
  %1929 = vmatpush2.msra.mxu0 0.0
  %1930 = vmatprep.subr.mxu0 0.0
  %1931 = vmatpush2.msra.mxu0 0.0
  %1932 = vmatprep.subr.mxu0 0.0
  %1933 = vmatpush2.msra.mxu0 0.0
  %1934 = vmatprep.subr.mxu0 0.0
  %1935 = vmatpush2.msra.mxu0 0.0
  %1936 = vmatprep.subr.mxu0 0.0
  %1937 = vmatpush2.msra.mxu0 0.0
  %1938 = vmatprep.subr.mxu0 0.0
  %1939 = vmatpush2.msra.mxu0 0.0
  %1940 = vmatprep.mubr.f32.mxu0 0.0
  %1941 = vmatmul.mubr.f32.gmra.mxu0 %v1522
  %v1942 = vpop.f32.mrf.mxu0
  %v1943 = vadd.f32 0.0, %v1942
  %v1944 = vpop.f32.mrf.mxu0
  %1945 = vmatprep.mubr.f32.mxu0 0.0
  %1946 = vmatmul.mubr.f32.gmra.mxu0 %v1523
  %v1947 = vpop.f32.mrf.mxu0
  %v1948 = vadd.f32 0.0, %v1947
  %v1949 = vpop.f32.mrf.mxu0
  %1950 = vmatprep.mubr.f32.mxu0 0.0
  %1951 = vmatmul.mubr.f32.gmra.mxu0 %v1524
  %v1952 = vpop.f32.mrf.mxu0
  %v1953 = vadd.f32 0.0, %v1952
  %v1954 = vpop.f32.mrf.mxu0
  %1955 = vmatprep.mubr.f32.mxu0 0.0
  %1956 = vmatmul.mubr.f32.gmra.mxu0 %v1525
  %v1957 = vpop.f32.mrf.mxu0
  %v1958 = vadd.f32 0.0, %v1957
  %v1959 = vpop.f32.mrf.mxu0
  %1960 = vmatprep.mubr.f32.mxu0 0.0
  %1961 = vmatmul.mubr.f32.gmra.mxu0 %v1526
  %v1962 = vpop.f32.mrf.mxu0
  %v1963 = vadd.f32 0.0, %v1962
  %v1964 = vpop.f32.mrf.mxu0
  %1965 = vmatprep.mubr.f32.mxu0 0.0
  %1966 = vmatmul.mubr.f32.gmra.mxu0 %v1527
  %v1967 = vpop.f32.mrf.mxu0
  %v1968 = vadd.f32 0.0, %v1967
  %v1969 = vpop.f32.mrf.mxu0
  %1970 = vmatprep.mubr.f32.mxu0 0.0
  %1971 = vmatmul.mubr.f32.gmra.mxu0 %v1528
  %v1972 = vpop.f32.mrf.mxu0
  %v1973 = vadd.f32 0.0, %v1972
  %v1974 = vpop.f32.mrf.mxu0
  %1975 = vmatprep.mubr.f32.mxu0 0.0
  %1976 = vmatmul.mubr.f32.gmra.mxu0 %v1529
  %v1977 = vpop.f32.mrf.mxu0
  %v1978 = vadd.f32 0.0, %v1977
  %v1979 = vpop.f32.mrf.mxu0
  %1980 = vmatprep.mubr.f32.mxu0 0.0
  %1981 = vmatmul.mubr.f32.gmra.mxu0 %v1530
  %v1982 = vpop.f32.mrf.mxu0
  %v1983 = vadd.f32 0.0, %v1982
  %v1984 = vpop.f32.mrf.mxu0
  %1985 = vmatprep.mubr.f32.mxu0 0.0
  %1986 = vmatmul.mubr.f32.gmra.mxu0 %v1531
  %v1987 = vpop.f32.mrf.mxu0
  %v1988 = vadd.f32 0.0, %v1987
  %v1989 = vpop.f32.mrf.mxu0
  %1990 = vmatprep.mubr.f32.mxu0 0.0
  %1991 = vmatmul.mubr.f32.gmra.mxu0 %v1532
  %v1992 = vpop.f32.mrf.mxu0
  %v1993 = vadd.f32 0.0, %v1992
  %v1994 = vpop.f32.mrf.mxu0
  %1995 = vmatprep.mubr.f32.mxu0 0.0
  %1996 = vmatmul.mubr.f32.gmra.mxu0 %v1533
  %v1997 = vpop.f32.mrf.mxu0
  %v1998 = vadd.f32 0.0, %v1997
  %v1999 = vpop.f32.mrf.mxu0
  %2000 = vmatprep.mubr.f32.mxu0 0.0
  %2001 = vmatmul.mubr.f32.gmra.mxu0 %v1534
  %v2002 = vpop.f32.mrf.mxu0
  %v2003 = vadd.f32 0.0, %v2002
  %v2004 = vpop.f32.mrf.mxu0
  %2005 = vmatprep.mubr.f32.mxu0 0.0
  %2006 = vmatmul.mubr.f32.gmra.mxu0 %v1535
  %v2007 = vpop.f32.mrf.mxu0
  %v2008 = vadd.f32 0.0, %v2007
  %v2009 = vpop.f32.mrf.mxu0
  %2010 = vmatprep.mubr.f32.mxu0 0.0
  %2011 = vmatmul.mubr.f32.gmra.mxu0 %v1536
  %v2012 = vpop.f32.mrf.mxu0
  %v2013 = vadd.f32 0.0, %v2012
  %v2014 = vpop.f32.mrf.mxu0
  %2015 = vmatprep.mubr.f32.mxu0 0.0
  %2016 = vmatmul.mubr.f32.gmra.mxu0 %v1537
  %v2017 = vpop.f32.mrf.mxu0
  %v2018 = vadd.f32 0.0, %v2017
  %v2019 = vpop.f32.mrf.mxu0
  %2020 = vmatprep.mubr.f32.mxu0 0.0
  %2021 = vmatmul.mubr.f32.gmra.mxu0 %v1538
  %v2022 = vpop.f32.mrf.mxu0
  %v2023 = vadd.f32 0.0, %v2022
  %v2024 = vpop.f32.mrf.mxu0
  %2025 = vmatprep.mubr.f32.mxu0 0.0
  %2026 = vmatmul.mubr.f32.gmra.mxu0 %v1539
  %v2027 = vpop.f32.mrf.mxu0
  %v2028 = vadd.f32 0.0, %v2027
  %v2029 = vpop.f32.mrf.mxu0
  %2030 = vmatprep.mubr.f32.mxu0 0.0
  %2031 = vmatmul.mubr.f32.gmra.mxu0 %v1540
  %v2032 = vpop.f32.mrf.mxu0
  %v2033 = vadd.f32 0.0, %v2032
  %v2034 = vpop.f32.mrf.mxu0
  %2035 = vmatprep.mubr.f32.mxu0 0.0
  %2036 = vmatmul.mubr.f32.gmra.mxu0 %v1541
  %v2037 = vpop.f32.mrf.mxu0
  %v2038 = vadd.f32 0.0, %v2037
  %v2039 = vpop.f32.mrf.mxu0
  %2040 = vmatprep.mubr.f32.mxu0 0.0
  %2041 = vmatmul.mubr.f32.gmra.mxu0 %v1542
  %v2042 = vpop.f32.mrf.mxu0
  %v2043 = vadd.f32 0.0, %v2042
  %v2044 = vpop.f32.mrf.mxu0
  %2045 = vmatprep.mubr.f32.mxu0 0.0
  %2046 = vmatmul.mubr.f32.gmra.mxu0 %v1543
  %v2047 = vpop.f32.mrf.mxu0
  %v2048 = vadd.f32 0.0, %v2047
  %v2049 = vpop.f32.mrf.mxu0
  %2050 = vmatprep.mubr.f32.mxu0 0.0
  %2051 = vmatmul.mubr.f32.gmra.mxu0 %v1544
  %v2052 = vpop.f32.mrf.mxu0
  %v2053 = vadd.f32 0.0, %v2052
  %v2054 = vpop.f32.mrf.mxu0
  %2055 = vmatprep.mubr.f32.mxu0 0.0
  %2056 = vmatmul.mubr.f32.gmra.mxu0 %v1545
  %v2057 = vpop.f32.mrf.mxu0
  %v2058 = vadd.f32 0.0, %v2057
  %v2059 = vpop.f32.mrf.mxu0
  %2060 = vmatprep.mubr.f32.mxu0 0.0
  %2061 = vmatmul.mubr.f32.gmra.mxu0 %v1546
  %v2062 = vpop.f32.mrf.mxu0
  %v2063 = vadd.f32 0.0, %v2062
  %v2064 = vpop.f32.mrf.mxu0
  %2065 = vmatprep.mubr.f32.mxu0 0.0
  %2066 = vmatmul.mubr.f32.gmra.mxu0 %v1547
  %v2067 = vpop.f32.mrf.mxu0
  %v2068 = vadd.f32 0.0, %v2067
  %v2069 = vpop.f32.mrf.mxu0
  %2070 = vmatprep.mubr.f32.mxu0 0.0
  %2071 = vmatmul.mubr.f32.gmra.mxu0 %v1548
  %v2072 = vpop.f32.mrf.mxu0
  %v2073 = vadd.f32 0.0, %v2072
  %v2074 = vpop.f32.mrf.mxu0
  %2075 = vmatprep.mubr.f32.mxu0 0.0
  %2076 = vmatmul.mubr.f32.gmra.mxu0 %v1549
  %v2077 = vpop.f32.mrf.mxu0
  %v2078 = vadd.f32 0.0, %v2077
  %v2079 = vpop.f32.mrf.mxu0
  %2080 = vmatprep.mubr.f32.mxu0 0.0
  %2081 = vmatmul.mubr.f32.gmra.mxu0 %v1550
  %v2082 = vpop.f32.mrf.mxu0
  %v2083 = vadd.f32 0.0, %v2082
  %v2084 = vpop.f32.mrf.mxu0
  %2085 = vmatprep.mubr.f32.mxu0 0.0
  %2086 = vmatmul.mubr.f32.gmra.mxu0 %v1551
  %v2087 = vpop.f32.mrf.mxu0
  %v2088 = vadd.f32 0.0, %v2087
  %v2089 = vpop.f32.mrf.mxu0
  %2090 = vmatprep.mubr.f32.mxu0 0.0
  %2091 = vmatmul.mubr.f32.gmra.mxu0 %v1552
  %v2092 = vpop.f32.mrf.mxu0
  %v2093 = vadd.f32 0.0, %v2092
  %v2094 = vpop.f32.mrf.mxu0
  %2095 = vmatprep.mubr.f32.mxu0 0.0
  %2096 = vmatmul.mubr.f32.gmra.mxu0 %v1553
  %v2097 = vpop.f32.mrf.mxu0
  %v2098 = vadd.f32 0.0, %v2097
  %v2099 = vpop.f32.mrf.mxu0
  %2100 = vdwg.mxu0
  %2101 = vmatprep.subr.mxu0 0.0
  %2102 = vmatpush1.msra.mxu0 %v1229
  %2103 = vmatprep.subr.mxu0 0.0
  %2104 = vmatpush1.msra.mxu0 %v1226
  %2105 = vmatprep.subr.mxu0 0.0
  %2106 = vmatpush1.msra.mxu0 %v1221
  %2107 = vmatprep.subr.mxu0 0.0
  %2108 = vmatpush1.msra.mxu0 %v1218
  %2109 = vmatprep.subr.mxu0 0.0
  %2110 = vmatpush1.msra.mxu0 %v1213
  %2111 = vmatprep.subr.mxu0 0.0
  %2112 = vmatpush1.msra.mxu0 %v1210
  %2113 = vmatprep.subr.mxu0 0.0
  %2114 = vmatpush1.msra.mxu0 %v1205
  %2115 = vmatprep.subr.mxu0 0.0
  %2116 = vmatpush1.msra.mxu0 %v1202
  %2117 = vmatprep.subr.mxu0 0.0
  %2118 = vmatpush1.msra.mxu0 %v1197
  %2119 = vmatprep.subr.mxu0 0.0
  %2120 = vmatpush1.msra.mxu0 %v1194
  %2121 = vmatprep.subr.mxu0 0.0
  %2122 = vmatpush1.msra.mxu0 %v1189
  %2123 = vmatprep.subr.mxu0 0.0
  %2124 = vmatpush1.msra.mxu0 %v1186
  %2125 = vmatprep.subr.mxu0 0.0
  %2126 = vmatpush1.msra.mxu0 %v1181
  %2127 = vmatprep.subr.mxu0 0.0
  %2128 = vmatpush1.msra.mxu0 %v1178
  %2129 = vmatprep.subr.mxu0 0.0
  %2130 = vmatpush1.msra.mxu0 %v1173
  %2131 = vmatprep.subr.mxu0 0.0
  %2132 = vmatpush1.msra.mxu0 %v1170
  %2133 = vmatprep.subr.mxu0 0.0
  %2134 = vmatpush2.msra.mxu0 %v1293
  %2135 = vmatprep.subr.mxu0 0.0
  %2136 = vmatpush2.msra.mxu0 %v1290
  %2137 = vmatprep.subr.mxu0 0.0
  %2138 = vmatpush2.msra.mxu0 %v1285
  %2139 = vmatprep.subr.mxu0 0.0
  %2140 = vmatpush2.msra.mxu0 %v1282
  %2141 = vmatprep.subr.mxu0 0.0
  %2142 = vmatpush2.msra.mxu0 %v1277
  %2143 = vmatprep.subr.mxu0 0.0
  %2144 = vmatpush2.msra.mxu0 %v1274
  %2145 = vmatprep.subr.mxu0 0.0
  %2146 = vmatpush2.msra.mxu0 %v1269
  %2147 = vmatprep.subr.mxu0 0.0
  %2148 = vmatpush2.msra.mxu0 %v1266
  %2149 = vmatprep.subr.mxu0 0.0
  %2150 = vmatpush2.msra.mxu0 %v1261
  %2151 = vmatprep.subr.mxu0 0.0
  %2152 = vmatpush2.msra.mxu0 %v1258
  %2153 = vmatprep.subr.mxu0 0.0
  %2154 = vmatpush2.msra.mxu0 %v1253
  %2155 = vmatprep.subr.mxu0 0.0
  %2156 = vmatpush2.msra.mxu0 %v1250
  %2157 = vmatprep.subr.mxu0 0.0
  %2158 = vmatpush2.msra.mxu0 %v1245
  %2159 = vmatprep.subr.mxu0 0.0
  %2160 = vmatpush2.msra.mxu0 %v1242
  %2161 = vmatprep.subr.mxu0 0.0
  %2162 = vmatpush2.msra.mxu0 %v1237
  %2163 = vmatprep.subr.mxu0 0.0
  %2164 = vmatpush2.msra.mxu0 %v1234
  %2165 = vmatprep.mubr.f32.mxu0 %v1781
  %2166 = vmatmul.mubr.f32.gmra.mxu0 %v1780
  %v2167 = vpop.f32.mrf.mxu0
  %v2168 = vadd.f32 0.0, %v2167
  %v2169 = vpop.f32.mrf.mxu0
  %2170 = vmatprep.mubr.f32.mxu0 %v1784
  %2171 = vmatmul.mubr.f32.gmra.mxu0 %v1783
  %v2172 = vpop.f32.mrf.mxu0
  %v2173 = vadd.f32 0.0, %v2172
  %v2174 = vpop.f32.mrf.mxu0
  %2175 = vmatprep.mubr.f32.mxu0 %v1787
  %2176 = vmatmul.mubr.f32.gmra.mxu0 %v1786
  %v2177 = vpop.f32.mrf.mxu0
  %v2178 = vadd.f32 0.0, %v2177
  %v2179 = vpop.f32.mrf.mxu0
  %2180 = vmatprep.mubr.f32.mxu0 %v1790
  %2181 = vmatmul.mubr.f32.gmra.mxu0 %v1789
  %v2182 = vpop.f32.mrf.mxu0
  %v2183 = vadd.f32 0.0, %v2182
  %v2184 = vpop.f32.mrf.mxu0
  %2185 = vmatprep.mubr.f32.mxu0 %v1793
  %2186 = vmatmul.mubr.f32.gmra.mxu0 %v1792
  %v2187 = vpop.f32.mrf.mxu0
  %v2188 = vadd.f32 0.0, %v2187
  %v2189 = vpop.f32.mrf.mxu0
  %2190 = vmatprep.mubr.f32.mxu0 %v1796
  %2191 = vmatmul.mubr.f32.gmra.mxu0 %v1795
  %v2192 = vpop.f32.mrf.mxu0
  %v2193 = vadd.f32 0.0, %v2192
  %v2194 = vpop.f32.mrf.mxu0
  %2195 = vmatprep.mubr.f32.mxu0 %v1799
  %2196 = vmatmul.mubr.f32.gmra.mxu0 %v1798
  %v2197 = vpop.f32.mrf.mxu0
  %v2198 = vadd.f32 0.0, %v2197
  %v2199 = vpop.f32.mrf.mxu0
  %2200 = vmatprep.mubr.f32.mxu0 %v1802
  %2201 = vmatmul.mubr.f32.gmra.mxu0 %v1801
  %v2202 = vpop.f32.mrf.mxu0
  %v2203 = vadd.f32 0.0, %v2202
  %v2204 = vpop.f32.mrf.mxu0
  %2205 = vmatprep.mubr.f32.mxu0 %v1805
  %2206 = vmatmul.mubr.f32.gmra.mxu0 %v1804
  %v2207 = vpop.f32.mrf.mxu0
  %v2208 = vadd.f32 0.0, %v2207
  %v2209 = vpop.f32.mrf.mxu0
  %2210 = vmatprep.mubr.f32.mxu0 %v1808
  %2211 = vmatmul.mubr.f32.gmra.mxu0 %v1807
  %v2212 = vpop.f32.mrf.mxu0
  %v2213 = vadd.f32 0.0, %v2212
  %v2214 = vpop.f32.mrf.mxu0
  %2215 = vmatprep.mubr.f32.mxu0 %v1811
  %2216 = vmatmul.mubr.f32.gmra.mxu0 %v1810
  %v2217 = vpop.f32.mrf.mxu0
  %v2218 = vadd.f32 0.0, %v2217
  %v2219 = vpop.f32.mrf.mxu0
  %2220 = vmatprep.mubr.f32.mxu0 %v1814
  %2221 = vmatmul.mubr.f32.gmra.mxu0 %v1813
  %v2222 = vpop.f32.mrf.mxu0
  %v2223 = vadd.f32 0.0, %v2222
  %v2224 = vpop.f32.mrf.mxu0
  %2225 = vmatprep.mubr.f32.mxu0 %v1817
  %2226 = vmatmul.mubr.f32.gmra.mxu0 %v1816
  %v2227 = vpop.f32.mrf.mxu0
  %v2228 = vadd.f32 0.0, %v2227
  %v2229 = vpop.f32.mrf.mxu0
  %2230 = vmatprep.mubr.f32.mxu0 %v1820
  %2231 = vmatmul.mubr.f32.gmra.mxu0 %v1819
  %v2232 = vpop.f32.mrf.mxu0
  %v2233 = vadd.f32 0.0, %v2232
  %v2234 = vpop.f32.mrf.mxu0
  %2235 = vmatprep.mubr.f32.mxu0 %v1823
  %2236 = vmatmul.mubr.f32.gmra.mxu0 %v1822
  %v2237 = vpop.f32.mrf.mxu0
  %v2238 = vadd.f32 0.0, %v2237
  %v2239 = vpop.f32.mrf.mxu0
  %2240 = vmatprep.mubr.f32.mxu0 %v1826
  %2241 = vmatmul.mubr.f32.gmra.mxu0 %v1825
  %v2242 = vpop.f32.mrf.mxu0
  %v2243 = vadd.f32 0.0, %v2242
  %v2244 = vpop.f32.mrf.mxu0
  %2245 = vmatprep.mubr.f32.mxu0 %v1829
  %2246 = vmatmul.mubr.f32.gmra.mxu0 %v1828
  %v2247 = vpop.f32.mrf.mxu0
  %v2248 = vadd.f32 0.0, %v2247
  %v2249 = vpop.f32.mrf.mxu0
  %2250 = vmatprep.mubr.f32.mxu0 %v1832
  %2251 = vmatmul.mubr.f32.gmra.mxu0 %v1831
  %v2252 = vpop.f32.mrf.mxu0
  %v2253 = vadd.f32 0.0, %v2252
  %v2254 = vpop.f32.mrf.mxu0
  %2255 = vmatprep.mubr.f32.mxu0 %v1835
  %2256 = vmatmul.mubr.f32.gmra.mxu0 %v1834
  %v2257 = vpop.f32.mrf.mxu0
  %v2258 = vadd.f32 0.0, %v2257
  %v2259 = vpop.f32.mrf.mxu0
  %2260 = vmatprep.mubr.f32.mxu0 %v1838
  %2261 = vmatmul.mubr.f32.gmra.mxu0 %v1837
  %v2262 = vpop.f32.mrf.mxu0
  %v2263 = vadd.f32 0.0, %v2262
  %v2264 = vpop.f32.mrf.mxu0
  %2265 = vmatprep.mubr.f32.mxu0 %v1841
  %2266 = vmatmul.mubr.f32.gmra.mxu0 %v1840
  %v2267 = vpop.f32.mrf.mxu0
  %v2268 = vadd.f32 0.0, %v2267
  %v2269 = vpop.f32.mrf.mxu0
  %2270 = vmatprep.mubr.f32.mxu0 %v1844
  %2271 = vmatmul.mubr.f32.gmra.mxu0 %v1843
  %v2272 = vpop.f32.mrf.mxu0
  %v2273 = vadd.f32 0.0, %v2272
  %v2274 = vpop.f32.mrf.mxu0
  %2275 = vmatprep.mubr.f32.mxu0 %v1847
  %2276 = vmatmul.mubr.f32.gmra.mxu0 %v1846
  %v2277 = vpop.f32.mrf.mxu0
  %v2278 = vadd.f32 0.0, %v2277
  %v2279 = vpop.f32.mrf.mxu0
  %2280 = vmatprep.mubr.f32.mxu0 %v1850
  %2281 = vmatmul.mubr.f32.gmra.mxu0 %v1849
  %v2282 = vpop.f32.mrf.mxu0
  %v2283 = vadd.f32 0.0, %v2282
  %v2284 = vpop.f32.mrf.mxu0
  %2285 = vmatprep.mubr.f32.mxu0 %v1853
  %2286 = vmatmul.mubr.f32.gmra.mxu0 %v1852
  %v2287 = vpop.f32.mrf.mxu0
  %v2288 = vadd.f32 0.0, %v2287
  %v2289 = vpop.f32.mrf.mxu0
  %2290 = vmatprep.mubr.f32.mxu0 %v1856
  %2291 = vmatmul.mubr.f32.gmra.mxu0 %v1855
  %v2292 = vpop.f32.mrf.mxu0
  %v2293 = vadd.f32 0.0, %v2292
  %v2294 = vpop.f32.mrf.mxu0
  %2295 = vmatprep.mubr.f32.mxu0 %v1859
  %2296 = vmatmul.mubr.f32.gmra.mxu0 %v1858
  %v2297 = vpop.f32.mrf.mxu0
  %v2298 = vadd.f32 0.0, %v2297
  %v2299 = vpop.f32.mrf.mxu0
  %2300 = vmatprep.mubr.f32.mxu0 %v1862
  %2301 = vmatmul.mubr.f32.gmra.mxu0 %v1861
  %v2302 = vpop.f32.mrf.mxu0
  %v2303 = vadd.f32 0.0, %v2302
  %v2304 = vpop.f32.mrf.mxu0
  %2305 = vmatprep.mubr.f32.mxu0 %v1865
  %2306 = vmatmul.mubr.f32.gmra.mxu0 %v1864
  %v2307 = vpop.f32.mrf.mxu0
  %v2308 = vadd.f32 0.0, %v2307
  %v2309 = vpop.f32.mrf.mxu0
  %2310 = vmatprep.mubr.f32.mxu0 %v1868
  %2311 = vmatmul.mubr.f32.gmra.mxu0 %v1867
  %v2312 = vpop.f32.mrf.mxu0
  %v2313 = vadd.f32 0.0, %v2312
  %v2314 = vpop.f32.mrf.mxu0
  %2315 = vmatprep.mubr.f32.mxu0 %v1871
  %2316 = vmatmul.mubr.f32.gmra.mxu0 %v1870
  %v2317 = vpop.f32.mrf.mxu0
  %v2318 = vadd.f32 0.0, %v2317
  %v2319 = vpop.f32.mrf.mxu0
  %2320 = vmatprep.mubr.f32.mxu0 %v1874
  %2321 = vmatmul.mubr.f32.gmra.mxu0 %v1873
  %v2322 = vpop.f32.mrf.mxu0
  %v2323 = vadd.f32 0.0, %v2322
  %v2324 = vpop.f32.mrf.mxu0
  %2325 = vdwg.mxu0
  %2326 = vmatprep.subr.mxu0 0.0
  %2327 = vmatpush1.msra.mxu0 %v1357
  %2328 = vmatprep.subr.mxu0 0.0
  %2329 = vmatpush1.msra.mxu0 %v1354
  %2330 = vmatprep.subr.mxu0 0.0
  %2331 = vmatpush1.msra.mxu0 %v1349
  %2332 = vmatprep.subr.mxu0 0.0
  %2333 = vmatpush1.msra.mxu0 %v1346
  %2334 = vmatprep.subr.mxu0 0.0
  %2335 = vmatpush1.msra.mxu0 %v1341
  %2336 = vmatprep.subr.mxu0 0.0
  %2337 = vmatpush1.msra.mxu0 %v1338
  %2338 = vmatprep.subr.mxu0 0.0
  %2339 = vmatpush1.msra.mxu0 %v1333
  %2340 = vmatprep.subr.mxu0 0.0
  %2341 = vmatpush1.msra.mxu0 %v1330
  %2342 = vmatprep.subr.mxu0 0.0
  %2343 = vmatpush1.msra.mxu0 %v1325
  %2344 = vmatprep.subr.mxu0 0.0
  %2345 = vmatpush1.msra.mxu0 %v1322
  %2346 = vmatprep.subr.mxu0 0.0
  %2347 = vmatpush1.msra.mxu0 %v1317
  %2348 = vmatprep.subr.mxu0 0.0
  %2349 = vmatpush1.msra.mxu0 %v1314
  %2350 = vmatprep.subr.mxu0 0.0
  %2351 = vmatpush1.msra.mxu0 %v1309
  %2352 = vmatprep.subr.mxu0 0.0
  %2353 = vmatpush1.msra.mxu0 %v1306
  %2354 = vmatprep.subr.mxu0 0.0
  %2355 = vmatpush1.msra.mxu0 %v1301
  %2356 = vmatprep.subr.mxu0 0.0
  %2357 = vmatpush1.msra.mxu0 %v1298
  %2358 = vmatprep.subr.mxu0 0.0
  %2359 = vmatpush2.msra.mxu0 0.0
  %2360 = vmatprep.subr.mxu0 0.0
  %2361 = vmatpush2.msra.mxu0 0.0
  %2362 = vmatprep.subr.mxu0 0.0
  %2363 = vmatpush2.msra.mxu0 0.0
  %2364 = vmatprep.subr.mxu0 0.0
  %2365 = vmatpush2.msra.mxu0 0.0
  %2366 = vmatprep.subr.mxu0 0.0
  %2367 = vmatpush2.msra.mxu0 0.0
  %2368 = vmatprep.subr.mxu0 0.0
  %2369 = vmatpush2.msra.mxu0 0.0
  %2370 = vmatprep.subr.mxu0 0.0
  %2371 = vmatpush2.msra.mxu0 0.0
  %2372 = vmatprep.subr.mxu0 0.0
  %2373 = vmatpush2.msra.mxu0 0.0
  %2374 = vmatprep.subr.mxu0 0.0
  %2375 = vmatpush2.msra.mxu0 0.0
  %2376 = vmatprep.subr.mxu0 0.0
  %2377 = vmatpush2.msra.mxu0 0.0
  %2378 = vmatprep.subr.mxu0 0.0
  %2379 = vmatpush2.msra.mxu0 0.0
  %2380 = vmatprep.subr.mxu0 0.0
  %2381 = vmatpush2.msra.mxu0 0.0
  %2382 = vmatprep.subr.mxu0 0.0
  %2383 = vmatpush2.msra.mxu0 0.0
  %2384 = vmatprep.subr.mxu0 0.0
  %2385 = vmatpush2.msra.mxu0 0.0
  %2386 = vmatprep.subr.mxu0 0.0
  %2387 = vmatpush2.msra.mxu0 0.0
  %2388 = vmatprep.subr.mxu0 0.0
  %2389 = vmatpush2.msra.mxu0 0.0
  %2390 = vmatprep.mubr.f32.mxu0 0.0
  %2391 = vmatmul.mubr.f32.gmra.mxu0 %v1782
  %v2392 = vpop.f32.mrf.mxu0
  %v2393 = vadd.f32 %v2168, %v2392
  %v2394 = vpop.f32.mrf.mxu0
  %2395 = vmatprep.mubr.f32.mxu0 0.0
  %2396 = vmatmul.mubr.f32.gmra.mxu0 %v1785
  %v2397 = vpop.f32.mrf.mxu0
  %v2398 = vadd.f32 %v2173, %v2397
  %v2399 = vpop.f32.mrf.mxu0
  %2400 = vmatprep.mubr.f32.mxu0 0.0
  %2401 = vmatmul.mubr.f32.gmra.mxu0 %v1788
  %v2402 = vpop.f32.mrf.mxu0
  %v2403 = vadd.f32 %v2178, %v2402
  %v2404 = vpop.f32.mrf.mxu0
  %2405 = vmatprep.mubr.f32.mxu0 0.0
  %2406 = vmatmul.mubr.f32.gmra.mxu0 %v1791
  %v2407 = vpop.f32.mrf.mxu0
  %v2408 = vadd.f32 %v2183, %v2407
  %v2409 = vpop.f32.mrf.mxu0
  %2410 = vmatprep.mubr.f32.mxu0 0.0
  %2411 = vmatmul.mubr.f32.gmra.mxu0 %v1794
  %v2412 = vpop.f32.mrf.mxu0
  %v2413 = vadd.f32 %v2188, %v2412
  %v2414 = vpop.f32.mrf.mxu0
  %2415 = vmatprep.mubr.f32.mxu0 0.0
  %2416 = vmatmul.mubr.f32.gmra.mxu0 %v1797
  %v2417 = vpop.f32.mrf.mxu0
  %v2418 = vadd.f32 %v2193, %v2417
  %v2419 = vpop.f32.mrf.mxu0
  %2420 = vmatprep.mubr.f32.mxu0 0.0
  %2421 = vmatmul.mubr.f32.gmra.mxu0 %v1800
  %v2422 = vpop.f32.mrf.mxu0
  %v2423 = vadd.f32 %v2198, %v2422
  %v2424 = vpop.f32.mrf.mxu0
  %2425 = vmatprep.mubr.f32.mxu0 0.0
  %2426 = vmatmul.mubr.f32.gmra.mxu0 %v1803
  %v2427 = vpop.f32.mrf.mxu0
  %v2428 = vadd.f32 %v2203, %v2427
  %v2429 = vpop.f32.mrf.mxu0
  %2430 = vmatprep.mubr.f32.mxu0 0.0
  %2431 = vmatmul.mubr.f32.gmra.mxu0 %v1806
  %v2432 = vpop.f32.mrf.mxu0
  %v2433 = vadd.f32 %v2208, %v2432
  %v2434 = vpop.f32.mrf.mxu0
  %2435 = vmatprep.mubr.f32.mxu0 0.0
  %2436 = vmatmul.mubr.f32.gmra.mxu0 %v1809
  %v2437 = vpop.f32.mrf.mxu0
  %v2438 = vadd.f32 %v2213, %v2437
  %v2439 = vpop.f32.mrf.mxu0
  %2440 = vmatprep.mubr.f32.mxu0 0.0
  %2441 = vmatmul.mubr.f32.gmra.mxu0 %v1812
  %v2442 = vpop.f32.mrf.mxu0
  %v2443 = vadd.f32 %v2218, %v2442
  %v2444 = vpop.f32.mrf.mxu0
  %2445 = vmatprep.mubr.f32.mxu0 0.0
  %2446 = vmatmul.mubr.f32.gmra.mxu0 %v1815
  %v2447 = vpop.f32.mrf.mxu0
  %v2448 = vadd.f32 %v2223, %v2447
  %v2449 = vpop.f32.mrf.mxu0
  %2450 = vmatprep.mubr.f32.mxu0 0.0
  %2451 = vmatmul.mubr.f32.gmra.mxu0 %v1818
  %v2452 = vpop.f32.mrf.mxu0
  %v2453 = vadd.f32 %v2228, %v2452
  %v2454 = vpop.f32.mrf.mxu0
  %2455 = vmatprep.mubr.f32.mxu0 0.0
  %2456 = vmatmul.mubr.f32.gmra.mxu0 %v1821
  %v2457 = vpop.f32.mrf.mxu0
  %v2458 = vadd.f32 %v2233, %v2457
  %v2459 = vpop.f32.mrf.mxu0
  %2460 = vmatprep.mubr.f32.mxu0 0.0
  %2461 = vmatmul.mubr.f32.gmra.mxu0 %v1824
  %v2462 = vpop.f32.mrf.mxu0
  %v2463 = vadd.f32 %v2238, %v2462
  %v2464 = vpop.f32.mrf.mxu0
  %2465 = vmatprep.mubr.f32.mxu0 0.0
  %2466 = vmatmul.mubr.f32.gmra.mxu0 %v1827
  %v2467 = vpop.f32.mrf.mxu0
  %v2468 = vadd.f32 %v2243, %v2467
  %v2469 = vpop.f32.mrf.mxu0
  %2470 = vmatprep.mubr.f32.mxu0 0.0
  %2471 = vmatmul.mubr.f32.gmra.mxu0 %v1830
  %v2472 = vpop.f32.mrf.mxu0
  %v2473 = vadd.f32 %v2248, %v2472
  %v2474 = vpop.f32.mrf.mxu0
  %2475 = vmatprep.mubr.f32.mxu0 0.0
  %2476 = vmatmul.mubr.f32.gmra.mxu0 %v1833
  %v2477 = vpop.f32.mrf.mxu0
  %v2478 = vadd.f32 %v2253, %v2477
  %v2479 = vpop.f32.mrf.mxu0
  %2480 = vmatprep.mubr.f32.mxu0 0.0
  %2481 = vmatmul.mubr.f32.gmra.mxu0 %v1836
  %v2482 = vpop.f32.mrf.mxu0
  %v2483 = vadd.f32 %v2258, %v2482
  %v2484 = vpop.f32.mrf.mxu0
  %2485 = vmatprep.mubr.f32.mxu0 0.0
  %2486 = vmatmul.mubr.f32.gmra.mxu0 %v1839
  %v2487 = vpop.f32.mrf.mxu0
  %v2488 = vadd.f32 %v2263, %v2487
  %v2489 = vpop.f32.mrf.mxu0
  %2490 = vmatprep.mubr.f32.mxu0 0.0
  %2491 = vmatmul.mubr.f32.gmra.mxu0 %v1842
  %v2492 = vpop.f32.mrf.mxu0
  %v2493 = vadd.f32 %v2268, %v2492
  %v2494 = vpop.f32.mrf.mxu0
  %2495 = vmatprep.mubr.f32.mxu0 0.0
  %2496 = vmatmul.mubr.f32.gmra.mxu0 %v1845
  %v2497 = vpop.f32.mrf.mxu0
  %v2498 = vadd.f32 %v2273, %v2497
  %v2499 = vpop.f32.mrf.mxu0
  %2500 = vmatprep.mubr.f32.mxu0 0.0
  %2501 = vmatmul.mubr.f32.gmra.mxu0 %v1848
  %v2502 = vpop.f32.mrf.mxu0
  %v2503 = vadd.f32 %v2278, %v2502
  %v2504 = vpop.f32.mrf.mxu0
  %2505 = vmatprep.mubr.f32.mxu0 0.0
  %2506 = vmatmul.mubr.f32.gmra.mxu0 %v1851
  %v2507 = vpop.f32.mrf.mxu0
  %v2508 = vadd.f32 %v2283, %v2507
  %v2509 = vpop.f32.mrf.mxu0
  %2510 = vmatprep.mubr.f32.mxu0 0.0
  %2511 = vmatmul.mubr.f32.gmra.mxu0 %v1854
  %v2512 = vpop.f32.mrf.mxu0
  %v2513 = vadd.f32 %v2288, %v2512
  %v2514 = vpop.f32.mrf.mxu0
  %2515 = vmatprep.mubr.f32.mxu0 0.0
  %2516 = vmatmul.mubr.f32.gmra.mxu0 %v1857
  %v2517 = vpop.f32.mrf.mxu0
  %v2518 = vadd.f32 %v2293, %v2517
  %v2519 = vpop.f32.mrf.mxu0
  %2520 = vmatprep.mubr.f32.mxu0 0.0
  %2521 = vmatmul.mubr.f32.gmra.mxu0 %v1860
  %v2522 = vpop.f32.mrf.mxu0
  %v2523 = vadd.f32 %v2298, %v2522
  %v2524 = vpop.f32.mrf.mxu0
  %2525 = vmatprep.mubr.f32.mxu0 0.0
  %2526 = vmatmul.mubr.f32.gmra.mxu0 %v1863
  %v2527 = vpop.f32.mrf.mxu0
  %v2528 = vadd.f32 %v2303, %v2527
  %v2529 = vpop.f32.mrf.mxu0
  %2530 = vmatprep.mubr.f32.mxu0 0.0
  %2531 = vmatmul.mubr.f32.gmra.mxu0 %v1866
  %v2532 = vpop.f32.mrf.mxu0
  %v2533 = vadd.f32 %v2308, %v2532
  %v2534 = vpop.f32.mrf.mxu0
  %2535 = vmatprep.mubr.f32.mxu0 0.0
  %2536 = vmatmul.mubr.f32.gmra.mxu0 %v1869
  %v2537 = vpop.f32.mrf.mxu0
  %v2538 = vadd.f32 %v2313, %v2537
  %v2539 = vpop.f32.mrf.mxu0
  %2540 = vmatprep.mubr.f32.mxu0 0.0
  %2541 = vmatmul.mubr.f32.gmra.mxu0 %v1872
  %v2542 = vpop.f32.mrf.mxu0
  %v2543 = vadd.f32 %v2318, %v2542
  %v2544 = vpop.f32.mrf.mxu0
  %2545 = vmatprep.mubr.f32.mxu0 0.0
  %2546 = vmatmul.mubr.f32.gmra.mxu0 %v1875
  %v2547 = vpop.f32.mrf.mxu0
  %v2548 = vadd.f32 %v2323, %v2547
  %v2549 = vpop.f32.mrf.mxu0
  %2550 = vdwg.mxu0
  %v2551 = vld [vmem:[%s8] sm:$0x1]
  %v2552 = vld [vmem:[%s8 + $0x1] sm:$0x1]
  %v2553 = vld [vmem:[%s8 + $0x2] sm:$0x1]
  %v2554 = vld [vmem:[%s8 + $0x3] sm:$0x1]
  %v2555 = vld [vmem:[%s8 + $0x4] sm:$0x1]
  %v2556 = vld [vmem:[%s8 + $0x5] sm:$0x1]
  %v2557 = vld [vmem:[%s6] sm:$0xff]
  %v2558 = vld [vmem:[%s6 + $0x8] sm:$0xff]
  %v2559 = vld [vmem:[%s6 + $0x10] sm:$0xff]
  %v2560 = vld [vmem:[%s6 + $0x18] sm:$0xff]
  %v2561 = vld [vmem:[%s7] sm:$0xff]
  %v2562 = vld [vmem:[%s7 + $0x8] sm:$0xff]
  %v2563 = vld [vmem:[%s7 + $0x10] sm:$0xff]
  %v2564 = vld [vmem:[%s7 + $0x18] sm:$0xff]
  %vm2565 = vcmask 261120
  %v2567 = vsel %vm2565, %v2393, 0
  %v2570 = vsel %vm2565, %v2398, 0
  %v2573 = vsel %vm2565, %v2403, 0
  %v2576 = vsel %vm2565, %v2408, 0
  %v2579 = vsel %vm2565, %v2413, 0
  %v2582 = vsel %vm2565, %v2418, 0
  %v2585 = vsel %vm2565, %v2423, 0
  %v2588 = vsel %vm2565, %v2428, 0
  %v2591 = vsel %vm2565, %v2433, 0
  %v2594 = vsel %vm2565, %v2438, 0
  %v2597 = vsel %vm2565, %v2443, 0
  %v2600 = vsel %vm2565, %v2448, 0
  %v2603 = vsel %vm2565, %v2453, 0
  %v2606 = vsel %vm2565, %v2458, 0
  %v2609 = vsel %vm2565, %v2463, 0
  %v2612 = vsel %vm2565, %v2468, 0
  %v2615 = vsel %vm2565, %v2473, 0
  %v2618 = vsel %vm2565, %v2478, 0
  %v2621 = vsel %vm2565, %v2483, 0
  %v2624 = vsel %vm2565, %v2488, 0
  %v2627 = vsel %vm2565, %v2493, 0
  %v2630 = vsel %vm2565, %v2498, 0
  %v2633 = vsel %vm2565, %v2503, 0
  %v2636 = vsel %vm2565, %v2508, 0
  %v2639 = vsel %vm2565, %v2513, 0
  %v2642 = vsel %vm2565, %v2518, 0
  %v2645 = vsel %vm2565, %v2523, 0
  %v2648 = vsel %vm2565, %v2528, 0
  %v2651 = vsel %vm2565, %v2533, 0
  %v2654 = vsel %vm2565, %v2538, 0
  %v2657 = vsel %vm2565, %v2543, 0
  %v2660 = vsel %vm2565, %v2548, 0
  %2662 = vmatprep.subr.mxu0 0.0
  %2663 = vmatpush1.msra.mxu0 0.0
  %2664 = vmatprep.subr.mxu0 0.0
  %2665 = vmatpush1.msra.mxu0 0.0
  %2666 = vmatprep.subr.mxu0 0.0
  %2667 = vmatpush1.msra.mxu0 0.0
  %2668 = vmatprep.subr.mxu0 0.0
  %2669 = vmatpush1.msra.mxu0 0.0
  %2670 = vmatprep.subr.mxu0 0.0
  %2671 = vmatpush1.msra.mxu0 0.0
  %2672 = vmatprep.subr.mxu0 0.0
  %2673 = vmatpush1.msra.mxu0 0.0
  %2674 = vmatprep.subr.mxu0 0.0
  %2675 = vmatpush1.msra.mxu0 0.0
  %2676 = vmatprep.subr.mxu0 0.0
  %2677 = vmatpush1.msra.mxu0 0.0
  %2678 = vmatprep.subr.mxu0 0.0
  %2679 = vmatpush1.msra.mxu0 0.0
  %2680 = vmatprep.subr.mxu0 0.0
  %2681 = vmatpush1.msra.mxu0 0.0
  %2682 = vmatprep.subr.mxu0 0.0
  %2683 = vmatpush1.msra.mxu0 0.0
  %2684 = vmatprep.subr.mxu0 0.0
  %2685 = vmatpush1.msra.mxu0 0.0
  %2686 = vmatprep.subr.mxu0 0.0
  %2687 = vmatpush1.msra.mxu0 %v2564
  %2688 = vmatprep.subr.mxu0 0.0
  %2689 = vmatpush1.msra.mxu0 %v2563
  %2690 = vmatprep.subr.mxu0 0.0
  %2691 = vmatpush1.msra.mxu0 %v2562
  %2692 = vmatprep.subr.mxu0 0.0
  %2693 = vmatpush1.msra.mxu0 %v2561
  %2694 = vmatprep.subr.mxu0 0.0
  %2695 = vmatpush2.msra.mxu0 0.0
  %2696 = vmatprep.subr.mxu0 0.0
  %2697 = vmatpush2.msra.mxu0 0.0
  %2698 = vmatprep.subr.mxu0 0.0
  %2699 = vmatpush2.msra.mxu0 0.0
  %2700 = vmatprep.subr.mxu0 0.0
  %2701 = vmatpush2.msra.mxu0 0.0
  %2702 = vmatprep.subr.mxu0 0.0
  %2703 = vmatpush2.msra.mxu0 0.0
  %2704 = vmatprep.subr.mxu0 0.0
  %2705 = vmatpush2.msra.mxu0 0.0
  %2706 = vmatprep.subr.mxu0 0.0
  %2707 = vmatpush2.msra.mxu0 0.0
  %2708 = vmatprep.subr.mxu0 0.0
  %2709 = vmatpush2.msra.mxu0 0.0
  %2710 = vmatprep.subr.mxu0 0.0
  %2711 = vmatpush2.msra.mxu0 0.0
  %2712 = vmatprep.subr.mxu0 0.0
  %2713 = vmatpush2.msra.mxu0 0.0
  %2714 = vmatprep.subr.mxu0 0.0
  %2715 = vmatpush2.msra.mxu0 0.0
  %2716 = vmatprep.subr.mxu0 0.0
  %2717 = vmatpush2.msra.mxu0 0.0
  %2718 = vmatprep.subr.mxu0 0.0
  %2719 = vmatpush2.msra.mxu0 0.0
  %2720 = vmatprep.subr.mxu0 0.0
  %2721 = vmatpush2.msra.mxu0 0.0
  %2722 = vmatprep.subr.mxu0 0.0
  %2723 = vmatpush2.msra.mxu0 0.0
  %2724 = vmatprep.subr.mxu0 0.0
  %2725 = vmatpush2.msra.mxu0 0.0
  %2726 = vmatprep.mubr.f32.mxu0 0.0
  %2727 = vmatmul.mubr.f32.gmra.mxu0 %v2567
  %v2728 = vpop.f32.mrf.mxu0
  %v2729 = vadd.f32 0.0, %v2728
  %v2730 = vpop.f32.mrf.mxu0
  %2731 = vmatprep.mubr.f32.mxu0 0.0
  %2732 = vmatmul.mubr.f32.gmra.mxu0 %v2570
  %v2733 = vpop.f32.mrf.mxu0
  %v2734 = vadd.f32 0.0, %v2733
  %v2735 = vpop.f32.mrf.mxu0
  %2736 = vmatprep.mubr.f32.mxu0 0.0
  %2737 = vmatmul.mubr.f32.gmra.mxu0 %v2573
  %v2738 = vpop.f32.mrf.mxu0
  %v2739 = vadd.f32 0.0, %v2738
  %v2740 = vpop.f32.mrf.mxu0
  %2741 = vmatprep.mubr.f32.mxu0 0.0
  %2742 = vmatmul.mubr.f32.gmra.mxu0 %v2576
  %v2743 = vpop.f32.mrf.mxu0
  %v2744 = vadd.f32 0.0, %v2743
  %v2745 = vpop.f32.mrf.mxu0
  %2746 = vmatprep.mubr.f32.mxu0 0.0
  %2747 = vmatmul.mubr.f32.gmra.mxu0 %v2579
  %v2748 = vpop.f32.mrf.mxu0
  %v2749 = vadd.f32 0.0, %v2748
  %v2750 = vpop.f32.mrf.mxu0
  %2751 = vmatprep.mubr.f32.mxu0 0.0
  %2752 = vmatmul.mubr.f32.gmra.mxu0 %v2582
  %v2753 = vpop.f32.mrf.mxu0
  %v2754 = vadd.f32 0.0, %v2753
  %v2755 = vpop.f32.mrf.mxu0
  %2756 = vmatprep.mubr.f32.mxu0 0.0
  %2757 = vmatmul.mubr.f32.gmra.mxu0 %v2585
  %v2758 = vpop.f32.mrf.mxu0
  %v2759 = vadd.f32 0.0, %v2758
  %v2760 = vpop.f32.mrf.mxu0
  %2761 = vmatprep.mubr.f32.mxu0 0.0
  %2762 = vmatmul.mubr.f32.gmra.mxu0 %v2588
  %v2763 = vpop.f32.mrf.mxu0
  %v2764 = vadd.f32 0.0, %v2763
  %v2765 = vpop.f32.mrf.mxu0
  %2766 = vmatprep.mubr.f32.mxu0 0.0
  %2767 = vmatmul.mubr.f32.gmra.mxu0 %v2591
  %v2768 = vpop.f32.mrf.mxu0
  %v2769 = vadd.f32 0.0, %v2768
  %v2770 = vpop.f32.mrf.mxu0
  %2771 = vmatprep.mubr.f32.mxu0 0.0
  %2772 = vmatmul.mubr.f32.gmra.mxu0 %v2594
  %v2773 = vpop.f32.mrf.mxu0
  %v2774 = vadd.f32 0.0, %v2773
  %v2775 = vpop.f32.mrf.mxu0
  %2776 = vmatprep.mubr.f32.mxu0 0.0
  %2777 = vmatmul.mubr.f32.gmra.mxu0 %v2597
  %v2778 = vpop.f32.mrf.mxu0
  %v2779 = vadd.f32 0.0, %v2778
  %v2780 = vpop.f32.mrf.mxu0
  %2781 = vmatprep.mubr.f32.mxu0 0.0
  %2782 = vmatmul.mubr.f32.gmra.mxu0 %v2600
  %v2783 = vpop.f32.mrf.mxu0
  %v2784 = vadd.f32 0.0, %v2783
  %v2785 = vpop.f32.mrf.mxu0
  %2786 = vmatprep.mubr.f32.mxu0 0.0
  %2787 = vmatmul.mubr.f32.gmra.mxu0 %v2603
  %v2788 = vpop.f32.mrf.mxu0
  %v2789 = vadd.f32 0.0, %v2788
  %v2790 = vpop.f32.mrf.mxu0
  %2791 = vmatprep.mubr.f32.mxu0 0.0
  %2792 = vmatmul.mubr.f32.gmra.mxu0 %v2606
  %v2793 = vpop.f32.mrf.mxu0
  %v2794 = vadd.f32 0.0, %v2793
  %v2795 = vpop.f32.mrf.mxu0
  %2796 = vmatprep.mubr.f32.mxu0 0.0
  %2797 = vmatmul.mubr.f32.gmra.mxu0 %v2609
  %v2798 = vpop.f32.mrf.mxu0
  %v2799 = vadd.f32 0.0, %v2798
  %v2800 = vpop.f32.mrf.mxu0
  %2801 = vmatprep.mubr.f32.mxu0 0.0
  %2802 = vmatmul.mubr.f32.gmra.mxu0 %v2612
  %v2803 = vpop.f32.mrf.mxu0
  %v2804 = vadd.f32 0.0, %v2803
  %v2805 = vpop.f32.mrf.mxu0
  %2806 = vmatprep.mubr.f32.mxu0 0.0
  %2807 = vmatmul.mubr.f32.gmra.mxu0 %v2615
  %v2808 = vpop.f32.mrf.mxu0
  %v2809 = vadd.f32 0.0, %v2808
  %v2810 = vpop.f32.mrf.mxu0
  %2811 = vmatprep.mubr.f32.mxu0 0.0
  %2812 = vmatmul.mubr.f32.gmra.mxu0 %v2618
  %v2813 = vpop.f32.mrf.mxu0
  %v2814 = vadd.f32 0.0, %v2813
  %v2815 = vpop.f32.mrf.mxu0
  %2816 = vmatprep.mubr.f32.mxu0 0.0
  %2817 = vmatmul.mubr.f32.gmra.mxu0 %v2621
  %v2818 = vpop.f32.mrf.mxu0
  %v2819 = vadd.f32 0.0, %v2818
  %v2820 = vpop.f32.mrf.mxu0
  %2821 = vmatprep.mubr.f32.mxu0 0.0
  %2822 = vmatmul.mubr.f32.gmra.mxu0 %v2624
  %v2823 = vpop.f32.mrf.mxu0
  %v2824 = vadd.f32 0.0, %v2823
  %v2825 = vpop.f32.mrf.mxu0
  %2826 = vmatprep.mubr.f32.mxu0 0.0
  %2827 = vmatmul.mubr.f32.gmra.mxu0 %v2627
  %v2828 = vpop.f32.mrf.mxu0
  %v2829 = vadd.f32 0.0, %v2828
  %v2830 = vpop.f32.mrf.mxu0
  %2831 = vmatprep.mubr.f32.mxu0 0.0
  %2832 = vmatmul.mubr.f32.gmra.mxu0 %v2630
  %v2833 = vpop.f32.mrf.mxu0
  %v2834 = vadd.f32 0.0, %v2833
  %v2835 = vpop.f32.mrf.mxu0
  %2836 = vmatprep.mubr.f32.mxu0 0.0
  %2837 = vmatmul.mubr.f32.gmra.mxu0 %v2633
  %v2838 = vpop.f32.mrf.mxu0
  %v2839 = vadd.f32 0.0, %v2838
  %v2840 = vpop.f32.mrf.mxu0
  %2841 = vmatprep.mubr.f32.mxu0 0.0
  %2842 = vmatmul.mubr.f32.gmra.mxu0 %v2636
  %v2843 = vpop.f32.mrf.mxu0
  %v2844 = vadd.f32 0.0, %v2843
  %v2845 = vpop.f32.mrf.mxu0
  %2846 = vmatprep.mubr.f32.mxu0 0.0
  %2847 = vmatmul.mubr.f32.gmra.mxu0 %v2639
  %v2848 = vpop.f32.mrf.mxu0
  %v2849 = vadd.f32 0.0, %v2848
  %v2850 = vpop.f32.mrf.mxu0
  %2851 = vmatprep.mubr.f32.mxu0 0.0
  %2852 = vmatmul.mubr.f32.gmra.mxu0 %v2642
  %v2853 = vpop.f32.mrf.mxu0
  %v2854 = vadd.f32 0.0, %v2853
  %v2855 = vpop.f32.mrf.mxu0
  %2856 = vmatprep.mubr.f32.mxu0 0.0
  %2857 = vmatmul.mubr.f32.gmra.mxu0 %v2645
  %v2858 = vpop.f32.mrf.mxu0
  %v2859 = vadd.f32 0.0, %v2858
  %v2860 = vpop.f32.mrf.mxu0
  %2861 = vmatprep.mubr.f32.mxu0 0.0
  %2862 = vmatmul.mubr.f32.gmra.mxu0 %v2648
  %v2863 = vpop.f32.mrf.mxu0
  %v2864 = vadd.f32 0.0, %v2863
  %v2865 = vpop.f32.mrf.mxu0
  %2866 = vmatprep.mubr.f32.mxu0 0.0
  %2867 = vmatmul.mubr.f32.gmra.mxu0 %v2651
  %v2868 = vpop.f32.mrf.mxu0
  %v2869 = vadd.f32 0.0, %v2868
  %v2870 = vpop.f32.mrf.mxu0
  %2871 = vmatprep.mubr.f32.mxu0 0.0
  %2872 = vmatmul.mubr.f32.gmra.mxu0 %v2654
  %v2873 = vpop.f32.mrf.mxu0
  %v2874 = vadd.f32 0.0, %v2873
  %v2875 = vpop.f32.mrf.mxu0
  %2876 = vmatprep.mubr.f32.mxu0 0.0
  %2877 = vmatmul.mubr.f32.gmra.mxu0 %v2657
  %v2878 = vpop.f32.mrf.mxu0
  %v2879 = vadd.f32 0.0, %v2878
  %v2880 = vpop.f32.mrf.mxu0
  %2881 = vmatprep.mubr.f32.mxu0 0.0
  %2882 = vmatmul.mubr.f32.gmra.mxu0 %v2660
  %v2883 = vpop.f32.mrf.mxu0
  %v2884 = vadd.f32 0.0, %v2883
  %v2885 = vpop.f32.mrf.mxu0
  %2886 = vdwg.mxu0
  %v2888 = vsel %vm2565, %v1943, 0
  %v2891 = vsel %vm2565, %v1948, 0
  %v2894 = vsel %vm2565, %v1953, 0
  %v2897 = vsel %vm2565, %v1958, 0
  %v2900 = vsel %vm2565, %v1963, 0
  %v2903 = vsel %vm2565, %v1968, 0
  %v2906 = vsel %vm2565, %v1973, 0
  %v2909 = vsel %vm2565, %v1978, 0
  %v2912 = vsel %vm2565, %v1983, 0
  %v2915 = vsel %vm2565, %v1988, 0
  %v2918 = vsel %vm2565, %v1993, 0
  %v2921 = vsel %vm2565, %v1998, 0
  %v2924 = vsel %vm2565, %v2003, 0
  %v2927 = vsel %vm2565, %v2008, 0
  %v2930 = vsel %vm2565, %v2013, 0
  %v2933 = vsel %vm2565, %v2018, 0
  %v2936 = vsel %vm2565, %v2023, 0
  %v2939 = vsel %vm2565, %v2028, 0
  %v2942 = vsel %vm2565, %v2033, 0
  %v2945 = vsel %vm2565, %v2038, 0
  %v2948 = vsel %vm2565, %v2043, 0
  %v2951 = vsel %vm2565, %v2048, 0
  %v2954 = vsel %vm2565, %v2053, 0
  %v2957 = vsel %vm2565, %v2058, 0
  %v2960 = vsel %vm2565, %v2063, 0
  %v2963 = vsel %vm2565, %v2068, 0
  %v2966 = vsel %vm2565, %v2073, 0
  %v2969 = vsel %vm2565, %v2078, 0
  %v2972 = vsel %vm2565, %v2083, 0
  %v2975 = vsel %vm2565, %v2088, 0
  %v2978 = vsel %vm2565, %v2093, 0
  %v2981 = vsel %vm2565, %v2098, 0
  %2983 = vmatprep.subr.mxu0 0.0
  %2984 = vmatpush1.msra.mxu0 0.0
  %2985 = vmatprep.subr.mxu0 0.0
  %2986 = vmatpush1.msra.mxu0 0.0
  %2987 = vmatprep.subr.mxu0 0.0
  %2988 = vmatpush1.msra.mxu0 0.0
  %2989 = vmatprep.subr.mxu0 0.0
  %2990 = vmatpush1.msra.mxu0 0.0
  %2991 = vmatprep.subr.mxu0 0.0
  %2992 = vmatpush1.msra.mxu0 0.0
  %2993 = vmatprep.subr.mxu0 0.0
  %2994 = vmatpush1.msra.mxu0 0.0
  %2995 = vmatprep.subr.mxu0 0.0
  %2996 = vmatpush1.msra.mxu0 0.0
  %2997 = vmatprep.subr.mxu0 0.0
  %2998 = vmatpush1.msra.mxu0 0.0
  %2999 = vmatprep.subr.mxu0 0.0
  %3000 = vmatpush1.msra.mxu0 0.0
  %3001 = vmatprep.subr.mxu0 0.0
  %3002 = vmatpush1.msra.mxu0 0.0
  %3003 = vmatprep.subr.mxu0 0.0
  %3004 = vmatpush1.msra.mxu0 0.0
  %3005 = vmatprep.subr.mxu0 0.0
  %3006 = vmatpush1.msra.mxu0 0.0
  %3007 = vmatprep.subr.mxu0 0.0
  %3008 = vmatpush1.msra.mxu0 %v2560
  %3009 = vmatprep.subr.mxu0 0.0
  %3010 = vmatpush1.msra.mxu0 %v2559
  %3011 = vmatprep.subr.mxu0 0.0
  %3012 = vmatpush1.msra.mxu0 %v2558
  %3013 = vmatprep.subr.mxu0 0.0
  %3014 = vmatpush1.msra.mxu0 %v2557
  %3015 = vmatprep.subr.mxu0 0.0
  %3016 = vmatpush2.msra.mxu0 0.0
  %3017 = vmatprep.subr.mxu0 0.0
  %3018 = vmatpush2.msra.mxu0 0.0
  %3019 = vmatprep.subr.mxu0 0.0
  %3020 = vmatpush2.msra.mxu0 0.0
  %3021 = vmatprep.subr.mxu0 0.0
  %3022 = vmatpush2.msra.mxu0 0.0
  %3023 = vmatprep.subr.mxu0 0.0
  %3024 = vmatpush2.msra.mxu0 0.0
  %3025 = vmatprep.subr.mxu0 0.0
  %3026 = vmatpush2.msra.mxu0 0.0
  %3027 = vmatprep.subr.mxu0 0.0
  %3028 = vmatpush2.msra.mxu0 0.0
  %3029 = vmatprep.subr.mxu0 0.0
  %3030 = vmatpush2.msra.mxu0 0.0
  %3031 = vmatprep.subr.mxu0 0.0
  %3032 = vmatpush2.msra.mxu0 0.0
  %3033 = vmatprep.subr.mxu0 0.0
  %3034 = vmatpush2.msra.mxu0 0.0
  %3035 = vmatprep.subr.mxu0 0.0
  %3036 = vmatpush2.msra.mxu0 0.0
  %3037 = vmatprep.subr.mxu0 0.0
  %3038 = vmatpush2.msra.mxu0 0.0
  %3039 = vmatprep.subr.mxu0 0.0
  %3040 = vmatpush2.msra.mxu0 0.0
  %3041 = vmatprep.subr.mxu0 0.0
  %3042 = vmatpush2.msra.mxu0 0.0
  %3043 = vmatprep.subr.mxu0 0.0
  %3044 = vmatpush2.msra.mxu0 0.0
  %3045 = vmatprep.subr.mxu0 0.0
  %3046 = vmatpush2.msra.mxu0 0.0
  %3047 = vmatprep.mubr.f32.mxu0 0.0
  %3048 = vmatmul.mubr.f32.gmra.mxu0 %v2888
  %v3049 = vpop.f32.mrf.mxu0
  %v3050 = vadd.f32 %v2729, %v3049
  %v3051 = vpop.f32.mrf.mxu0
  %3052 = vmatprep.mubr.f32.mxu0 0.0
  %3053 = vmatmul.mubr.f32.gmra.mxu0 %v2891
  %v3054 = vpop.f32.mrf.mxu0
  %v3055 = vadd.f32 %v2734, %v3054
  %v3056 = vpop.f32.mrf.mxu0
  %3057 = vmatprep.mubr.f32.mxu0 0.0
  %3058 = vmatmul.mubr.f32.gmra.mxu0 %v2894
  %v3059 = vpop.f32.mrf.mxu0
  %v3060 = vadd.f32 %v2739, %v3059
  %v3061 = vpop.f32.mrf.mxu0
  %3062 = vmatprep.mubr.f32.mxu0 0.0
  %3063 = vmatmul.mubr.f32.gmra.mxu0 %v2897
  %v3064 = vpop.f32.mrf.mxu0
  %v3065 = vadd.f32 %v2744, %v3064
  %v3066 = vpop.f32.mrf.mxu0
  %3067 = vmatprep.mubr.f32.mxu0 0.0
  %3068 = vmatmul.mubr.f32.gmra.mxu0 %v2900
  %v3069 = vpop.f32.mrf.mxu0
  %v3070 = vadd.f32 %v2749, %v3069
  %v3071 = vpop.f32.mrf.mxu0
  %3072 = vmatprep.mubr.f32.mxu0 0.0
  %3073 = vmatmul.mubr.f32.gmra.mxu0 %v2903
  %v3074 = vpop.f32.mrf.mxu0
  %v3075 = vadd.f32 %v2754, %v3074
  %v3076 = vpop.f32.mrf.mxu0
  %3077 = vmatprep.mubr.f32.mxu0 0.0
  %3078 = vmatmul.mubr.f32.gmra.mxu0 %v2906
  %v3079 = vpop.f32.mrf.mxu0
  %v3080 = vadd.f32 %v2759, %v3079
  %v3081 = vpop.f32.mrf.mxu0
  %3082 = vmatprep.mubr.f32.mxu0 0.0
  %3083 = vmatmul.mubr.f32.gmra.mxu0 %v2909
  %v3084 = vpop.f32.mrf.mxu0
  %v3085 = vadd.f32 %v2764, %v3084
  %v3086 = vpop.f32.mrf.mxu0
  %3087 = vmatprep.mubr.f32.mxu0 0.0
  %3088 = vmatmul.mubr.f32.gmra.mxu0 %v2912
  %v3089 = vpop.f32.mrf.mxu0
  %v3090 = vadd.f32 %v2769, %v3089
  %v3091 = vpop.f32.mrf.mxu0
  %3092 = vmatprep.mubr.f32.mxu0 0.0
  %3093 = vmatmul.mubr.f32.gmra.mxu0 %v2915
  %v3094 = vpop.f32.mrf.mxu0
  %v3095 = vadd.f32 %v2774, %v3094
  %v3096 = vpop.f32.mrf.mxu0
  %3097 = vmatprep.mubr.f32.mxu0 0.0
  %3098 = vmatmul.mubr.f32.gmra.mxu0 %v2918
  %v3099 = vpop.f32.mrf.mxu0
  %v3100 = vadd.f32 %v2779, %v3099
  %v3101 = vpop.f32.mrf.mxu0
  %3102 = vmatprep.mubr.f32.mxu0 0.0
  %3103 = vmatmul.mubr.f32.gmra.mxu0 %v2921
  %v3104 = vpop.f32.mrf.mxu0
  %v3105 = vadd.f32 %v2784, %v3104
  %v3106 = vpop.f32.mrf.mxu0
  %3107 = vmatprep.mubr.f32.mxu0 0.0
  %3108 = vmatmul.mubr.f32.gmra.mxu0 %v2924
  %v3109 = vpop.f32.mrf.mxu0
  %v3110 = vadd.f32 %v2789, %v3109
  %v3111 = vpop.f32.mrf.mxu0
  %3112 = vmatprep.mubr.f32.mxu0 0.0
  %3113 = vmatmul.mubr.f32.gmra.mxu0 %v2927
  %v3114 = vpop.f32.mrf.mxu0
  %v3115 = vadd.f32 %v2794, %v3114
  %v3116 = vpop.f32.mrf.mxu0
  %3117 = vmatprep.mubr.f32.mxu0 0.0
  %3118 = vmatmul.mubr.f32.gmra.mxu0 %v2930
  %v3119 = vpop.f32.mrf.mxu0
  %v3120 = vadd.f32 %v2799, %v3119
  %v3121 = vpop.f32.mrf.mxu0
  %3122 = vmatprep.mubr.f32.mxu0 0.0
  %3123 = vmatmul.mubr.f32.gmra.mxu0 %v2933
  %v3124 = vpop.f32.mrf.mxu0
  %v3125 = vadd.f32 %v2804, %v3124
  %v3126 = vpop.f32.mrf.mxu0
  %3127 = vmatprep.mubr.f32.mxu0 0.0
  %3128 = vmatmul.mubr.f32.gmra.mxu0 %v2936
  %v3129 = vpop.f32.mrf.mxu0
  %v3130 = vadd.f32 %v2809, %v3129
  %v3131 = vpop.f32.mrf.mxu0
  %3132 = vmatprep.mubr.f32.mxu0 0.0
  %3133 = vmatmul.mubr.f32.gmra.mxu0 %v2939
  %v3134 = vpop.f32.mrf.mxu0
  %v3135 = vadd.f32 %v2814, %v3134
  %v3136 = vpop.f32.mrf.mxu0
  %3137 = vmatprep.mubr.f32.mxu0 0.0
  %3138 = vmatmul.mubr.f32.gmra.mxu0 %v2942
  %v3139 = vpop.f32.mrf.mxu0
  %v3140 = vadd.f32 %v2819, %v3139
  %v3141 = vpop.f32.mrf.mxu0
  %3142 = vmatprep.mubr.f32.mxu0 0.0
  %3143 = vmatmul.mubr.f32.gmra.mxu0 %v2945
  %v3144 = vpop.f32.mrf.mxu0
  %v3145 = vadd.f32 %v2824, %v3144
  %v3146 = vpop.f32.mrf.mxu0
  %3147 = vmatprep.mubr.f32.mxu0 0.0
  %3148 = vmatmul.mubr.f32.gmra.mxu0 %v2948
  %v3149 = vpop.f32.mrf.mxu0
  %v3150 = vadd.f32 %v2829, %v3149
  %v3151 = vpop.f32.mrf.mxu0
  %3152 = vmatprep.mubr.f32.mxu0 0.0
  %3153 = vmatmul.mubr.f32.gmra.mxu0 %v2951
  %v3154 = vpop.f32.mrf.mxu0
  %v3155 = vadd.f32 %v2834, %v3154
  %v3156 = vpop.f32.mrf.mxu0
  %3157 = vmatprep.mubr.f32.mxu0 0.0
  %3158 = vmatmul.mubr.f32.gmra.mxu0 %v2954
  %v3159 = vpop.f32.mrf.mxu0
  %v3160 = vadd.f32 %v2839, %v3159
  %v3161 = vpop.f32.mrf.mxu0
  %3162 = vmatprep.mubr.f32.mxu0 0.0
  %3163 = vmatmul.mubr.f32.gmra.mxu0 %v2957
  %v3164 = vpop.f32.mrf.mxu0
  %v3165 = vadd.f32 %v2844, %v3164
  %v3166 = vpop.f32.mrf.mxu0
  %3167 = vmatprep.mubr.f32.mxu0 0.0
  %3168 = vmatmul.mubr.f32.gmra.mxu0 %v2960
  %v3169 = vpop.f32.mrf.mxu0
  %v3170 = vadd.f32 %v2849, %v3169
  %v3171 = vpop.f32.mrf.mxu0
  %3172 = vmatprep.mubr.f32.mxu0 0.0
  %3173 = vmatmul.mubr.f32.gmra.mxu0 %v2963
  %v3174 = vpop.f32.mrf.mxu0
  %v3175 = vadd.f32 %v2854, %v3174
  %v3176 = vpop.f32.mrf.mxu0
  %3177 = vmatprep.mubr.f32.mxu0 0.0
  %3178 = vmatmul.mubr.f32.gmra.mxu0 %v2966
  %v3179 = vpop.f32.mrf.mxu0
  %v3180 = vadd.f32 %v2859, %v3179
  %v3181 = vpop.f32.mrf.mxu0
  %3182 = vmatprep.mubr.f32.mxu0 0.0
  %3183 = vmatmul.mubr.f32.gmra.mxu0 %v2969
  %v3184 = vpop.f32.mrf.mxu0
  %v3185 = vadd.f32 %v2864, %v3184
  %v3186 = vpop.f32.mrf.mxu0
  %3187 = vmatprep.mubr.f32.mxu0 0.0
  %3188 = vmatmul.mubr.f32.gmra.mxu0 %v2972
  %v3189 = vpop.f32.mrf.mxu0
  %v3190 = vadd.f32 %v2869, %v3189
  %v3191 = vpop.f32.mrf.mxu0
  %3192 = vmatprep.mubr.f32.mxu0 0.0
  %3193 = vmatmul.mubr.f32.gmra.mxu0 %v2975
  %v3194 = vpop.f32.mrf.mxu0
  %v3195 = vadd.f32 %v2874, %v3194
  %v3196 = vpop.f32.mrf.mxu0
  %3197 = vmatprep.mubr.f32.mxu0 0.0
  %3198 = vmatmul.mubr.f32.gmra.mxu0 %v2978
  %v3199 = vpop.f32.mrf.mxu0
  %v3200 = vadd.f32 %v2879, %v3199
  %v3201 = vpop.f32.mrf.mxu0
  %3202 = vmatprep.mubr.f32.mxu0 0.0
  %3203 = vmatmul.mubr.f32.gmra.mxu0 %v2981
  %v3204 = vpop.f32.mrf.mxu0
  %v3205 = vadd.f32 %v2884, %v3204
  %v3206 = vpop.f32.mrf.mxu0
  %3207 = vdwg.mxu0
  %v3208 = vlaneseq
  %v3209 = vshrl.u32 %v3208, 7
  %v3210 = vsub.s32 0, %v3209
  %v3211 = vrot.slane %v2551, %v3210
  %v3212 = vadd.f32 %v3050, %v3211
  %v3213 = vadd.f32 %v3055, %v3211
  %v3214 = vadd.f32 %v3060, %v3211
  %v3215 = vadd.f32 %v3065, %v3211
  %v3216 = vadd.f32 %v3070, %v3211
  %v3217 = vadd.f32 %v3075, %v3211
  %v3218 = vadd.f32 %v3080, %v3211
  %v3219 = vadd.f32 %v3085, %v3211
  %v3220 = vadd.f32 %v3090, %v3211
  %v3221 = vadd.f32 %v3095, %v3211
  %v3222 = vadd.f32 %v3100, %v3211
  %v3223 = vadd.f32 %v3105, %v3211
  %v3224 = vadd.f32 %v3110, %v3211
  %v3225 = vadd.f32 %v3115, %v3211
  %v3226 = vadd.f32 %v3120, %v3211
  %v3227 = vadd.f32 %v3125, %v3211
  %v3228 = vadd.f32 %v3130, %v3211
  %v3229 = vadd.f32 %v3135, %v3211
  %v3230 = vadd.f32 %v3140, %v3211
  %v3231 = vadd.f32 %v3145, %v3211
  %v3232 = vadd.f32 %v3150, %v3211
  %v3233 = vadd.f32 %v3155, %v3211
  %v3234 = vadd.f32 %v3160, %v3211
  %v3235 = vadd.f32 %v3165, %v3211
  %v3236 = vadd.f32 %v3170, %v3211
  %v3237 = vadd.f32 %v3175, %v3211
  %v3238 = vadd.f32 %v3180, %v3211
  %v3239 = vadd.f32 %v3185, %v3211
  %v3240 = vadd.f32 %v3190, %v3211
  %v3241 = vadd.f32 %v3195, %v3211
  %v3242 = vadd.f32 %v3200, %v3211
  %v3243 = vadd.f32 %v3205, %v3211
  %vm3244 = vcmask 130048
  %v3245 = vsel %vm3244, %v3212, 0.0
  %3246 = vadd.xlane.f32.xlu0 %v3245
  %v3247 = vpop.xlane.xlu0 %3246
  %v3248 = vsel %vm3244, %v3213, 0.0
  %3249 = vadd.xlane.f32.xlu0 %v3248
  %v3250 = vpop.xlane.xlu0 %3249
  %v3251 = vsel %vm3244, %v3214, 0.0
  %3252 = vadd.xlane.f32.xlu0 %v3251
  %v3253 = vpop.xlane.xlu0 %3252
  %v3254 = vsel %vm3244, %v3215, 0.0
  %3255 = vadd.xlane.f32.xlu0 %v3254
  %v3256 = vpop.xlane.xlu0 %3255
  %v3257 = vsel %vm3244, %v3216, 0.0
  %3258 = vadd.xlane.f32.xlu0 %v3257
  %v3259 = vpop.xlane.xlu0 %3258
  %v3260 = vsel %vm3244, %v3217, 0.0
  %3261 = vadd.xlane.f32.xlu0 %v3260
  %v3262 = vpop.xlane.xlu0 %3261
  %v3263 = vsel %vm3244, %v3218, 0.0
  %3264 = vadd.xlane.f32.xlu0 %v3263
  %v3265 = vpop.xlane.xlu0 %3264
  %v3266 = vsel %vm3244, %v3219, 0.0
  %3267 = vadd.xlane.f32.xlu0 %v3266
  %v3268 = vpop.xlane.xlu0 %3267
  %v3269 = vsel %vm3244, %v3220, 0.0
  %3270 = vadd.xlane.f32.xlu0 %v3269
  %v3271 = vpop.xlane.xlu0 %3270
  %v3272 = vsel %vm3244, %v3221, 0.0
  %3273 = vadd.xlane.f32.xlu0 %v3272
  %v3274 = vpop.xlane.xlu0 %3273
  %v3275 = vsel %vm3244, %v3222, 0.0
  %3276 = vadd.xlane.f32.xlu0 %v3275
  %v3277 = vpop.xlane.xlu0 %3276
  %v3278 = vsel %vm3244, %v3223, 0.0
  %3279 = vadd.xlane.f32.xlu0 %v3278
  %v3280 = vpop.xlane.xlu0 %3279
  %v3281 = vsel %vm3244, %v3224, 0.0
  %3282 = vadd.xlane.f32.xlu0 %v3281
  %v3283 = vpop.xlane.xlu0 %3282
  %v3284 = vsel %vm3244, %v3225, 0.0
  %3285 = vadd.xlane.f32.xlu0 %v3284
  %v3286 = vpop.xlane.xlu0 %3285
  %v3287 = vsel %vm3244, %v3226, 0.0
  %3288 = vadd.xlane.f32.xlu0 %v3287
  %v3289 = vpop.xlane.xlu0 %3288
  %v3290 = vsel %vm3244, %v3227, 0.0
  %3291 = vadd.xlane.f32.xlu0 %v3290
  %v3292 = vpop.xlane.xlu0 %3291
  %v3293 = vsel %vm3244, %v3228, 0.0
  %3294 = vadd.xlane.f32.xlu0 %v3293
  %v3295 = vpop.xlane.xlu0 %3294
  %v3296 = vsel %vm3244, %v3229, 0.0
  %3297 = vadd.xlane.f32.xlu0 %v3296
  %v3298 = vpop.xlane.xlu0 %3297
  %v3299 = vsel %vm3244, %v3230, 0.0
  %3300 = vadd.xlane.f32.xlu0 %v3299
  %v3301 = vpop.xlane.xlu0 %3300
  %v3302 = vsel %vm3244, %v3231, 0.0
  %3303 = vadd.xlane.f32.xlu0 %v3302
  %v3304 = vpop.xlane.xlu0 %3303
  %v3305 = vsel %vm3244, %v3232, 0.0
  %3306 = vadd.xlane.f32.xlu0 %v3305
  %v3307 = vpop.xlane.xlu0 %3306
  %v3308 = vsel %vm3244, %v3233, 0.0
  %3309 = vadd.xlane.f32.xlu0 %v3308
  %v3310 = vpop.xlane.xlu0 %3309
  %v3311 = vsel %vm3244, %v3234, 0.0
  %3312 = vadd.xlane.f32.xlu0 %v3311
  %v3313 = vpop.xlane.xlu0 %3312
  %v3314 = vsel %vm3244, %v3235, 0.0
  %3315 = vadd.xlane.f32.xlu0 %v3314
  %v3316 = vpop.xlane.xlu0 %3315
  %v3317 = vsel %vm3244, %v3236, 0.0
  %3318 = vadd.xlane.f32.xlu0 %v3317
  %v3319 = vpop.xlane.xlu0 %3318
  %v3320 = vsel %vm3244, %v3237, 0.0
  %3321 = vadd.xlane.f32.xlu0 %v3320
  %v3322 = vpop.xlane.xlu0 %3321
  %v3323 = vsel %vm3244, %v3238, 0.0
  %3324 = vadd.xlane.f32.xlu0 %v3323
  %v3325 = vpop.xlane.xlu0 %3324
  %v3326 = vsel %vm3244, %v3239, 0.0
  %3327 = vadd.xlane.f32.xlu0 %v3326
  %v3328 = vpop.xlane.xlu0 %3327
  %v3329 = vsel %vm3244, %v3240, 0.0
  %3330 = vadd.xlane.f32.xlu0 %v3329
  %v3331 = vpop.xlane.xlu0 %3330
  %v3332 = vsel %vm3244, %v3241, 0.0
  %3333 = vadd.xlane.f32.xlu0 %v3332
  %v3334 = vpop.xlane.xlu0 %3333
  %v3335 = vsel %vm3244, %v3242, 0.0
  %3336 = vadd.xlane.f32.xlu0 %v3335
  %v3337 = vpop.xlane.xlu0 %3336
  %v3338 = vsel %vm3244, %v3243, 0.0
  %3339 = vadd.xlane.f32.xlu0 %v3338
  %v3340 = vpop.xlane.xlu0 %3339
  %v3341 = vrcp.pop 16.0
  %v3342 = vmul.f32 %v3247, %v3341
  %v3343 = vmul.f32 %v3250, %v3341
  %v3344 = vmul.f32 %v3253, %v3341
  %v3345 = vmul.f32 %v3256, %v3341
  %v3346 = vmul.f32 %v3259, %v3341
  %v3347 = vmul.f32 %v3262, %v3341
  %v3348 = vmul.f32 %v3265, %v3341
  %v3349 = vmul.f32 %v3268, %v3341
  %v3350 = vmul.f32 %v3271, %v3341
  %v3351 = vmul.f32 %v3274, %v3341
  %v3352 = vmul.f32 %v3277, %v3341
  %v3353 = vmul.f32 %v3280, %v3341
  %v3354 = vmul.f32 %v3283, %v3341
  %v3355 = vmul.f32 %v3286, %v3341
  %v3356 = vmul.f32 %v3289, %v3341
  %v3357 = vmul.f32 %v3292, %v3341
  %v3358 = vmul.f32 %v3295, %v3341
  %v3359 = vmul.f32 %v3298, %v3341
  %v3360 = vmul.f32 %v3301, %v3341
  %v3361 = vmul.f32 %v3304, %v3341
  %v3362 = vmul.f32 %v3307, %v3341
  %v3363 = vmul.f32 %v3310, %v3341
  %v3364 = vmul.f32 %v3313, %v3341
  %v3365 = vmul.f32 %v3316, %v3341
  %v3366 = vmul.f32 %v3319, %v3341
  %v3367 = vmul.f32 %v3322, %v3341
  %v3368 = vmul.f32 %v3325, %v3341
  %v3369 = vmul.f32 %v3328, %v3341
  %v3370 = vmul.f32 %v3331, %v3341
  %v3371 = vmul.f32 %v3334, %v3341
  %v3372 = vmul.f32 %v3337, %v3341
  %v3373 = vmul.f32 %v3340, %v3341
  %v3374 = vsub.f32 %v3212, %v3342
  %v3375 = vsub.f32 %v3213, %v3343
  %v3376 = vsub.f32 %v3214, %v3344
  %v3377 = vsub.f32 %v3215, %v3345
  %v3378 = vsub.f32 %v3216, %v3346
  %v3379 = vsub.f32 %v3217, %v3347
  %v3380 = vsub.f32 %v3218, %v3348
  %v3381 = vsub.f32 %v3219, %v3349
  %v3382 = vsub.f32 %v3220, %v3350
  %v3383 = vsub.f32 %v3221, %v3351
  %v3384 = vsub.f32 %v3222, %v3352
  %v3385 = vsub.f32 %v3223, %v3353
  %v3386 = vsub.f32 %v3224, %v3354
  %v3387 = vsub.f32 %v3225, %v3355
  %v3388 = vsub.f32 %v3226, %v3356
  %v3389 = vsub.f32 %v3227, %v3357
  %v3390 = vsub.f32 %v3228, %v3358
  %v3391 = vsub.f32 %v3229, %v3359
  %v3392 = vsub.f32 %v3230, %v3360
  %v3393 = vsub.f32 %v3231, %v3361
  %v3394 = vsub.f32 %v3232, %v3362
  %v3395 = vsub.f32 %v3233, %v3363
  %v3396 = vsub.f32 %v3234, %v3364
  %v3397 = vsub.f32 %v3235, %v3365
  %v3398 = vsub.f32 %v3236, %v3366
  %v3399 = vsub.f32 %v3237, %v3367
  %v3400 = vsub.f32 %v3238, %v3368
  %v3401 = vsub.f32 %v3239, %v3369
  %v3402 = vsub.f32 %v3240, %v3370
  %v3403 = vsub.f32 %v3241, %v3371
  %v3404 = vsub.f32 %v3242, %v3372
  %v3405 = vsub.f32 %v3243, %v3373
  %v3406 = vmul.f32 %v3374, %v3374
  %v3407 = vmul.f32 %v3375, %v3375
  %v3408 = vmul.f32 %v3376, %v3376
  %v3409 = vmul.f32 %v3377, %v3377
  %v3410 = vmul.f32 %v3378, %v3378
  %v3411 = vmul.f32 %v3379, %v3379
  %v3412 = vmul.f32 %v3380, %v3380
  %v3413 = vmul.f32 %v3381, %v3381
  %v3414 = vmul.f32 %v3382, %v3382
  %v3415 = vmul.f32 %v3383, %v3383
  %v3416 = vmul.f32 %v3384, %v3384
  %v3417 = vmul.f32 %v3385, %v3385
  %v3418 = vmul.f32 %v3386, %v3386
  %v3419 = vmul.f32 %v3387, %v3387
  %v3420 = vmul.f32 %v3388, %v3388
  %v3421 = vmul.f32 %v3389, %v3389
  %v3422 = vmul.f32 %v3390, %v3390
  %v3423 = vmul.f32 %v3391, %v3391
  %v3424 = vmul.f32 %v3392, %v3392
  %v3425 = vmul.f32 %v3393, %v3393
  %v3426 = vmul.f32 %v3394, %v3394
  %v3427 = vmul.f32 %v3395, %v3395
  %v3428 = vmul.f32 %v3396, %v3396
  %v3429 = vmul.f32 %v3397, %v3397
  %v3430 = vmul.f32 %v3398, %v3398
  %v3431 = vmul.f32 %v3399, %v3399
  %v3432 = vmul.f32 %v3400, %v3400
  %v3433 = vmul.f32 %v3401, %v3401
  %v3434 = vmul.f32 %v3402, %v3402
  %v3435 = vmul.f32 %v3403, %v3403
  %v3436 = vmul.f32 %v3404, %v3404
  %v3437 = vmul.f32 %v3405, %v3405
  %v3438 = vsel %vm3244, %v3406, 0.0
  %3439 = vadd.xlane.f32.xlu0 %v3438
  %v3440 = vpop.xlane.xlu0 %3439
  %v3441 = vsel %vm3244, %v3407, 0.0
  %3442 = vadd.xlane.f32.xlu0 %v3441
  %v3443 = vpop.xlane.xlu0 %3442
  %v3444 = vsel %vm3244, %v3408, 0.0
  %3445 = vadd.xlane.f32.xlu0 %v3444
  %v3446 = vpop.xlane.xlu0 %3445
  %v3447 = vsel %vm3244, %v3409, 0.0
  %3448 = vadd.xlane.f32.xlu0 %v3447
  %v3449 = vpop.xlane.xlu0 %3448
  %v3450 = vsel %vm3244, %v3410, 0.0
  %3451 = vadd.xlane.f32.xlu0 %v3450
  %v3452 = vpop.xlane.xlu0 %3451
  %v3453 = vsel %vm3244, %v3411, 0.0
  %3454 = vadd.xlane.f32.xlu0 %v3453
  %v3455 = vpop.xlane.xlu0 %3454
  %v3456 = vsel %vm3244, %v3412, 0.0
  %3457 = vadd.xlane.f32.xlu0 %v3456
  %v3458 = vpop.xlane.xlu0 %3457
  %v3459 = vsel %vm3244, %v3413, 0.0
  %3460 = vadd.xlane.f32.xlu0 %v3459
  %v3461 = vpop.xlane.xlu0 %3460
  %v3462 = vsel %vm3244, %v3414, 0.0
  %3463 = vadd.xlane.f32.xlu0 %v3462
  %v3464 = vpop.xlane.xlu0 %3463
  %v3465 = vsel %vm3244, %v3415, 0.0
  %3466 = vadd.xlane.f32.xlu0 %v3465
  %v3467 = vpop.xlane.xlu0 %3466
  %v3468 = vsel %vm3244, %v3416, 0.0
  %3469 = vadd.xlane.f32.xlu0 %v3468
  %v3470 = vpop.xlane.xlu0 %3469
  %v3471 = vsel %vm3244, %v3417, 0.0
  %3472 = vadd.xlane.f32.xlu0 %v3471
  %v3473 = vpop.xlane.xlu0 %3472
  %v3474 = vsel %vm3244, %v3418, 0.0
  %3475 = vadd.xlane.f32.xlu0 %v3474
  %v3476 = vpop.xlane.xlu0 %3475
  %v3477 = vsel %vm3244, %v3419, 0.0
  %3478 = vadd.xlane.f32.xlu0 %v3477
  %v3479 = vpop.xlane.xlu0 %3478
  %v3480 = vsel %vm3244, %v3420, 0.0
  %3481 = vadd.xlane.f32.xlu0 %v3480
  %v3482 = vpop.xlane.xlu0 %3481
  %v3483 = vsel %vm3244, %v3421, 0.0
  %3484 = vadd.xlane.f32.xlu0 %v3483
  %v3485 = vpop.xlane.xlu0 %3484
  %v3486 = vsel %vm3244, %v3422, 0.0
  %3487 = vadd.xlane.f32.xlu0 %v3486
  %v3488 = vpop.xlane.xlu0 %3487
  %v3489 = vsel %vm3244, %v3423, 0.0
  %3490 = vadd.xlane.f32.xlu0 %v3489
  %v3491 = vpop.xlane.xlu0 %3490
  %v3492 = vsel %vm3244, %v3424, 0.0
  %3493 = vadd.xlane.f32.xlu0 %v3492
  %v3494 = vpop.xlane.xlu0 %3493
  %v3495 = vsel %vm3244, %v3425, 0.0
  %3496 = vadd.xlane.f32.xlu0 %v3495
  %v3497 = vpop.xlane.xlu0 %3496
  %v3498 = vsel %vm3244, %v3426, 0.0
  %3499 = vadd.xlane.f32.xlu0 %v3498
  %v3500 = vpop.xlane.xlu0 %3499
  %v3501 = vsel %vm3244, %v3427, 0.0
  %3502 = vadd.xlane.f32.xlu0 %v3501
  %v3503 = vpop.xlane.xlu0 %3502
  %v3504 = vsel %vm3244, %v3428, 0.0
  %3505 = vadd.xlane.f32.xlu0 %v3504
  %v3506 = vpop.xlane.xlu0 %3505
  %v3507 = vsel %vm3244, %v3429, 0.0
  %3508 = vadd.xlane.f32.xlu0 %v3507
  %v3509 = vpop.xlane.xlu0 %3508
  %v3510 = vsel %vm3244, %v3430, 0.0
  %3511 = vadd.xlane.f32.xlu0 %v3510
  %v3512 = vpop.xlane.xlu0 %3511
  %v3513 = vsel %vm3244, %v3431, 0.0
  %3514 = vadd.xlane.f32.xlu0 %v3513
  %v3515 = vpop.xlane.xlu0 %3514
  %v3516 = vsel %vm3244, %v3432, 0.0
  %3517 = vadd.xlane.f32.xlu0 %v3516
  %v3518 = vpop.xlane.xlu0 %3517
  %v3519 = vsel %vm3244, %v3433, 0.0
  %3520 = vadd.xlane.f32.xlu0 %v3519
  %v3521 = vpop.xlane.xlu0 %3520
  %v3522 = vsel %vm3244, %v3434, 0.0
  %3523 = vadd.xlane.f32.xlu0 %v3522
  %v3524 = vpop.xlane.xlu0 %3523
  %v3525 = vsel %vm3244, %v3435, 0.0
  %3526 = vadd.xlane.f32.xlu0 %v3525
  %v3527 = vpop.xlane.xlu0 %3526
  %v3528 = vsel %vm3244, %v3436, 0.0
  %3529 = vadd.xlane.f32.xlu0 %v3528
  %v3530 = vpop.xlane.xlu0 %3529
  %v3531 = vsel %vm3244, %v3437, 0.0
  %3532 = vadd.xlane.f32.xlu0 %v3531
  %v3533 = vpop.xlane.xlu0 %3532
  %v3534 = vmul.f32 %v3440, %v3341
  %v3535 = vmul.f32 %v3443, %v3341
  %v3536 = vmul.f32 %v3446, %v3341
  %v3537 = vmul.f32 %v3449, %v3341
  %v3538 = vmul.f32 %v3452, %v3341
  %v3539 = vmul.f32 %v3455, %v3341
  %v3540 = vmul.f32 %v3458, %v3341
  %v3541 = vmul.f32 %v3461, %v3341
  %v3542 = vmul.f32 %v3464, %v3341
  %v3543 = vmul.f32 %v3467, %v3341
  %v3544 = vmul.f32 %v3470, %v3341
  %v3545 = vmul.f32 %v3473, %v3341
  %v3546 = vmul.f32 %v3476, %v3341
  %v3547 = vmul.f32 %v3479, %v3341
  %v3548 = vmul.f32 %v3482, %v3341
  %v3549 = vmul.f32 %v3485, %v3341
  %v3550 = vmul.f32 %v3488, %v3341
  %v3551 = vmul.f32 %v3491, %v3341
  %v3552 = vmul.f32 %v3494, %v3341
  %v3553 = vmul.f32 %v3497, %v3341
  %v3554 = vmul.f32 %v3500, %v3341
  %v3555 = vmul.f32 %v3503, %v3341
  %v3556 = vmul.f32 %v3506, %v3341
  %v3557 = vmul.f32 %v3509, %v3341
  %v3558 = vmul.f32 %v3512, %v3341
  %v3559 = vmul.f32 %v3515, %v3341
  %v3560 = vmul.f32 %v3518, %v3341
  %v3561 = vmul.f32 %v3521, %v3341
  %v3562 = vmul.f32 %v3524, %v3341
  %v3563 = vmul.f32 %v3527, %v3341
  %v3564 = vmul.f32 %v3530, %v3341
  %v3565 = vmul.f32 %v3533, %v3341
  %v3566 = vadd.f32 %v3534, 1e-05
  %v3567 = vadd.f32 %v3535, 1e-05
  %v3568 = vadd.f32 %v3536, 1e-05
  %v3569 = vadd.f32 %v3537, 1e-05
  %v3570 = vadd.f32 %v3538, 1e-05
  %v3571 = vadd.f32 %v3539, 1e-05
  %v3572 = vadd.f32 %v3540, 1e-05
  %v3573 = vadd.f32 %v3541, 1e-05
  %v3574 = vadd.f32 %v3542, 1e-05
  %v3575 = vadd.f32 %v3543, 1e-05
  %v3576 = vadd.f32 %v3544, 1e-05
  %v3577 = vadd.f32 %v3545, 1e-05
  %v3578 = vadd.f32 %v3546, 1e-05
  %v3579 = vadd.f32 %v3547, 1e-05
  %v3580 = vadd.f32 %v3548, 1e-05
  %v3581 = vadd.f32 %v3549, 1e-05
  %v3582 = vadd.f32 %v3550, 1e-05
  %v3583 = vadd.f32 %v3551, 1e-05
  %v3584 = vadd.f32 %v3552, 1e-05
  %v3585 = vadd.f32 %v3553, 1e-05
  %v3586 = vadd.f32 %v3554, 1e-05
  %v3587 = vadd.f32 %v3555, 1e-05
  %v3588 = vadd.f32 %v3556, 1e-05
  %v3589 = vadd.f32 %v3557, 1e-05
  %v3590 = vadd.f32 %v3558, 1e-05
  %v3591 = vadd.f32 %v3559, 1e-05
  %v3592 = vadd.f32 %v3560, 1e-05
  %v3593 = vadd.f32 %v3561, 1e-05
  %v3594 = vadd.f32 %v3562, 1e-05
  %v3595 = vadd.f32 %v3563, 1e-05
  %v3596 = vadd.f32 %v3564, 1e-05
  %v3597 = vadd.f32 %v3565, 1e-05
  %v3598 = vrsqrt.pop %v3566
  %v3599 = vrsqrt.pop %v3567
  %v3600 = vrsqrt.pop %v3568
  %v3601 = vrsqrt.pop %v3569
  %v3602 = vrsqrt.pop %v3570
  %v3603 = vrsqrt.pop %v3571
  %v3604 = vrsqrt.pop %v3572
  %v3605 = vrsqrt.pop %v3573
  %v3606 = vrsqrt.pop %v3574
  %v3607 = vrsqrt.pop %v3575
  %v3608 = vrsqrt.pop %v3576
  %v3609 = vrsqrt.pop %v3577
  %v3610 = vrsqrt.pop %v3578
  %v3611 = vrsqrt.pop %v3579
  %v3612 = vrsqrt.pop %v3580
  %v3613 = vrsqrt.pop %v3581
  %v3614 = vrsqrt.pop %v3582
  %v3615 = vrsqrt.pop %v3583
  %v3616 = vrsqrt.pop %v3584
  %v3617 = vrsqrt.pop %v3585
  %v3618 = vrsqrt.pop %v3586
  %v3619 = vrsqrt.pop %v3587
  %v3620 = vrsqrt.pop %v3588
  %v3621 = vrsqrt.pop %v3589
  %v3622 = vrsqrt.pop %v3590
  %v3623 = vrsqrt.pop %v3591
  %v3624 = vrsqrt.pop %v3592
  %v3625 = vrsqrt.pop %v3593
  %v3626 = vrsqrt.pop %v3594
  %v3627 = vrsqrt.pop %v3595
  %v3628 = vrsqrt.pop %v3596
  %v3629 = vrsqrt.pop %v3597
  %v3630 = vmul.f32 %v3374, %v3598
  %v3631 = vmul.f32 %v3375, %v3599
  %v3632 = vmul.f32 %v3376, %v3600
  %v3633 = vmul.f32 %v3377, %v3601
  %v3634 = vmul.f32 %v3378, %v3602
  %v3635 = vmul.f32 %v3379, %v3603
  %v3636 = vmul.f32 %v3380, %v3604
  %v3637 = vmul.f32 %v3381, %v3605
  %v3638 = vmul.f32 %v3382, %v3606
  %v3639 = vmul.f32 %v3383, %v3607
  %v3640 = vmul.f32 %v3384, %v3608
  %v3641 = vmul.f32 %v3385, %v3609
  %v3642 = vmul.f32 %v3386, %v3610
  %v3643 = vmul.f32 %v3387, %v3611
  %v3644 = vmul.f32 %v3388, %v3612
  %v3645 = vmul.f32 %v3389, %v3613
  %v3646 = vmul.f32 %v3390, %v3614
  %v3647 = vmul.f32 %v3391, %v3615
  %v3648 = vmul.f32 %v3392, %v3616
  %v3649 = vmul.f32 %v3393, %v3617
  %v3650 = vmul.f32 %v3394, %v3618
  %v3651 = vmul.f32 %v3395, %v3619
  %v3652 = vmul.f32 %v3396, %v3620
  %v3653 = vmul.f32 %v3397, %v3621
  %v3654 = vmul.f32 %v3398, %v3622
  %v3655 = vmul.f32 %v3399, %v3623
  %v3656 = vmul.f32 %v3400, %v3624
  %v3657 = vmul.f32 %v3401, %v3625
  %v3658 = vmul.f32 %v3402, %v3626
  %v3659 = vmul.f32 %v3403, %v3627
  %v3660 = vmul.f32 %v3404, %v3628
  %v3661 = vmul.f32 %v3405, %v3629
  %v3662 = vlaneseq
  %v3663 = vshrl.u32 %v3662, 7
  %v3664 = vsub.s32 0, %v3663
  %v3665 = vrot.slane %v2552, %v3664
  %v3666 = vmul.f32 %v3630, %v3665
  %v3667 = vmul.f32 %v3631, %v3665
  %v3668 = vmul.f32 %v3632, %v3665
  %v3669 = vmul.f32 %v3633, %v3665
  %v3670 = vmul.f32 %v3634, %v3665
  %v3671 = vmul.f32 %v3635, %v3665
  %v3672 = vmul.f32 %v3636, %v3665
  %v3673 = vmul.f32 %v3637, %v3665
  %v3674 = vmul.f32 %v3638, %v3665
  %v3675 = vmul.f32 %v3639, %v3665
  %v3676 = vmul.f32 %v3640, %v3665
  %v3677 = vmul.f32 %v3641, %v3665
  %v3678 = vmul.f32 %v3642, %v3665
  %v3679 = vmul.f32 %v3643, %v3665
  %v3680 = vmul.f32 %v3644, %v3665
  %v3681 = vmul.f32 %v3645, %v3665
  %v3682 = vmul.f32 %v3646, %v3665
  %v3683 = vmul.f32 %v3647, %v3665
  %v3684 = vmul.f32 %v3648, %v3665
  %v3685 = vmul.f32 %v3649, %v3665
  %v3686 = vmul.f32 %v3650, %v3665
  %v3687 = vmul.f32 %v3651, %v3665
  %v3688 = vmul.f32 %v3652, %v3665
  %v3689 = vmul.f32 %v3653, %v3665
  %v3690 = vmul.f32 %v3654, %v3665
  %v3691 = vmul.f32 %v3655, %v3665
  %v3692 = vmul.f32 %v3656, %v3665
  %v3693 = vmul.f32 %v3657, %v3665
  %v3694 = vmul.f32 %v3658, %v3665
  %v3695 = vmul.f32 %v3659, %v3665
  %v3696 = vmul.f32 %v3660, %v3665
  %v3697 = vmul.f32 %v3661, %v3665
  %v3698 = vlaneseq
  %v3699 = vshrl.u32 %v3698, 7
  %v3700 = vsub.s32 0, %v3699
  %v3701 = vrot.slane %v2553, %v3700
  %v3702 = vadd.f32 %v3666, %v3701
  %v3703 = vadd.f32 %v3667, %v3701
  %v3704 = vadd.f32 %v3668, %v3701
  %v3705 = vadd.f32 %v3669, %v3701
  %v3706 = vadd.f32 %v3670, %v3701
  %v3707 = vadd.f32 %v3671, %v3701
  %v3708 = vadd.f32 %v3672, %v3701
  %v3709 = vadd.f32 %v3673, %v3701
  %v3710 = vadd.f32 %v3674, %v3701
  %v3711 = vadd.f32 %v3675, %v3701
  %v3712 = vadd.f32 %v3676, %v3701
  %v3713 = vadd.f32 %v3677, %v3701
  %v3714 = vadd.f32 %v3678, %v3701
  %v3715 = vadd.f32 %v3679, %v3701
  %v3716 = vadd.f32 %v3680, %v3701
  %v3717 = vadd.f32 %v3681, %v3701
  %v3718 = vadd.f32 %v3682, %v3701
  %v3719 = vadd.f32 %v3683, %v3701
  %v3720 = vadd.f32 %v3684, %v3701
  %v3721 = vadd.f32 %v3685, %v3701
  %v3722 = vadd.f32 %v3686, %v3701
  %v3723 = vadd.f32 %v3687, %v3701
  %v3724 = vadd.f32 %v3688, %v3701
  %v3725 = vadd.f32 %v3689, %v3701
  %v3726 = vadd.f32 %v3690, %v3701
  %v3727 = vadd.f32 %v3691, %v3701
  %v3728 = vadd.f32 %v3692, %v3701
  %v3729 = vadd.f32 %v3693, %v3701
  %v3730 = vadd.f32 %v3694, %v3701
  %v3731 = vadd.f32 %v3695, %v3701
  %v3732 = vadd.f32 %v3696, %v3701
  %v3733 = vadd.f32 %v3697, %v3701
  %v3734 = vmax.f32 %v3702, 0.0
  %v3735 = vmax.f32 %v3703, 0.0
  %v3736 = vmax.f32 %v3704, 0.0
  %v3737 = vmax.f32 %v3705, 0.0
  %v3738 = vmax.f32 %v3706, 0.0
  %v3739 = vmax.f32 %v3707, 0.0
  %v3740 = vmax.f32 %v3708, 0.0
  %v3741 = vmax.f32 %v3709, 0.0
  %v3742 = vmax.f32 %v3710, 0.0
  %v3743 = vmax.f32 %v3711, 0.0
  %v3744 = vmax.f32 %v3712, 0.0
  %v3745 = vmax.f32 %v3713, 0.0
  %v3746 = vmax.f32 %v3714, 0.0
  %v3747 = vmax.f32 %v3715, 0.0
  %v3748 = vmax.f32 %v3716, 0.0
  %v3749 = vmax.f32 %v3717, 0.0
  %v3750 = vmax.f32 %v3718, 0.0
  %v3751 = vmax.f32 %v3719, 0.0
  %v3752 = vmax.f32 %v3720, 0.0
  %v3753 = vmax.f32 %v3721, 0.0
  %v3754 = vmax.f32 %v3722, 0.0
  %v3755 = vmax.f32 %v3723, 0.0
  %v3756 = vmax.f32 %v3724, 0.0
  %v3757 = vmax.f32 %v3725, 0.0
  %v3758 = vmax.f32 %v3726, 0.0
  %v3759 = vmax.f32 %v3727, 0.0
  %v3760 = vmax.f32 %v3728, 0.0
  %v3761 = vmax.f32 %v3729, 0.0
  %v3762 = vmax.f32 %v3730, 0.0
  %v3763 = vmax.f32 %v3731, 0.0
  %v3764 = vmax.f32 %v3732, 0.0
  %v3765 = vmax.f32 %v3733, 0.0
  %v3766 = vld [vmem:[%s9] sm:$0xff]
  %v3767 = vld [vmem:[%s9 + $0x8] sm:$0xff]
  %v3768 = vlaneseq
  %v3769 = vshrl.u32 %v3768, 7
  %v3770 = vsub.s32 0, %v3769
  %v3771 = vrot.slane %v2554, %v3770
  %v3773 = vsel %vm3244, %v3734, 0
  %v3776 = vsel %vm3244, %v3735, 0
  %v3779 = vsel %vm3244, %v3736, 0
  %v3782 = vsel %vm3244, %v3737, 0
  %v3785 = vsel %vm3244, %v3738, 0
  %v3788 = vsel %vm3244, %v3739, 0
  %v3791 = vsel %vm3244, %v3740, 0
  %v3794 = vsel %vm3244, %v3741, 0
  %v3797 = vsel %vm3244, %v3742, 0
  %v3800 = vsel %vm3244, %v3743, 0
  %v3803 = vsel %vm3244, %v3744, 0
  %v3806 = vsel %vm3244, %v3745, 0
  %v3809 = vsel %vm3244, %v3746, 0
  %v3812 = vsel %vm3244, %v3747, 0
  %v3815 = vsel %vm3244, %v3748, 0
  %v3818 = vsel %vm3244, %v3749, 0
  %v3821 = vsel %vm3244, %v3750, 0
  %v3824 = vsel %vm3244, %v3751, 0
  %v3827 = vsel %vm3244, %v3752, 0
  %v3830 = vsel %vm3244, %v3753, 0
  %v3833 = vsel %vm3244, %v3754, 0
  %v3836 = vsel %vm3244, %v3755, 0
  %v3839 = vsel %vm3244, %v3756, 0
  %v3842 = vsel %vm3244, %v3757, 0
  %v3845 = vsel %vm3244, %v3758, 0
  %v3848 = vsel %vm3244, %v3759, 0
  %v3851 = vsel %vm3244, %v3760, 0
  %v3854 = vsel %vm3244, %v3761, 0
  %v3857 = vsel %vm3244, %v3762, 0
  %v3860 = vsel %vm3244, %v3763, 0
  %v3863 = vsel %vm3244, %v3764, 0
  %v3866 = vsel %vm3244, %v3765, 0
  %3868 = vmatprep.subr.mxu0 0.0
  %3869 = vmatpush1.msra.mxu0 0.0
  %3870 = vmatprep.subr.mxu0 0.0
  %3871 = vmatpush1.msra.mxu0 0.0
  %3872 = vmatprep.subr.mxu0 0.0
  %3873 = vmatpush1.msra.mxu0 0.0
  %3874 = vmatprep.subr.mxu0 0.0
  %3875 = vmatpush1.msra.mxu0 0.0
  %3876 = vmatprep.subr.mxu0 0.0
  %3877 = vmatpush1.msra.mxu0 0.0
  %3878 = vmatprep.subr.mxu0 0.0
  %3879 = vmatpush1.msra.mxu0 0.0
  %3880 = vmatprep.subr.mxu0 0.0
  %3881 = vmatpush1.msra.mxu0 0.0
  %3882 = vmatprep.subr.mxu0 0.0
  %3883 = vmatpush1.msra.mxu0 0.0
  %3884 = vmatprep.subr.mxu0 0.0
  %3885 = vmatpush1.msra.mxu0 0.0
  %3886 = vmatprep.subr.mxu0 0.0
  %3887 = vmatpush1.msra.mxu0 0.0
  %3888 = vmatprep.subr.mxu0 0.0
  %3889 = vmatpush1.msra.mxu0 0.0
  %3890 = vmatprep.subr.mxu0 0.0
  %3891 = vmatpush1.msra.mxu0 0.0
  %3892 = vmatprep.subr.mxu0 0.0
  %3893 = vmatpush1.msra.mxu0 0.0
  %3894 = vmatprep.subr.mxu0 0.0
  %3895 = vmatpush1.msra.mxu0 0.0
  %3896 = vmatprep.subr.mxu0 0.0
  %3897 = vmatpush1.msra.mxu0 %v3767
  %3898 = vmatprep.subr.mxu0 0.0
  %3899 = vmatpush1.msra.mxu0 %v3766
  %3900 = vmatprep.subr.mxu0 0.0
  %3901 = vmatpush2.msra.mxu0 0.0
  %3902 = vmatprep.subr.mxu0 0.0
  %3903 = vmatpush2.msra.mxu0 0.0
  %3904 = vmatprep.subr.mxu0 0.0
  %3905 = vmatpush2.msra.mxu0 0.0
  %3906 = vmatprep.subr.mxu0 0.0
  %3907 = vmatpush2.msra.mxu0 0.0
  %3908 = vmatprep.subr.mxu0 0.0
  %3909 = vmatpush2.msra.mxu0 0.0
  %3910 = vmatprep.subr.mxu0 0.0
  %3911 = vmatpush2.msra.mxu0 0.0
  %3912 = vmatprep.subr.mxu0 0.0
  %3913 = vmatpush2.msra.mxu0 0.0
  %3914 = vmatprep.subr.mxu0 0.0
  %3915 = vmatpush2.msra.mxu0 0.0
  %3916 = vmatprep.subr.mxu0 0.0
  %3917 = vmatpush2.msra.mxu0 0.0
  %3918 = vmatprep.subr.mxu0 0.0
  %3919 = vmatpush2.msra.mxu0 0.0
  %3920 = vmatprep.subr.mxu0 0.0
  %3921 = vmatpush2.msra.mxu0 0.0
  %3922 = vmatprep.subr.mxu0 0.0
  %3923 = vmatpush2.msra.mxu0 0.0
  %3924 = vmatprep.subr.mxu0 0.0
  %3925 = vmatpush2.msra.mxu0 0.0
  %3926 = vmatprep.subr.mxu0 0.0
  %3927 = vmatpush2.msra.mxu0 0.0
  %3928 = vmatprep.subr.mxu0 0.0
  %3929 = vmatpush2.msra.mxu0 0.0
  %3930 = vmatprep.subr.mxu0 0.0
  %3931 = vmatpush2.msra.mxu0 0.0
  %3932 = vmatprep.mubr.f32.mxu0 0.0
  %3933 = vmatmul.mubr.f32.gmra.mxu0 %v3773
  %v3934 = vpop.f32.mrf.mxu0
  %v3935 = vadd.f32 %v3771, %v3934
  %v3936 = vpop.f32.mrf.mxu0
  %3937 = vmatprep.mubr.f32.mxu0 0.0
  %3938 = vmatmul.mubr.f32.gmra.mxu0 %v3776
  %v3939 = vpop.f32.mrf.mxu0
  %v3940 = vadd.f32 %v3771, %v3939
  %v3941 = vpop.f32.mrf.mxu0
  %3942 = vmatprep.mubr.f32.mxu0 0.0
  %3943 = vmatmul.mubr.f32.gmra.mxu0 %v3779
  %v3944 = vpop.f32.mrf.mxu0
  %v3945 = vadd.f32 %v3771, %v3944
  %v3946 = vpop.f32.mrf.mxu0
  %3947 = vmatprep.mubr.f32.mxu0 0.0
  %3948 = vmatmul.mubr.f32.gmra.mxu0 %v3782
  %v3949 = vpop.f32.mrf.mxu0
  %v3950 = vadd.f32 %v3771, %v3949
  %v3951 = vpop.f32.mrf.mxu0
  %3952 = vmatprep.mubr.f32.mxu0 0.0
  %3953 = vmatmul.mubr.f32.gmra.mxu0 %v3785
  %v3954 = vpop.f32.mrf.mxu0
  %v3955 = vadd.f32 %v3771, %v3954
  %v3956 = vpop.f32.mrf.mxu0
  %3957 = vmatprep.mubr.f32.mxu0 0.0
  %3958 = vmatmul.mubr.f32.gmra.mxu0 %v3788
  %v3959 = vpop.f32.mrf.mxu0
  %v3960 = vadd.f32 %v3771, %v3959
  %v3961 = vpop.f32.mrf.mxu0
  %3962 = vmatprep.mubr.f32.mxu0 0.0
  %3963 = vmatmul.mubr.f32.gmra.mxu0 %v3791
  %v3964 = vpop.f32.mrf.mxu0
  %v3965 = vadd.f32 %v3771, %v3964
  %v3966 = vpop.f32.mrf.mxu0
  %3967 = vmatprep.mubr.f32.mxu0 0.0
  %3968 = vmatmul.mubr.f32.gmra.mxu0 %v3794
  %v3969 = vpop.f32.mrf.mxu0
  %v3970 = vadd.f32 %v3771, %v3969
  %v3971 = vpop.f32.mrf.mxu0
  %3972 = vmatprep.mubr.f32.mxu0 0.0
  %3973 = vmatmul.mubr.f32.gmra.mxu0 %v3797
  %v3974 = vpop.f32.mrf.mxu0
  %v3975 = vadd.f32 %v3771, %v3974
  %v3976 = vpop.f32.mrf.mxu0
  %3977 = vmatprep.mubr.f32.mxu0 0.0
  %3978 = vmatmul.mubr.f32.gmra.mxu0 %v3800
  %v3979 = vpop.f32.mrf.mxu0
  %v3980 = vadd.f32 %v3771, %v3979
  %v3981 = vpop.f32.mrf.mxu0
  %3982 = vmatprep.mubr.f32.mxu0 0.0
  %3983 = vmatmul.mubr.f32.gmra.mxu0 %v3803
  %v3984 = vpop.f32.mrf.mxu0
  %v3985 = vadd.f32 %v3771, %v3984
  %v3986 = vpop.f32.mrf.mxu0
  %3987 = vmatprep.mubr.f32.mxu0 0.0
  %3988 = vmatmul.mubr.f32.gmra.mxu0 %v3806
  %v3989 = vpop.f32.mrf.mxu0
  %v3990 = vadd.f32 %v3771, %v3989
  %v3991 = vpop.f32.mrf.mxu0
  %3992 = vmatprep.mubr.f32.mxu0 0.0
  %3993 = vmatmul.mubr.f32.gmra.mxu0 %v3809
  %v3994 = vpop.f32.mrf.mxu0
  %v3995 = vadd.f32 %v3771, %v3994
  %v3996 = vpop.f32.mrf.mxu0
  %3997 = vmatprep.mubr.f32.mxu0 0.0
  %3998 = vmatmul.mubr.f32.gmra.mxu0 %v3812
  %v3999 = vpop.f32.mrf.mxu0
  %v4000 = vadd.f32 %v3771, %v3999
  %v4001 = vpop.f32.mrf.mxu0
  %4002 = vmatprep.mubr.f32.mxu0 0.0
  %4003 = vmatmul.mubr.f32.gmra.mxu0 %v3815
  %v4004 = vpop.f32.mrf.mxu0
  %v4005 = vadd.f32 %v3771, %v4004
  %v4006 = vpop.f32.mrf.mxu0
  %4007 = vmatprep.mubr.f32.mxu0 0.0
  %4008 = vmatmul.mubr.f32.gmra.mxu0 %v3818
  %v4009 = vpop.f32.mrf.mxu0
  %v4010 = vadd.f32 %v3771, %v4009
  %v4011 = vpop.f32.mrf.mxu0
  %4012 = vmatprep.mubr.f32.mxu0 0.0
  %4013 = vmatmul.mubr.f32.gmra.mxu0 %v3821
  %v4014 = vpop.f32.mrf.mxu0
  %v4015 = vadd.f32 %v3771, %v4014
  %v4016 = vpop.f32.mrf.mxu0
  %4017 = vmatprep.mubr.f32.mxu0 0.0
  %4018 = vmatmul.mubr.f32.gmra.mxu0 %v3824
  %v4019 = vpop.f32.mrf.mxu0
  %v4020 = vadd.f32 %v3771, %v4019
  %v4021 = vpop.f32.mrf.mxu0
  %4022 = vmatprep.mubr.f32.mxu0 0.0
  %4023 = vmatmul.mubr.f32.gmra.mxu0 %v3827
  %v4024 = vpop.f32.mrf.mxu0
  %v4025 = vadd.f32 %v3771, %v4024
  %v4026 = vpop.f32.mrf.mxu0
  %4027 = vmatprep.mubr.f32.mxu0 0.0
  %4028 = vmatmul.mubr.f32.gmra.mxu0 %v3830
  %v4029 = vpop.f32.mrf.mxu0
  %v4030 = vadd.f32 %v3771, %v4029
  %v4031 = vpop.f32.mrf.mxu0
  %4032 = vmatprep.mubr.f32.mxu0 0.0
  %4033 = vmatmul.mubr.f32.gmra.mxu0 %v3833
  %v4034 = vpop.f32.mrf.mxu0
  %v4035 = vadd.f32 %v3771, %v4034
  %v4036 = vpop.f32.mrf.mxu0
  %4037 = vmatprep.mubr.f32.mxu0 0.0
  %4038 = vmatmul.mubr.f32.gmra.mxu0 %v3836
  %v4039 = vpop.f32.mrf.mxu0
  %v4040 = vadd.f32 %v3771, %v4039
  %v4041 = vpop.f32.mrf.mxu0
  %4042 = vmatprep.mubr.f32.mxu0 0.0
  %4043 = vmatmul.mubr.f32.gmra.mxu0 %v3839
  %v4044 = vpop.f32.mrf.mxu0
  %v4045 = vadd.f32 %v3771, %v4044
  %v4046 = vpop.f32.mrf.mxu0
  %4047 = vmatprep.mubr.f32.mxu0 0.0
  %4048 = vmatmul.mubr.f32.gmra.mxu0 %v3842
  %v4049 = vpop.f32.mrf.mxu0
  %v4050 = vadd.f32 %v3771, %v4049
  %v4051 = vpop.f32.mrf.mxu0
  %4052 = vmatprep.mubr.f32.mxu0 0.0
  %4053 = vmatmul.mubr.f32.gmra.mxu0 %v3845
  %v4054 = vpop.f32.mrf.mxu0
  %v4055 = vadd.f32 %v3771, %v4054
  %v4056 = vpop.f32.mrf.mxu0
  %4057 = vmatprep.mubr.f32.mxu0 0.0
  %4058 = vmatmul.mubr.f32.gmra.mxu0 %v3848
  %v4059 = vpop.f32.mrf.mxu0
  %v4060 = vadd.f32 %v3771, %v4059
  %v4061 = vpop.f32.mrf.mxu0
  %4062 = vmatprep.mubr.f32.mxu0 0.0
  %4063 = vmatmul.mubr.f32.gmra.mxu0 %v3851
  %v4064 = vpop.f32.mrf.mxu0
  %v4065 = vadd.f32 %v3771, %v4064
  %v4066 = vpop.f32.mrf.mxu0
  %4067 = vmatprep.mubr.f32.mxu0 0.0
  %4068 = vmatmul.mubr.f32.gmra.mxu0 %v3854
  %v4069 = vpop.f32.mrf.mxu0
  %v4070 = vadd.f32 %v3771, %v4069
  %v4071 = vpop.f32.mrf.mxu0
  %4072 = vmatprep.mubr.f32.mxu0 0.0
  %4073 = vmatmul.mubr.f32.gmra.mxu0 %v3857
  %v4074 = vpop.f32.mrf.mxu0
  %v4075 = vadd.f32 %v3771, %v4074
  %v4076 = vpop.f32.mrf.mxu0
  %4077 = vmatprep.mubr.f32.mxu0 0.0
  %4078 = vmatmul.mubr.f32.gmra.mxu0 %v3860
  %v4079 = vpop.f32.mrf.mxu0
  %v4080 = vadd.f32 %v3771, %v4079
  %v4081 = vpop.f32.mrf.mxu0
  %4082 = vmatprep.mubr.f32.mxu0 0.0
  %4083 = vmatmul.mubr.f32.gmra.mxu0 %v3863
  %v4084 = vpop.f32.mrf.mxu0
  %v4085 = vadd.f32 %v3771, %v4084
  %v4086 = vpop.f32.mrf.mxu0
  %4087 = vmatprep.mubr.f32.mxu0 0.0
  %4088 = vmatmul.mubr.f32.gmra.mxu0 %v3866
  %v4089 = vpop.f32.mrf.mxu0
  %v4090 = vadd.f32 %v3771, %v4089
  %v4091 = vpop.f32.mrf.mxu0
  %4092 = vdwg.mxu0
  %v4093 = vsel %vm3244, %v3935, 0.0
  %4094 = vadd.xlane.f32.xlu0 %v4093
  %v4095 = vpop.xlane.xlu0 %4094
  %v4096 = vsel %vm3244, %v3940, 0.0
  %4097 = vadd.xlane.f32.xlu0 %v4096
  %v4098 = vpop.xlane.xlu0 %4097
  %v4099 = vsel %vm3244, %v3945, 0.0
  %4100 = vadd.xlane.f32.xlu0 %v4099
  %v4101 = vpop.xlane.xlu0 %4100
  %v4102 = vsel %vm3244, %v3950, 0.0
  %4103 = vadd.xlane.f32.xlu0 %v4102
  %v4104 = vpop.xlane.xlu0 %4103
  %v4105 = vsel %vm3244, %v3955, 0.0
  %4106 = vadd.xlane.f32.xlu0 %v4105
  %v4107 = vpop.xlane.xlu0 %4106
  %v4108 = vsel %vm3244, %v3960, 0.0
  %4109 = vadd.xlane.f32.xlu0 %v4108
  %v4110 = vpop.xlane.xlu0 %4109
  %v4111 = vsel %vm3244, %v3965, 0.0
  %4112 = vadd.xlane.f32.xlu0 %v4111
  %v4113 = vpop.xlane.xlu0 %4112
  %v4114 = vsel %vm3244, %v3970, 0.0
  %4115 = vadd.xlane.f32.xlu0 %v4114
  %v4116 = vpop.xlane.xlu0 %4115
  %v4117 = vsel %vm3244, %v3975, 0.0
  %4118 = vadd.xlane.f32.xlu0 %v4117
  %v4119 = vpop.xlane.xlu0 %4118
  %v4120 = vsel %vm3244, %v3980, 0.0
  %4121 = vadd.xlane.f32.xlu0 %v4120
  %v4122 = vpop.xlane.xlu0 %4121
  %v4123 = vsel %vm3244, %v3985, 0.0
  %4124 = vadd.xlane.f32.xlu0 %v4123
  %v4125 = vpop.xlane.xlu0 %4124
  %v4126 = vsel %vm3244, %v3990, 0.0
  %4127 = vadd.xlane.f32.xlu0 %v4126
  %v4128 = vpop.xlane.xlu0 %4127
  %v4129 = vsel %vm3244, %v3995, 0.0
  %4130 = vadd.xlane.f32.xlu0 %v4129
  %v4131 = vpop.xlane.xlu0 %4130
  %v4132 = vsel %vm3244, %v4000, 0.0
  %4133 = vadd.xlane.f32.xlu0 %v4132
  %v4134 = vpop.xlane.xlu0 %4133
  %v4135 = vsel %vm3244, %v4005, 0.0
  %4136 = vadd.xlane.f32.xlu0 %v4135
  %v4137 = vpop.xlane.xlu0 %4136
  %v4138 = vsel %vm3244, %v4010, 0.0
  %4139 = vadd.xlane.f32.xlu0 %v4138
  %v4140 = vpop.xlane.xlu0 %4139
  %v4141 = vsel %vm3244, %v4015, 0.0
  %4142 = vadd.xlane.f32.xlu0 %v4141
  %v4143 = vpop.xlane.xlu0 %4142
  %v4144 = vsel %vm3244, %v4020, 0.0
  %4145 = vadd.xlane.f32.xlu0 %v4144
  %v4146 = vpop.xlane.xlu0 %4145
  %v4147 = vsel %vm3244, %v4025, 0.0
  %4148 = vadd.xlane.f32.xlu0 %v4147
  %v4149 = vpop.xlane.xlu0 %4148
  %v4150 = vsel %vm3244, %v4030, 0.0
  %4151 = vadd.xlane.f32.xlu0 %v4150
  %v4152 = vpop.xlane.xlu0 %4151
  %v4153 = vsel %vm3244, %v4035, 0.0
  %4154 = vadd.xlane.f32.xlu0 %v4153
  %v4155 = vpop.xlane.xlu0 %4154
  %v4156 = vsel %vm3244, %v4040, 0.0
  %4157 = vadd.xlane.f32.xlu0 %v4156
  %v4158 = vpop.xlane.xlu0 %4157
  %v4159 = vsel %vm3244, %v4045, 0.0
  %4160 = vadd.xlane.f32.xlu0 %v4159
  %v4161 = vpop.xlane.xlu0 %4160
  %v4162 = vsel %vm3244, %v4050, 0.0
  %4163 = vadd.xlane.f32.xlu0 %v4162
  %v4164 = vpop.xlane.xlu0 %4163
  %v4165 = vsel %vm3244, %v4055, 0.0
  %4166 = vadd.xlane.f32.xlu0 %v4165
  %v4167 = vpop.xlane.xlu0 %4166
  %v4168 = vsel %vm3244, %v4060, 0.0
  %4169 = vadd.xlane.f32.xlu0 %v4168
  %v4170 = vpop.xlane.xlu0 %4169
  %v4171 = vsel %vm3244, %v4065, 0.0
  %4172 = vadd.xlane.f32.xlu0 %v4171
  %v4173 = vpop.xlane.xlu0 %4172
  %v4174 = vsel %vm3244, %v4070, 0.0
  %4175 = vadd.xlane.f32.xlu0 %v4174
  %v4176 = vpop.xlane.xlu0 %4175
  %v4177 = vsel %vm3244, %v4075, 0.0
  %4178 = vadd.xlane.f32.xlu0 %v4177
  %v4179 = vpop.xlane.xlu0 %4178
  %v4180 = vsel %vm3244, %v4080, 0.0
  %4181 = vadd.xlane.f32.xlu0 %v4180
  %v4182 = vpop.xlane.xlu0 %4181
  %v4183 = vsel %vm3244, %v4085, 0.0
  %4184 = vadd.xlane.f32.xlu0 %v4183
  %v4185 = vpop.xlane.xlu0 %4184
  %v4186 = vsel %vm3244, %v4090, 0.0
  %4187 = vadd.xlane.f32.xlu0 %v4186
  %v4188 = vpop.xlane.xlu0 %4187
  %v4189 = vmul.f32 %v4095, %v3341
  %v4190 = vmul.f32 %v4098, %v3341
  %v4191 = vmul.f32 %v4101, %v3341
  %v4192 = vmul.f32 %v4104, %v3341
  %v4193 = vmul.f32 %v4107, %v3341
  %v4194 = vmul.f32 %v4110, %v3341
  %v4195 = vmul.f32 %v4113, %v3341
  %v4196 = vmul.f32 %v4116, %v3341
  %v4197 = vmul.f32 %v4119, %v3341
  %v4198 = vmul.f32 %v4122, %v3341
  %v4199 = vmul.f32 %v4125, %v3341
  %v4200 = vmul.f32 %v4128, %v3341
  %v4201 = vmul.f32 %v4131, %v3341
  %v4202 = vmul.f32 %v4134, %v3341
  %v4203 = vmul.f32 %v4137, %v3341
  %v4204 = vmul.f32 %v4140, %v3341
  %v4205 = vmul.f32 %v4143, %v3341
  %v4206 = vmul.f32 %v4146, %v3341
  %v4207 = vmul.f32 %v4149, %v3341
  %v4208 = vmul.f32 %v4152, %v3341
  %v4209 = vmul.f32 %v4155, %v3341
  %v4210 = vmul.f32 %v4158, %v3341
  %v4211 = vmul.f32 %v4161, %v3341
  %v4212 = vmul.f32 %v4164, %v3341
  %v4213 = vmul.f32 %v4167, %v3341
  %v4214 = vmul.f32 %v4170, %v3341
  %v4215 = vmul.f32 %v4173, %v3341
  %v4216 = vmul.f32 %v4176, %v3341
  %v4217 = vmul.f32 %v4179, %v3341
  %v4218 = vmul.f32 %v4182, %v3341
  %v4219 = vmul.f32 %v4185, %v3341
  %v4220 = vmul.f32 %v4188, %v3341
  %v4221 = vsub.f32 %v3935, %v4189
  %v4222 = vsub.f32 %v3940, %v4190
  %v4223 = vsub.f32 %v3945, %v4191
  %v4224 = vsub.f32 %v3950, %v4192
  %v4225 = vsub.f32 %v3955, %v4193
  %v4226 = vsub.f32 %v3960, %v4194
  %v4227 = vsub.f32 %v3965, %v4195
  %v4228 = vsub.f32 %v3970, %v4196
  %v4229 = vsub.f32 %v3975, %v4197
  %v4230 = vsub.f32 %v3980, %v4198
  %v4231 = vsub.f32 %v3985, %v4199
  %v4232 = vsub.f32 %v3990, %v4200
  %v4233 = vsub.f32 %v3995, %v4201
  %v4234 = vsub.f32 %v4000, %v4202
  %v4235 = vsub.f32 %v4005, %v4203
  %v4236 = vsub.f32 %v4010, %v4204
  %v4237 = vsub.f32 %v4015, %v4205
  %v4238 = vsub.f32 %v4020, %v4206
  %v4239 = vsub.f32 %v4025, %v4207
  %v4240 = vsub.f32 %v4030, %v4208
  %v4241 = vsub.f32 %v4035, %v4209
  %v4242 = vsub.f32 %v4040, %v4210
  %v4243 = vsub.f32 %v4045, %v4211
  %v4244 = vsub.f32 %v4050, %v4212
  %v4245 = vsub.f32 %v4055, %v4213
  %v4246 = vsub.f32 %v4060, %v4214
  %v4247 = vsub.f32 %v4065, %v4215
  %v4248 = vsub.f32 %v4070, %v4216
  %v4249 = vsub.f32 %v4075, %v4217
  %v4250 = vsub.f32 %v4080, %v4218
  %v4251 = vsub.f32 %v4085, %v4219
  %v4252 = vsub.f32 %v4090, %v4220
  %v4253 = vmul.f32 %v4221, %v4221
  %v4254 = vmul.f32 %v4222, %v4222
  %v4255 = vmul.f32 %v4223, %v4223
  %v4256 = vmul.f32 %v4224, %v4224
  %v4257 = vmul.f32 %v4225, %v4225
  %v4258 = vmul.f32 %v4226, %v4226
  %v4259 = vmul.f32 %v4227, %v4227
  %v4260 = vmul.f32 %v4228, %v4228
  %v4261 = vmul.f32 %v4229, %v4229
  %v4262 = vmul.f32 %v4230, %v4230
  %v4263 = vmul.f32 %v4231, %v4231
  %v4264 = vmul.f32 %v4232, %v4232
  %v4265 = vmul.f32 %v4233, %v4233
  %v4266 = vmul.f32 %v4234, %v4234
  %v4267 = vmul.f32 %v4235, %v4235
  %v4268 = vmul.f32 %v4236, %v4236
  %v4269 = vmul.f32 %v4237, %v4237
  %v4270 = vmul.f32 %v4238, %v4238
  %v4271 = vmul.f32 %v4239, %v4239
  %v4272 = vmul.f32 %v4240, %v4240
  %v4273 = vmul.f32 %v4241, %v4241
  %v4274 = vmul.f32 %v4242, %v4242
  %v4275 = vmul.f32 %v4243, %v4243
  %v4276 = vmul.f32 %v4244, %v4244
  %v4277 = vmul.f32 %v4245, %v4245
  %v4278 = vmul.f32 %v4246, %v4246
  %v4279 = vmul.f32 %v4247, %v4247
  %v4280 = vmul.f32 %v4248, %v4248
  %v4281 = vmul.f32 %v4249, %v4249
  %v4282 = vmul.f32 %v4250, %v4250
  %v4283 = vmul.f32 %v4251, %v4251
  %v4284 = vmul.f32 %v4252, %v4252
  %v4285 = vsel %vm3244, %v4253, 0.0
  %4286 = vadd.xlane.f32.xlu0 %v4285
  %v4287 = vpop.xlane.xlu0 %4286
  %v4288 = vsel %vm3244, %v4254, 0.0
  %4289 = vadd.xlane.f32.xlu0 %v4288
  %v4290 = vpop.xlane.xlu0 %4289
  %v4291 = vsel %vm3244, %v4255, 0.0
  %4292 = vadd.xlane.f32.xlu0 %v4291
  %v4293 = vpop.xlane.xlu0 %4292
  %v4294 = vsel %vm3244, %v4256, 0.0
  %4295 = vadd.xlane.f32.xlu0 %v4294
  %v4296 = vpop.xlane.xlu0 %4295
  %v4297 = vsel %vm3244, %v4257, 0.0
  %4298 = vadd.xlane.f32.xlu0 %v4297
  %v4299 = vpop.xlane.xlu0 %4298
  %v4300 = vsel %vm3244, %v4258, 0.0
  %4301 = vadd.xlane.f32.xlu0 %v4300
  %v4302 = vpop.xlane.xlu0 %4301
  %v4303 = vsel %vm3244, %v4259, 0.0
  %4304 = vadd.xlane.f32.xlu0 %v4303
  %v4305 = vpop.xlane.xlu0 %4304
  %v4306 = vsel %vm3244, %v4260, 0.0
  %4307 = vadd.xlane.f32.xlu0 %v4306
  %v4308 = vpop.xlane.xlu0 %4307
  %v4309 = vsel %vm3244, %v4261, 0.0
  %4310 = vadd.xlane.f32.xlu0 %v4309
  %v4311 = vpop.xlane.xlu0 %4310
  %v4312 = vsel %vm3244, %v4262, 0.0
  %4313 = vadd.xlane.f32.xlu0 %v4312
  %v4314 = vpop.xlane.xlu0 %4313
  %v4315 = vsel %vm3244, %v4263, 0.0
  %4316 = vadd.xlane.f32.xlu0 %v4315
  %v4317 = vpop.xlane.xlu0 %4316
  %v4318 = vsel %vm3244, %v4264, 0.0
  %4319 = vadd.xlane.f32.xlu0 %v4318
  %v4320 = vpop.xlane.xlu0 %4319
  %v4321 = vsel %vm3244, %v4265, 0.0
  %4322 = vadd.xlane.f32.xlu0 %v4321
  %v4323 = vpop.xlane.xlu0 %4322
  %v4324 = vsel %vm3244, %v4266, 0.0
  %4325 = vadd.xlane.f32.xlu0 %v4324
  %v4326 = vpop.xlane.xlu0 %4325
  %v4327 = vsel %vm3244, %v4267, 0.0
  %4328 = vadd.xlane.f32.xlu0 %v4327
  %v4329 = vpop.xlane.xlu0 %4328
  %v4330 = vsel %vm3244, %v4268, 0.0
  %4331 = vadd.xlane.f32.xlu0 %v4330
  %v4332 = vpop.xlane.xlu0 %4331
  %v4333 = vsel %vm3244, %v4269, 0.0
  %4334 = vadd.xlane.f32.xlu0 %v4333
  %v4335 = vpop.xlane.xlu0 %4334
  %v4336 = vsel %vm3244, %v4270, 0.0
  %4337 = vadd.xlane.f32.xlu0 %v4336
  %v4338 = vpop.xlane.xlu0 %4337
  %v4339 = vsel %vm3244, %v4271, 0.0
  %4340 = vadd.xlane.f32.xlu0 %v4339
  %v4341 = vpop.xlane.xlu0 %4340
  %v4342 = vsel %vm3244, %v4272, 0.0
  %4343 = vadd.xlane.f32.xlu0 %v4342
  %v4344 = vpop.xlane.xlu0 %4343
  %v4345 = vsel %vm3244, %v4273, 0.0
  %4346 = vadd.xlane.f32.xlu0 %v4345
  %v4347 = vpop.xlane.xlu0 %4346
  %v4348 = vsel %vm3244, %v4274, 0.0
  %4349 = vadd.xlane.f32.xlu0 %v4348
  %v4350 = vpop.xlane.xlu0 %4349
  %v4351 = vsel %vm3244, %v4275, 0.0
  %4352 = vadd.xlane.f32.xlu0 %v4351
  %v4353 = vpop.xlane.xlu0 %4352
  %v4354 = vsel %vm3244, %v4276, 0.0
  %4355 = vadd.xlane.f32.xlu0 %v4354
  %v4356 = vpop.xlane.xlu0 %4355
  %v4357 = vsel %vm3244, %v4277, 0.0
  %4358 = vadd.xlane.f32.xlu0 %v4357
  %v4359 = vpop.xlane.xlu0 %4358
  %v4360 = vsel %vm3244, %v4278, 0.0
  %4361 = vadd.xlane.f32.xlu0 %v4360
  %v4362 = vpop.xlane.xlu0 %4361
  %v4363 = vsel %vm3244, %v4279, 0.0
  %4364 = vadd.xlane.f32.xlu0 %v4363
  %v4365 = vpop.xlane.xlu0 %4364
  %v4366 = vsel %vm3244, %v4280, 0.0
  %4367 = vadd.xlane.f32.xlu0 %v4366
  %v4368 = vpop.xlane.xlu0 %4367
  %v4369 = vsel %vm3244, %v4281, 0.0
  %4370 = vadd.xlane.f32.xlu0 %v4369
  %v4371 = vpop.xlane.xlu0 %4370
  %v4372 = vsel %vm3244, %v4282, 0.0
  %4373 = vadd.xlane.f32.xlu0 %v4372
  %v4374 = vpop.xlane.xlu0 %4373
  %v4375 = vsel %vm3244, %v4283, 0.0
  %4376 = vadd.xlane.f32.xlu0 %v4375
  %v4377 = vpop.xlane.xlu0 %4376
  %v4378 = vsel %vm3244, %v4284, 0.0
  %4379 = vadd.xlane.f32.xlu0 %v4378
  %v4380 = vpop.xlane.xlu0 %4379
  %v4381 = vmul.f32 %v4287, %v3341
  %v4382 = vmul.f32 %v4290, %v3341
  %v4383 = vmul.f32 %v4293, %v3341
  %v4384 = vmul.f32 %v4296, %v3341
  %v4385 = vmul.f32 %v4299, %v3341
  %v4386 = vmul.f32 %v4302, %v3341
  %v4387 = vmul.f32 %v4305, %v3341
  %v4388 = vmul.f32 %v4308, %v3341
  %v4389 = vmul.f32 %v4311, %v3341
  %v4390 = vmul.f32 %v4314, %v3341
  %v4391 = vmul.f32 %v4317, %v3341
  %v4392 = vmul.f32 %v4320, %v3341
  %v4393 = vmul.f32 %v4323, %v3341
  %v4394 = vmul.f32 %v4326, %v3341
  %v4395 = vmul.f32 %v4329, %v3341
  %v4396 = vmul.f32 %v4332, %v3341
  %v4397 = vmul.f32 %v4335, %v3341
  %v4398 = vmul.f32 %v4338, %v3341
  %v4399 = vmul.f32 %v4341, %v3341
  %v4400 = vmul.f32 %v4344, %v3341
  %v4401 = vmul.f32 %v4347, %v3341
  %v4402 = vmul.f32 %v4350, %v3341
  %v4403 = vmul.f32 %v4353, %v3341
  %v4404 = vmul.f32 %v4356, %v3341
  %v4405 = vmul.f32 %v4359, %v3341
  %v4406 = vmul.f32 %v4362, %v3341
  %v4407 = vmul.f32 %v4365, %v3341
  %v4408 = vmul.f32 %v4368, %v3341
  %v4409 = vmul.f32 %v4371, %v3341
  %v4410 = vmul.f32 %v4374, %v3341
  %v4411 = vmul.f32 %v4377, %v3341
  %v4412 = vmul.f32 %v4380, %v3341
  %v4413 = vadd.f32 %v4381, 1e-05
  %v4414 = vadd.f32 %v4382, 1e-05
  %v4415 = vadd.f32 %v4383, 1e-05
  %v4416 = vadd.f32 %v4384, 1e-05
  %v4417 = vadd.f32 %v4385, 1e-05
  %v4418 = vadd.f32 %v4386, 1e-05
  %v4419 = vadd.f32 %v4387, 1e-05
  %v4420 = vadd.f32 %v4388, 1e-05
  %v4421 = vadd.f32 %v4389, 1e-05
  %v4422 = vadd.f32 %v4390, 1e-05
  %v4423 = vadd.f32 %v4391, 1e-05
  %v4424 = vadd.f32 %v4392, 1e-05
  %v4425 = vadd.f32 %v4393, 1e-05
  %v4426 = vadd.f32 %v4394, 1e-05
  %v4427 = vadd.f32 %v4395, 1e-05
  %v4428 = vadd.f32 %v4396, 1e-05
  %v4429 = vadd.f32 %v4397, 1e-05
  %v4430 = vadd.f32 %v4398, 1e-05
  %v4431 = vadd.f32 %v4399, 1e-05
  %v4432 = vadd.f32 %v4400, 1e-05
  %v4433 = vadd.f32 %v4401, 1e-05
  %v4434 = vadd.f32 %v4402, 1e-05
  %v4435 = vadd.f32 %v4403, 1e-05
  %v4436 = vadd.f32 %v4404, 1e-05
  %v4437 = vadd.f32 %v4405, 1e-05
  %v4438 = vadd.f32 %v4406, 1e-05
  %v4439 = vadd.f32 %v4407, 1e-05
  %v4440 = vadd.f32 %v4408, 1e-05
  %v4441 = vadd.f32 %v4409, 1e-05
  %v4442 = vadd.f32 %v4410, 1e-05
  %v4443 = vadd.f32 %v4411, 1e-05
  %v4444 = vadd.f32 %v4412, 1e-05
  %v4445 = vrsqrt.pop %v4413
  %v4446 = vrsqrt.pop %v4414
  %v4447 = vrsqrt.pop %v4415
  %v4448 = vrsqrt.pop %v4416
  %v4449 = vrsqrt.pop %v4417
  %v4450 = vrsqrt.pop %v4418
  %v4451 = vrsqrt.pop %v4419
  %v4452 = vrsqrt.pop %v4420
  %v4453 = vrsqrt.pop %v4421
  %v4454 = vrsqrt.pop %v4422
  %v4455 = vrsqrt.pop %v4423
  %v4456 = vrsqrt.pop %v4424
  %v4457 = vrsqrt.pop %v4425
  %v4458 = vrsqrt.pop %v4426
  %v4459 = vrsqrt.pop %v4427
  %v4460 = vrsqrt.pop %v4428
  %v4461 = vrsqrt.pop %v4429
  %v4462 = vrsqrt.pop %v4430
  %v4463 = vrsqrt.pop %v4431
  %v4464 = vrsqrt.pop %v4432
  %v4465 = vrsqrt.pop %v4433
  %v4466 = vrsqrt.pop %v4434
  %v4467 = vrsqrt.pop %v4435
  %v4468 = vrsqrt.pop %v4436
  %v4469 = vrsqrt.pop %v4437
  %v4470 = vrsqrt.pop %v4438
  %v4471 = vrsqrt.pop %v4439
  %v4472 = vrsqrt.pop %v4440
  %v4473 = vrsqrt.pop %v4441
  %v4474 = vrsqrt.pop %v4442
  %v4475 = vrsqrt.pop %v4443
  %v4476 = vrsqrt.pop %v4444
  %v4477 = vmul.f32 %v4221, %v4445
  %v4478 = vmul.f32 %v4222, %v4446
  %v4479 = vmul.f32 %v4223, %v4447
  %v4480 = vmul.f32 %v4224, %v4448
  %v4481 = vmul.f32 %v4225, %v4449
  %v4482 = vmul.f32 %v4226, %v4450
  %v4483 = vmul.f32 %v4227, %v4451
  %v4484 = vmul.f32 %v4228, %v4452
  %v4485 = vmul.f32 %v4229, %v4453
  %v4486 = vmul.f32 %v4230, %v4454
  %v4487 = vmul.f32 %v4231, %v4455
  %v4488 = vmul.f32 %v4232, %v4456
  %v4489 = vmul.f32 %v4233, %v4457
  %v4490 = vmul.f32 %v4234, %v4458
  %v4491 = vmul.f32 %v4235, %v4459
  %v4492 = vmul.f32 %v4236, %v4460
  %v4493 = vmul.f32 %v4237, %v4461
  %v4494 = vmul.f32 %v4238, %v4462
  %v4495 = vmul.f32 %v4239, %v4463
  %v4496 = vmul.f32 %v4240, %v4464
  %v4497 = vmul.f32 %v4241, %v4465
  %v4498 = vmul.f32 %v4242, %v4466
  %v4499 = vmul.f32 %v4243, %v4467
  %v4500 = vmul.f32 %v4244, %v4468
  %v4501 = vmul.f32 %v4245, %v4469
  %v4502 = vmul.f32 %v4246, %v4470
  %v4503 = vmul.f32 %v4247, %v4471
  %v4504 = vmul.f32 %v4248, %v4472
  %v4505 = vmul.f32 %v4249, %v4473
  %v4506 = vmul.f32 %v4250, %v4474
  %v4507 = vmul.f32 %v4251, %v4475
  %v4508 = vmul.f32 %v4252, %v4476
  %v4509 = vlaneseq
  %v4510 = vshrl.u32 %v4509, 7
  %v4511 = vsub.s32 0, %v4510
  %v4512 = vrot.slane %v2555, %v4511
  %v4513 = vmul.f32 %v4477, %v4512
  %v4514 = vmul.f32 %v4478, %v4512
  %v4515 = vmul.f32 %v4479, %v4512
  %v4516 = vmul.f32 %v4480, %v4512
  %v4517 = vmul.f32 %v4481, %v4512
  %v4518 = vmul.f32 %v4482, %v4512
  %v4519 = vmul.f32 %v4483, %v4512
  %v4520 = vmul.f32 %v4484, %v4512
  %v4521 = vmul.f32 %v4485, %v4512
  %v4522 = vmul.f32 %v4486, %v4512
  %v4523 = vmul.f32 %v4487, %v4512
  %v4524 = vmul.f32 %v4488, %v4512
  %v4525 = vmul.f32 %v4489, %v4512
  %v4526 = vmul.f32 %v4490, %v4512
  %v4527 = vmul.f32 %v4491, %v4512
  %v4528 = vmul.f32 %v4492, %v4512
  %v4529 = vmul.f32 %v4493, %v4512
  %v4530 = vmul.f32 %v4494, %v4512
  %v4531 = vmul.f32 %v4495, %v4512
  %v4532 = vmul.f32 %v4496, %v4512
  %v4533 = vmul.f32 %v4497, %v4512
  %v4534 = vmul.f32 %v4498, %v4512
  %v4535 = vmul.f32 %v4499, %v4512
  %v4536 = vmul.f32 %v4500, %v4512
  %v4537 = vmul.f32 %v4501, %v4512
  %v4538 = vmul.f32 %v4502, %v4512
  %v4539 = vmul.f32 %v4503, %v4512
  %v4540 = vmul.f32 %v4504, %v4512
  %v4541 = vmul.f32 %v4505, %v4512
  %v4542 = vmul.f32 %v4506, %v4512
  %v4543 = vmul.f32 %v4507, %v4512
  %v4544 = vmul.f32 %v4508, %v4512
  %v4545 = vlaneseq
  %v4546 = vshrl.u32 %v4545, 7
  %v4547 = vsub.s32 0, %v4546
  %v4548 = vrot.slane %v2556, %v4547
  %v4549 = vadd.f32 %v4513, %v4548
  %v4550 = vadd.f32 %v4514, %v4548
  %v4551 = vadd.f32 %v4515, %v4548
  %v4552 = vadd.f32 %v4516, %v4548
  %v4553 = vadd.f32 %v4517, %v4548
  %v4554 = vadd.f32 %v4518, %v4548
  %v4555 = vadd.f32 %v4519, %v4548
  %v4556 = vadd.f32 %v4520, %v4548
  %v4557 = vadd.f32 %v4521, %v4548
  %v4558 = vadd.f32 %v4522, %v4548
  %v4559 = vadd.f32 %v4523, %v4548
  %v4560 = vadd.f32 %v4524, %v4548
  %v4561 = vadd.f32 %v4525, %v4548
  %v4562 = vadd.f32 %v4526, %v4548
  %v4563 = vadd.f32 %v4527, %v4548
  %v4564 = vadd.f32 %v4528, %v4548
  %v4565 = vadd.f32 %v4529, %v4548
  %v4566 = vadd.f32 %v4530, %v4548
  %v4567 = vadd.f32 %v4531, %v4548
  %v4568 = vadd.f32 %v4532, %v4548
  %v4569 = vadd.f32 %v4533, %v4548
  %v4570 = vadd.f32 %v4534, %v4548
  %v4571 = vadd.f32 %v4535, %v4548
  %v4572 = vadd.f32 %v4536, %v4548
  %v4573 = vadd.f32 %v4537, %v4548
  %v4574 = vadd.f32 %v4538, %v4548
  %v4575 = vadd.f32 %v4539, %v4548
  %v4576 = vadd.f32 %v4540, %v4548
  %v4577 = vadd.f32 %v4541, %v4548
  %v4578 = vadd.f32 %v4542, %v4548
  %v4579 = vadd.f32 %v4543, %v4548
  %v4580 = vadd.f32 %v4544, %v4548
  %v4581 = vmax.f32 %v4549, 0.0
  %v4582 = vmax.f32 %v4550, 0.0
  %v4583 = vmax.f32 %v4551, 0.0
  %v4584 = vmax.f32 %v4552, 0.0
  %v4585 = vmax.f32 %v4553, 0.0
  %v4586 = vmax.f32 %v4554, 0.0
  %v4587 = vmax.f32 %v4555, 0.0
  %v4588 = vmax.f32 %v4556, 0.0
  %v4589 = vmax.f32 %v4557, 0.0
  %v4590 = vmax.f32 %v4558, 0.0
  %v4591 = vmax.f32 %v4559, 0.0
  %v4592 = vmax.f32 %v4560, 0.0
  %v4593 = vmax.f32 %v4561, 0.0
  %v4594 = vmax.f32 %v4562, 0.0
  %v4595 = vmax.f32 %v4563, 0.0
  %v4596 = vmax.f32 %v4564, 0.0
  %v4597 = vmax.f32 %v4565, 0.0
  %v4598 = vmax.f32 %v4566, 0.0
  %v4599 = vmax.f32 %v4567, 0.0
  %v4600 = vmax.f32 %v4568, 0.0
  %v4601 = vmax.f32 %v4569, 0.0
  %v4602 = vmax.f32 %v4570, 0.0
  %v4603 = vmax.f32 %v4571, 0.0
  %v4604 = vmax.f32 %v4572, 0.0
  %v4605 = vmax.f32 %v4573, 0.0
  %v4606 = vmax.f32 %v4574, 0.0
  %v4607 = vmax.f32 %v4575, 0.0
  %v4608 = vmax.f32 %v4576, 0.0
  %v4609 = vmax.f32 %v4577, 0.0
  %v4610 = vmax.f32 %v4578, 0.0
  %v4611 = vmax.f32 %v4579, 0.0
  %v4612 = vmax.f32 %v4580, 0.0
  %v4613 = vld [vmem:[%s10] sm:$0xff]
  %v4614 = vld [vmem:[%s10 + $0x8] sm:$0xff]
  %v4615 = vld [vmem:[%s11] sm:$0x1]
  %v4617 = vlaneseq
  %v4618 = vshrl.u32 %v4617, 7
  %v4619 = vsub.s32 0, %v4618
  %v4620 = vrot.slane %v4615, %v4619
  %v4623 = vsel %vm3244, %v4581, 0
  %v4626 = vsel %vm3244, %v4582, 0
  %v4629 = vsel %vm3244, %v4583, 0
  %v4632 = vsel %vm3244, %v4584, 0
  %v4635 = vsel %vm3244, %v4585, 0
  %v4638 = vsel %vm3244, %v4586, 0
  %v4641 = vsel %vm3244, %v4587, 0
  %v4644 = vsel %vm3244, %v4588, 0
  %v4647 = vsel %vm3244, %v4589, 0
  %v4650 = vsel %vm3244, %v4590, 0
  %v4653 = vsel %vm3244, %v4591, 0
  %v4656 = vsel %vm3244, %v4592, 0
  %v4659 = vsel %vm3244, %v4593, 0
  %v4662 = vsel %vm3244, %v4594, 0
  %v4665 = vsel %vm3244, %v4595, 0
  %v4668 = vsel %vm3244, %v4596, 0
  %v4671 = vsel %vm3244, %v4597, 0
  %v4674 = vsel %vm3244, %v4598, 0
  %v4677 = vsel %vm3244, %v4599, 0
  %v4680 = vsel %vm3244, %v4600, 0
  %v4683 = vsel %vm3244, %v4601, 0
  %v4686 = vsel %vm3244, %v4602, 0
  %v4689 = vsel %vm3244, %v4603, 0
  %v4692 = vsel %vm3244, %v4604, 0
  %v4695 = vsel %vm3244, %v4605, 0
  %v4698 = vsel %vm3244, %v4606, 0
  %v4701 = vsel %vm3244, %v4607, 0
  %v4704 = vsel %vm3244, %v4608, 0
  %v4707 = vsel %vm3244, %v4609, 0
  %v4710 = vsel %vm3244, %v4610, 0
  %v4713 = vsel %vm3244, %v4611, 0
  %v4716 = vsel %vm3244, %v4612, 0
  %4718 = vmatprep.subr.mxu0 0.0
  %4719 = vmatpush1.msra.mxu0 0.0
  %4720 = vmatprep.subr.mxu0 0.0
  %4721 = vmatpush1.msra.mxu0 0.0
  %4722 = vmatprep.subr.mxu0 0.0
  %4723 = vmatpush1.msra.mxu0 0.0
  %4724 = vmatprep.subr.mxu0 0.0
  %4725 = vmatpush1.msra.mxu0 0.0
  %4726 = vmatprep.subr.mxu0 0.0
  %4727 = vmatpush1.msra.mxu0 0.0
  %4728 = vmatprep.subr.mxu0 0.0
  %4729 = vmatpush1.msra.mxu0 0.0
  %4730 = vmatprep.subr.mxu0 0.0
  %4731 = vmatpush1.msra.mxu0 0.0
  %4732 = vmatprep.subr.mxu0 0.0
  %4733 = vmatpush1.msra.mxu0 0.0
  %4734 = vmatprep.subr.mxu0 0.0
  %4735 = vmatpush1.msra.mxu0 0.0
  %4736 = vmatprep.subr.mxu0 0.0
  %4737 = vmatpush1.msra.mxu0 0.0
  %4738 = vmatprep.subr.mxu0 0.0
  %4739 = vmatpush1.msra.mxu0 0.0
  %4740 = vmatprep.subr.mxu0 0.0
  %4741 = vmatpush1.msra.mxu0 0.0
  %4742 = vmatprep.subr.mxu0 0.0
  %4743 = vmatpush1.msra.mxu0 0.0
  %4744 = vmatprep.subr.mxu0 0.0
  %4745 = vmatpush1.msra.mxu0 0.0
  %4746 = vmatprep.subr.mxu0 0.0
  %4747 = vmatpush1.msra.mxu0 %v4614
  %4748 = vmatprep.subr.mxu0 0.0
  %4749 = vmatpush1.msra.mxu0 %v4613
  %4750 = vmatprep.subr.mxu0 0.0
  %4751 = vmatpush2.msra.mxu0 0.0
  %4752 = vmatprep.subr.mxu0 0.0
  %4753 = vmatpush2.msra.mxu0 0.0
  %4754 = vmatprep.subr.mxu0 0.0
  %4755 = vmatpush2.msra.mxu0 0.0
  %4756 = vmatprep.subr.mxu0 0.0
  %4757 = vmatpush2.msra.mxu0 0.0
  %4758 = vmatprep.subr.mxu0 0.0
  %4759 = vmatpush2.msra.mxu0 0.0
  %4760 = vmatprep.subr.mxu0 0.0
  %4761 = vmatpush2.msra.mxu0 0.0
  %4762 = vmatprep.subr.mxu0 0.0
  %4763 = vmatpush2.msra.mxu0 0.0
  %4764 = vmatprep.subr.mxu0 0.0
  %4765 = vmatpush2.msra.mxu0 0.0
  %4766 = vmatprep.subr.mxu0 0.0
  %4767 = vmatpush2.msra.mxu0 0.0
  %4768 = vmatprep.subr.mxu0 0.0
  %4769 = vmatpush2.msra.mxu0 0.0
  %4770 = vmatprep.subr.mxu0 0.0
  %4771 = vmatpush2.msra.mxu0 0.0
  %4772 = vmatprep.subr.mxu0 0.0
  %4773 = vmatpush2.msra.mxu0 0.0
  %4774 = vmatprep.subr.mxu0 0.0
  %4775 = vmatpush2.msra.mxu0 0.0
  %4776 = vmatprep.subr.mxu0 0.0
  %4777 = vmatpush2.msra.mxu0 0.0
  %4778 = vmatprep.subr.mxu0 0.0
  %4779 = vmatpush2.msra.mxu0 0.0
  %4780 = vmatprep.subr.mxu0 0.0
  %4781 = vmatpush2.msra.mxu0 0.0
  %4782 = vmatprep.mubr.f32.mxu0 0.0
  %4783 = vmatmul.mubr.f32.gmra.mxu0 %v4623
  %v4784 = vpop.f32.mrf.mxu0
  %v4785 = vadd.f32 %v4620, %v4784
  %v4786 = vpop.f32.mrf.mxu0
  %4787 = vmatprep.mubr.f32.mxu0 0.0
  %4788 = vmatmul.mubr.f32.gmra.mxu0 %v4626
  %v4789 = vpop.f32.mrf.mxu0
  %v4790 = vadd.f32 %v4620, %v4789
  %v4791 = vpop.f32.mrf.mxu0
  %4792 = vmatprep.mubr.f32.mxu0 0.0
  %4793 = vmatmul.mubr.f32.gmra.mxu0 %v4629
  %v4794 = vpop.f32.mrf.mxu0
  %v4795 = vadd.f32 %v4620, %v4794
  %v4796 = vpop.f32.mrf.mxu0
  %4797 = vmatprep.mubr.f32.mxu0 0.0
  %4798 = vmatmul.mubr.f32.gmra.mxu0 %v4632
  %v4799 = vpop.f32.mrf.mxu0
  %v4800 = vadd.f32 %v4620, %v4799
  %v4801 = vpop.f32.mrf.mxu0
  %4802 = vmatprep.mubr.f32.mxu0 0.0
  %4803 = vmatmul.mubr.f32.gmra.mxu0 %v4635
  %v4804 = vpop.f32.mrf.mxu0
  %v4805 = vadd.f32 %v4620, %v4804
  %v4806 = vpop.f32.mrf.mxu0
  %4807 = vmatprep.mubr.f32.mxu0 0.0
  %4808 = vmatmul.mubr.f32.gmra.mxu0 %v4638
  %v4809 = vpop.f32.mrf.mxu0
  %v4810 = vadd.f32 %v4620, %v4809
  %v4811 = vpop.f32.mrf.mxu0
  %4812 = vmatprep.mubr.f32.mxu0 0.0
  %4813 = vmatmul.mubr.f32.gmra.mxu0 %v4641
  %v4814 = vpop.f32.mrf.mxu0
  %v4815 = vadd.f32 %v4620, %v4814
  %v4816 = vpop.f32.mrf.mxu0
  %4817 = vmatprep.mubr.f32.mxu0 0.0
  %4818 = vmatmul.mubr.f32.gmra.mxu0 %v4644
  %v4819 = vpop.f32.mrf.mxu0
  %v4820 = vadd.f32 %v4620, %v4819
  %v4821 = vpop.f32.mrf.mxu0
  %4822 = vmatprep.mubr.f32.mxu0 0.0
  %4823 = vmatmul.mubr.f32.gmra.mxu0 %v4647
  %v4824 = vpop.f32.mrf.mxu0
  %v4825 = vadd.f32 %v4620, %v4824
  %v4826 = vpop.f32.mrf.mxu0
  %4827 = vmatprep.mubr.f32.mxu0 0.0
  %4828 = vmatmul.mubr.f32.gmra.mxu0 %v4650
  %v4829 = vpop.f32.mrf.mxu0
  %v4830 = vadd.f32 %v4620, %v4829
  %v4831 = vpop.f32.mrf.mxu0
  %4832 = vmatprep.mubr.f32.mxu0 0.0
  %4833 = vmatmul.mubr.f32.gmra.mxu0 %v4653
  %v4834 = vpop.f32.mrf.mxu0
  %v4835 = vadd.f32 %v4620, %v4834
  %v4836 = vpop.f32.mrf.mxu0
  %4837 = vmatprep.mubr.f32.mxu0 0.0
  %4838 = vmatmul.mubr.f32.gmra.mxu0 %v4656
  %v4839 = vpop.f32.mrf.mxu0
  %v4840 = vadd.f32 %v4620, %v4839
  %v4841 = vpop.f32.mrf.mxu0
  %4842 = vmatprep.mubr.f32.mxu0 0.0
  %4843 = vmatmul.mubr.f32.gmra.mxu0 %v4659
  %v4844 = vpop.f32.mrf.mxu0
  %v4845 = vadd.f32 %v4620, %v4844
  %v4846 = vpop.f32.mrf.mxu0
  %4847 = vmatprep.mubr.f32.mxu0 0.0
  %4848 = vmatmul.mubr.f32.gmra.mxu0 %v4662
  %v4849 = vpop.f32.mrf.mxu0
  %v4850 = vadd.f32 %v4620, %v4849
  %v4851 = vpop.f32.mrf.mxu0
  %4852 = vmatprep.mubr.f32.mxu0 0.0
  %4853 = vmatmul.mubr.f32.gmra.mxu0 %v4665
  %v4854 = vpop.f32.mrf.mxu0
  %v4855 = vadd.f32 %v4620, %v4854
  %v4856 = vpop.f32.mrf.mxu0
  %4857 = vmatprep.mubr.f32.mxu0 0.0
  %4858 = vmatmul.mubr.f32.gmra.mxu0 %v4668
  %v4859 = vpop.f32.mrf.mxu0
  %v4860 = vadd.f32 %v4620, %v4859
  %v4861 = vpop.f32.mrf.mxu0
  %4862 = vmatprep.mubr.f32.mxu0 0.0
  %4863 = vmatmul.mubr.f32.gmra.mxu0 %v4671
  %v4864 = vpop.f32.mrf.mxu0
  %v4865 = vadd.f32 %v4620, %v4864
  %v4866 = vpop.f32.mrf.mxu0
  %4867 = vmatprep.mubr.f32.mxu0 0.0
  %4868 = vmatmul.mubr.f32.gmra.mxu0 %v4674
  %v4869 = vpop.f32.mrf.mxu0
  %v4870 = vadd.f32 %v4620, %v4869
  %v4871 = vpop.f32.mrf.mxu0
  %4872 = vmatprep.mubr.f32.mxu0 0.0
  %4873 = vmatmul.mubr.f32.gmra.mxu0 %v4677
  %v4874 = vpop.f32.mrf.mxu0
  %v4875 = vadd.f32 %v4620, %v4874
  %v4876 = vpop.f32.mrf.mxu0
  %4877 = vmatprep.mubr.f32.mxu0 0.0
  %4878 = vmatmul.mubr.f32.gmra.mxu0 %v4680
  %v4879 = vpop.f32.mrf.mxu0
  %v4880 = vadd.f32 %v4620, %v4879
  %v4881 = vpop.f32.mrf.mxu0
  %4882 = vmatprep.mubr.f32.mxu0 0.0
  %4883 = vmatmul.mubr.f32.gmra.mxu0 %v4683
  %v4884 = vpop.f32.mrf.mxu0
  %v4885 = vadd.f32 %v4620, %v4884
  %v4886 = vpop.f32.mrf.mxu0
  %4887 = vmatprep.mubr.f32.mxu0 0.0
  %4888 = vmatmul.mubr.f32.gmra.mxu0 %v4686
  %v4889 = vpop.f32.mrf.mxu0
  %v4890 = vadd.f32 %v4620, %v4889
  %v4891 = vpop.f32.mrf.mxu0
  %4892 = vmatprep.mubr.f32.mxu0 0.0
  %4893 = vmatmul.mubr.f32.gmra.mxu0 %v4689
  %v4894 = vpop.f32.mrf.mxu0
  %v4895 = vadd.f32 %v4620, %v4894
  %v4896 = vpop.f32.mrf.mxu0
  %4897 = vmatprep.mubr.f32.mxu0 0.0
  %4898 = vmatmul.mubr.f32.gmra.mxu0 %v4692
  %v4899 = vpop.f32.mrf.mxu0
  %v4900 = vadd.f32 %v4620, %v4899
  %v4901 = vpop.f32.mrf.mxu0
  %4902 = vmatprep.mubr.f32.mxu0 0.0
  %4903 = vmatmul.mubr.f32.gmra.mxu0 %v4695
  %v4904 = vpop.f32.mrf.mxu0
  %v4905 = vadd.f32 %v4620, %v4904
  %v4906 = vpop.f32.mrf.mxu0
  %4907 = vmatprep.mubr.f32.mxu0 0.0
  %4908 = vmatmul.mubr.f32.gmra.mxu0 %v4698
  %v4909 = vpop.f32.mrf.mxu0
  %v4910 = vadd.f32 %v4620, %v4909
  %v4911 = vpop.f32.mrf.mxu0
  %4912 = vmatprep.mubr.f32.mxu0 0.0
  %4913 = vmatmul.mubr.f32.gmra.mxu0 %v4701
  %v4914 = vpop.f32.mrf.mxu0
  %v4915 = vadd.f32 %v4620, %v4914
  %v4916 = vpop.f32.mrf.mxu0
  %4917 = vmatprep.mubr.f32.mxu0 0.0
  %4918 = vmatmul.mubr.f32.gmra.mxu0 %v4704
  %v4919 = vpop.f32.mrf.mxu0
  %v4920 = vadd.f32 %v4620, %v4919
  %v4921 = vpop.f32.mrf.mxu0
  %4922 = vmatprep.mubr.f32.mxu0 0.0
  %4923 = vmatmul.mubr.f32.gmra.mxu0 %v4707
  %v4924 = vpop.f32.mrf.mxu0
  %v4925 = vadd.f32 %v4620, %v4924
  %v4926 = vpop.f32.mrf.mxu0
  %4927 = vmatprep.mubr.f32.mxu0 0.0
  %4928 = vmatmul.mubr.f32.gmra.mxu0 %v4710
  %v4929 = vpop.f32.mrf.mxu0
  %v4930 = vadd.f32 %v4620, %v4929
  %v4931 = vpop.f32.mrf.mxu0
  %4932 = vmatprep.mubr.f32.mxu0 0.0
  %4933 = vmatmul.mubr.f32.gmra.mxu0 %v4713
  %v4934 = vpop.f32.mrf.mxu0
  %v4935 = vadd.f32 %v4620, %v4934
  %v4936 = vpop.f32.mrf.mxu0
  %4937 = vmatprep.mubr.f32.mxu0 0.0
  %4938 = vmatmul.mubr.f32.gmra.mxu0 %v4716
  %v4939 = vpop.f32.mrf.mxu0
  %v4940 = vadd.f32 %v4620, %v4939
  %v4941 = vpop.f32.mrf.mxu0
  %4942 = vdwg.mxu0
  %4943 = vst [vmem:[%s12] sm:$0xff] %v4785
  %4944 = vst [vmem:[%s12 + $0x8] sm:$0xff] %v4790
  %4945 = vst [vmem:[%s12 + $0x10] sm:$0xff] %v4795
  %4946 = vst [vmem:[%s12 + $0x18] sm:$0xff] %v4800
  %4947 = vst [vmem:[%s12 + $0x20] sm:$0xff] %v4805
  %4948 = vst [vmem:[%s12 + $0x28] sm:$0xff] %v4810
  %4949 = vst [vmem:[%s12 + $0x30] sm:$0xff] %v4815
  %4950 = vst [vmem:[%s12 + $0x38] sm:$0xff] %v4820
  %4951 = vst [vmem:[%s12 + $0x40] sm:$0xff] %v4825
  %4952 = vst [vmem:[%s12 + $0x48] sm:$0xff] %v4830
  %4953 = vst [vmem:[%s12 + $0x50] sm:$0xff] %v4835
  %4954 = vst [vmem:[%s12 + $0x58] sm:$0xff] %v4840
  %4955 = vst [vmem:[%s12 + $0x60] sm:$0xff] %v4845
  %4956 = vst [vmem:[%s12 + $0x68] sm:$0xff] %v4850
  %4957 = vst [vmem:[%s12 + $0x70] sm:$0xff] %v4855
  %4958 = vst [vmem:[%s12 + $0x78] sm:$0xff] %v4860
  %4959 = vst [vmem:[%s12 + $0x80] sm:$0xff] %v4865
  %4960 = vst [vmem:[%s12 + $0x88] sm:$0xff] %v4870
  %4961 = vst [vmem:[%s12 + $0x90] sm:$0xff] %v4875
  %4962 = vst [vmem:[%s12 + $0x98] sm:$0xff] %v4880
  %4963 = vst [vmem:[%s12 + $0xa0] sm:$0xff] %v4885
  %4964 = vst [vmem:[%s12 + $0xa8] sm:$0xff] %v4890
  %4965 = vst [vmem:[%s12 + $0xb0] sm:$0xff] %v4895
  %4966 = vst [vmem:[%s12 + $0xb8] sm:$0xff] %v4900
  %4967 = vst [vmem:[%s12 + $0xc0] sm:$0xff] %v4905
  %4968 = vst [vmem:[%s12 + $0xc8] sm:$0xff] %v4910
  %4969 = vst [vmem:[%s12 + $0xd0] sm:$0xff] %v4915
  %4970 = vst [vmem:[%s12 + $0xd8] sm:$0xff] %v4920
  %4971 = vst [vmem:[%s12 + $0xe0] sm:$0xff] %v4925
  %4972 = vst [vmem:[%s12 + $0xe8] sm:$0xff] %v4930
  %4973 = vst [vmem:[%s12 + $0xf0] sm:$0xff] %v4935
  %4974 = vst [vmem:[%s12 + $0xf8] sm:$0xff] %v4940
  // Predicated region
  $region50: #{hypermodel_forward.1} parent=0 // pred_check
    _
  $region51: #{hypermodel_forward.1} parent=0 // pred_check_branch
    %4976 = sbr.rel (0) target = $region53
  $region52: #{hypermodel_forward.1} parent=0 // pred_region
    _
  $region53: #{hypermodel_forward.1} parent=0 // pred_fallthru
    _
  // Predicated region
  $region54: #{hypermodel_forward.1} parent=0 // pred_check
    _
  $region55: #{hypermodel_forward.1} parent=0 // pred_check_branch
    %4978 = sbr.rel (0) target = $region57
  $region56: #{hypermodel_forward.1} parent=0 // pred_region
    _
  $region57: #{hypermodel_forward.1} parent=0 // pred_fallthru
    _

</llo_original>
